<compile_context>
chip_gen: v5e
topology: v5e:2x2
jax: 0.10.0
libtpu: 0.0.40
codegen_flags: <defaults>
</compile_context>

<pallas_src>
import jax
import jax.numpy as jnp
from jax import lax
from jax.experimental import pallas as pl
from jax.experimental.pallas import tpu as pltpu

D_IN = 100          # LSTM input_size
H = 64              # LSTM hidden_size
HP = 128            # hidden padded so every gate owns a full 128-lane slab
GP = 4 * HP         # packed gate width: [i | f | o | g] slabs of 128 lanes
H_HID = 32          # hidden Linear out features
N_OUT = 2           # out Linear out features

# Row offsets inside the single packed (W_ROWS, GP) f32 weight buffer.
_D_PAD = 104                      # D_IN rounded up to a sublane multiple (8)
ROW_WHH = 0                       # rows [0, 128):   Whh_p (HP, GP)
ROW_WIH = HP                      # rows [128, 228): Wih_p (D_IN, GP)
ROW_B = ROW_WIH + _D_PAD          # row 232:         LSTM bias (1, GP)
ROW_WH = ROW_B + 8                # rows [240, 368): hidden Linear W (HP, H_HID)
ROW_BH = ROW_WH + HP              # row 368:         hidden Linear b (1, H_HID)
ROW_WO = ROW_BH + 8               # rows [376, 408): out Linear W (H_HID, N_OUT)
ROW_BO = ROW_WO + H_HID           # row 408:         out Linear b (1, N_OUT)
W_ROWS = ROW_BO + 8               # 416 rows total (~832 KiB f32)


def ree_kernel(xl_ref, xr_ref, w_ref, out_ref):
    """Fused: input projection + LSTM recurrence (L/R stacked) + distance head."""
    B, T, _ = xl_ref.shape
    two_b = 2 * B

    # ---- weights, sliced once from the single packed VMEM buffer -------------
    whh = w_ref[ROW_WHH:ROW_WHH + HP, :]        # (HP, GP), loaded once
    wih = w_ref[ROW_WIH:ROW_WIH + D_IN, :]      # (D_IN, GP)
    b_g = w_ref[ROW_B:ROW_B + 1, :]             # (1, GP)

    # ---- fused input projection for all timesteps of BOTH sequences ----------
    # (B, T, D) -> (B*T, D) is a tile-aligned merge (T == 8 sublanes); the concat
    # sits at a tile-aligned sublane offset.  One (2B*T, D) x (D, GP) MXU matmul.
    xl = xl_ref[...].reshape(B * T, D_IN)
    xr = xr_ref[...].reshape(B * T, D_IN)
    x2 = jnp.concatenate([xl, xr], axis=0)                              # (2B*T, D)
    g = jnp.dot(x2, wih, preferred_element_type=jnp.float32) + b_g      # (2B*T, GP)
    g = g.reshape(two_b, T, GP)   # tile-aligned split; row order = (seq, time)

    h = jnp.zeros((two_b, HP), jnp.float32)
    c = jnp.zeros((two_b, HP), jnp.float32)

    # T is small and static -> fully unrolled; the per-step g[:, t, :] extraction
    # depends only on g (not on h/c), so it is off the serial dependency chain.
    for t in range(T):
        gates = g[:, t, :] + jnp.dot(h, whh, preferred_element_type=jnp.float32)
        # Gate slabs [i, f, o, g]: one contiguous sigmoid over 3*HP lanes, then
        # whole-vreg (128-lane, 128-aligned) slices -> no lane relayouts.
        sig = jax.nn.sigmoid(gates[:, : 3 * HP])
        i_g = sig[:, 0 * HP:1 * HP]
        f_g = sig[:, 1 * HP:2 * HP]
        o_g = sig[:, 2 * HP:3 * HP]
        g_g = jnp.tanh(gates[:, 3 * HP:])
        c = f_g * c + i_g * g_g
        h = o_g * jnp.tanh(c)
        # Pad lanes [H, HP) stay exactly 0: gate pre-activations are 0 there
        # (zero weight columns), so c_pad = 0.5*c_pad + 0.5*0 = 0, h_pad = 0.

    # ---- head on the live final hidden states ---------------------------------
    wh = w_ref[ROW_WH:ROW_WH + HP, :H_HID]      # (HP, H_HID)
    bh = w_ref[ROW_BH:ROW_BH + 1, :H_HID]       # (1, H_HID)
    wo = w_ref[ROW_WO:ROW_WO + H_HID, :N_OUT]   # (H_HID, N_OUT)
    bo = w_ref[ROW_BO:ROW_BO + 1, :N_OUT]       # (1, N_OUT)

    dis = h[:B, :] - h[B:, :]
    sim = dis * dis                                              # torch.sub(...).pow(2)
    hid = jnp.dot(sim, wh, preferred_element_type=jnp.float32) + bh
    out = jnp.dot(hid, wo, preferred_element_type=jnp.float32) + bo
    out_ref[...] = out.astype(out_ref.dtype)


def ree_forward(x_l, x_r, w_packed):
    B = x_l.shape[0]
    # Single grid-less invocation: every operand is a whole-array VMEM block
    # (< 1 MiB total), so there is no grid bookkeeping and weights are DMA'd once.
    return pl.pallas_call(
        ree_kernel,
        out_shape=jax.ShapeDtypeStruct((B, N_OUT), jnp.float32),
        in_specs=[pl.BlockSpec(memory_space=pltpu.MemorySpace.VMEM)] * 3,
        out_specs=pl.BlockSpec(memory_space=pltpu.MemorySpace.VMEM),
    )(x_l, x_r, w_packed)


def init_params(key):
    """Unpacked parameters (gate order [i, f, o, g], widths = H)."""
    ks = jax.random.split(key, 7)
    s_lstm = 1.0 / jnp.sqrt(H)
    s_hid = 1.0 / jnp.sqrt(H)
    s_out = 1.0 / jnp.sqrt(H_HID)
    # NOTE: gate column order here is [i, f, o, g] (a permutation of PyTorch's
    # [i, f, g, o]) and the bias is a single combined b_ih + b_hh.  This is
    # distribution-preserving for random init; loading a real PyTorch checkpoint
    # would require permuting the 4H gate columns and summing the two biases.
    wih_t = jax.random.uniform(ks[0], (D_IN, 4 * H), jnp.float32, -s_lstm, s_lstm)
    whh_t = jax.random.uniform(ks[1], (H, 4 * H), jnp.float32, -s_lstm, s_lstm)
    b = jax.random.uniform(ks[2], (1, 4 * H), jnp.float32, -s_lstm, s_lstm)
    wh_t = jax.random.uniform(ks[3], (H, H_HID), jnp.float32, -s_hid, s_hid)
    bh = jax.random.uniform(ks[4], (1, H_HID), jnp.float32, -s_hid, s_hid)
    wo_t = jax.random.uniform(ks[5], (H_HID, N_OUT), jnp.float32, -s_out, s_out)
    bo = jax.random.uniform(ks[6], (1, N_OUT), jnp.float32, -s_out, s_out)
    return (wih_t, whh_t, b, wh_t, bh, wo_t, bo)


def pack_params(params):
    """Pack all weights into one lane-aligned (W_ROWS, GP) buffer (done once)."""
    wih_t, whh_t, b, wh_t, bh, wo_t, bo = params

    def to_slabs(m):  # (rows, 4H) -> (rows, GP); gate k in lanes [k*HP, k*HP + H)
        out = jnp.zeros((m.shape[0], GP), jnp.float32)
        for k in range(4):
            out = out.at[:, k * HP:k * HP + H].set(m[:, k * H:(k + 1) * H])
        return out

    w = jnp.zeros((W_ROWS, GP), jnp.float32)
    w = w.at[ROW_WHH:ROW_WHH + H, :].set(to_slabs(whh_t))   # rows [H, HP) stay 0
    w = w.at[ROW_WIH:ROW_WIH + D_IN, :].set(to_slabs(wih_t))
    w = w.at[ROW_B, :].set(to_slabs(b)[0])
    w = w.at[ROW_WH:ROW_WH + H, :H_HID].set(wh_t)           # rows [H, HP) stay 0
    w = w.at[ROW_BH, :H_HID].set(bh[0])
    w = w.at[ROW_WO:ROW_WO + H_HID, :N_OUT].set(wo_t)
    w = w.at[ROW_BO, :N_OUT].set(bo[0])
    return w


def ree_reference(x_l, x_r, params):
    """Pure-JAX reference of the same forward pass (same gate convention)."""
    wih_t, whh_t, b, wh_t, bh, wo_t, bo = params
    B = x_l.shape[0]
    hp = lax.Precision.HIGHEST

    def run_lstm(x):
        def step(carry, x_t):
            h, c = carry
            gates = (jnp.dot(x_t, wih_t, precision=hp)
                     + jnp.dot(h, whh_t, precision=hp) + b)
            i_g = jax.nn.sigmoid(gates[:, 0 * H:1 * H])
            f_g = jax.nn.sigmoid(gates[:, 1 * H:2 * H])
            o_g = jax.nn.sigmoid(gates[:, 2 * H:3 * H])
            g_g = jnp.tanh(gates[:, 3 * H:])
            c_new = f_g * c + i_g * g_g
            h_new = o_g * jnp.tanh(c_new)
            return (h_new, c_new), None

        h0 = jnp.zeros((B, H), jnp.float32)
        c0 = jnp.zeros((B, H), jnp.float32)
        (h, _), _ = lax.scan(step, (h0, c0), jnp.transpose(x, (1, 0, 2)))
        return h

    out_l = run_lstm(x_l)
    out_r = run_lstm(x_r)
    dis = (out_l - out_r) ** 2
    hid = jnp.dot(dis, wh_t, precision=hp) + bh
    return jnp.dot(hid, wo_t, precision=hp) + bo


if __name__ == "__main__":
    B, T = 2, 8
    key = jax.random.PRNGKey(0)
    k_xl, k_xr, k_p = jax.random.split(key, 3)
    x_l = jax.random.normal(k_xl, (B, T, D_IN), jnp.float32)
    x_r = jax.random.normal(k_xr, (B, T, D_IN), jnp.float32)
    params = init_params(k_p)
    w_packed = pack_params(params)          # one-time packing, outside the forward

    fwd = jax.jit(ree_forward)
    out = jax.block_until_ready(fwd(x_l, x_r, w_packed))
    ref = jax.block_until_ready(ree_reference(x_l, x_r, params))

    assert out.shape == (B, N_OUT)
    # Kernel runs at default MXU precision (bf16 passes) vs. an f32 HIGHEST
    # reference; tolerance covers the accumulated pass error over T=8 steps.
    assert jnp.allclose(out, ref, atol=2e-3, rtol=2e-3), (out, ref)
    print("KERNEL_OK")
</pallas_src>

<mosaic_0001>
module attributes {stable_mosaic.version = 11 : i64} {
  func.func @ree_kernel(%arg0: memref<2x8x100xf32, #tpu.memory_space<vmem>>, %arg1: memref<2x8x100xf32, #tpu.memory_space<vmem>>, %arg2: memref<416x512xf32, #tpu.memory_space<vmem>>, %arg3: memref<2x2xf32, #tpu.memory_space<vmem>>) attributes {dimension_semantics = [], scalar_prefetch = 0 : i64, scratch_operands = 0 : i64, tpu.core_type = #tpu.core_type<tc>} {
    %c0 = arith.constant 0 : index
    %c0_0 = arith.constant 0 : index
    %0 = vector.load %arg2[%c0, %c0_0] : memref<416x512xf32, #tpu.memory_space<vmem>>, vector<128x512xf32>
    %c128 = arith.constant 128 : index
    %c0_1 = arith.constant 0 : index
    %1 = vector.load %arg2[%c128, %c0_1] : memref<416x512xf32, #tpu.memory_space<vmem>>, vector<100x512xf32>
    %c232 = arith.constant 232 : index
    %c0_2 = arith.constant 0 : index
    %2 = vector.load %arg2[%c232, %c0_2] : memref<416x512xf32, #tpu.memory_space<vmem>>, vector<1x512xf32>
    %c0_3 = arith.constant 0 : index
    %c0_4 = arith.constant 0 : index
    %c0_5 = arith.constant 0 : index
    %3 = vector.load %arg0[%c0_3, %c0_4, %c0_5] : memref<2x8x100xf32, #tpu.memory_space<vmem>>, vector<2x8x100xf32>
    %4 = vector.shape_cast %3 : vector<2x8x100xf32> to vector<16x100xf32>
    %c0_6 = arith.constant 0 : index
    %c0_7 = arith.constant 0 : index
    %c0_8 = arith.constant 0 : index
    %5 = vector.load %arg1[%c0_6, %c0_7, %c0_8] : memref<2x8x100xf32, #tpu.memory_space<vmem>>, vector<2x8x100xf32>
    %6 = vector.shape_cast %5 : vector<2x8x100xf32> to vector<16x100xf32>
    %7 = tpu.concatenate %4, %6 in 0 : vector<16x100xf32>, vector<16x100xf32> -> vector<32x100xf32>
    %cst = arith.constant dense<0.000000e+00> : vector<32x512xf32>
    %8 = tpu.matmul %7, %1, %cst {dimension_numbers = #tpu.dot_dimension_numbers<[1], [0], [0], [1], [0, 0, 1, 1], [], []>} : vector<32x100xf32>, vector<100x512xf32>, vector<32x512xf32> -> vector<32x512xf32>
    %9 = vector.broadcast %2 : vector<1x512xf32> to vector<32x512xf32>
    %10 = arith.addf %8, %9 : vector<32x512xf32>
    %11 = vector.shape_cast %10 : vector<32x512xf32> to vector<4x8x512xf32>
    %cst_9 = arith.constant 0.000000e+00 : f32
    %12 = vector.broadcast %cst_9 : f32 to vector<4x128xf32>
    %cst_10 = arith.constant 0.000000e+00 : f32
    %13 = vector.broadcast %cst_10 : f32 to vector<4x128xf32>
    %14 = vector.extract_strided_slice %11 {offsets = [0, 0, 0], sizes = [4, 1, 512], strides = [1, 1, 1]} : vector<4x8x512xf32> to vector<4x1x512xf32>
    %15 = vector.shape_cast %14 : vector<4x1x512xf32> to vector<4x512xf32>
    %cst_11 = arith.constant dense<0.000000e+00> : vector<4x512xf32>
    %16 = tpu.matmul %12, %0, %cst_11 {dimension_numbers = #tpu.dot_dimension_numbers<[1], [0], [0], [1], [0, 0, 1, 1], [], []>} : vector<4x128xf32>, vector<128x512xf32>, vector<4x512xf32> -> vector<4x512xf32>
    %17 = arith.addf %15, %16 : vector<4x512xf32>
    %18 = vector.extract_strided_slice %17 {offsets = [0, 0], sizes = [4, 384], strides = [1, 1]} : vector<4x512xf32> to vector<4x384xf32>
    %19 = arith.negf %18 : vector<4x384xf32>
    %20 = math.exp %19 : vector<4x384xf32>
    %cst_12 = arith.constant 1.000000e+00 : f32
    %21 = vector.broadcast %cst_12 : f32 to vector<4x384xf32>
    %22 = arith.addf %21, %20 : vector<4x384xf32>
    %23 = arith.divf %21, %22 : vector<4x384xf32>
    %24 = vector.extract_strided_slice %23 {offsets = [0, 0], sizes = [4, 128], strides = [1, 1]} : vector<4x384xf32> to vector<4x128xf32>
    %25 = vector.extract_strided_slice %23 {offsets = [0, 128], sizes = [4, 128], strides = [1, 1]} : vector<4x384xf32> to vector<4x128xf32>
    %26 = vector.extract_strided_slice %23 {offsets = [0, 256], sizes = [4, 128], strides = [1, 1]} : vector<4x384xf32> to vector<4x128xf32>
    %27 = vector.extract_strided_slice %17 {offsets = [0, 384], sizes = [4, 128], strides = [1, 1]} : vector<4x512xf32> to vector<4x128xf32>
    %28 = math.tanh %27 : vector<4x128xf32>
    %29 = arith.mulf %25, %13 : vector<4x128xf32>
    %30 = arith.mulf %24, %28 : vector<4x128xf32>
    %31 = arith.addf %29, %30 : vector<4x128xf32>
    %32 = math.tanh %31 : vector<4x128xf32>
    %33 = arith.mulf %26, %32 : vector<4x128xf32>
    %34 = vector.extract_strided_slice %11 {offsets = [0, 1, 0], sizes = [4, 1, 512], strides = [1, 1, 1]} : vector<4x8x512xf32> to vector<4x1x512xf32>
    %35 = vector.shape_cast %34 : vector<4x1x512xf32> to vector<4x512xf32>
    %cst_13 = arith.constant dense<0.000000e+00> : vector<4x512xf32>
    %36 = tpu.matmul %33, %0, %cst_13 {dimension_numbers = #tpu.dot_dimension_numbers<[1], [0], [0], [1], [0, 0, 1, 1], [], []>} : vector<4x128xf32>, vector<128x512xf32>, vector<4x512xf32> -> vector<4x512xf32>
    %37 = arith.addf %35, %36 : vector<4x512xf32>
    %38 = vector.extract_strided_slice %37 {offsets = [0, 0], sizes = [4, 384], strides = [1, 1]} : vector<4x512xf32> to vector<4x384xf32>
    %39 = arith.negf %38 : vector<4x384xf32>
    %40 = math.exp %39 : vector<4x384xf32>
    %cst_14 = arith.constant 1.000000e+00 : f32
    %41 = vector.broadcast %cst_14 : f32 to vector<4x384xf32>
    %42 = arith.addf %41, %40 : vector<4x384xf32>
    %43 = arith.divf %41, %42 : vector<4x384xf32>
    %44 = vector.extract_strided_slice %43 {offsets = [0, 0], sizes = [4, 128], strides = [1, 1]} : vector<4x384xf32> to vector<4x128xf32>
    %45 = vector.extract_strided_slice %43 {offsets = [0, 128], sizes = [4, 128], strides = [1, 1]} : vector<4x384xf32> to vector<4x128xf32>
    %46 = vector.extract_strided_slice %43 {offsets = [0, 256], sizes = [4, 128], strides = [1, 1]} : vector<4x384xf32> to vector<4x128xf32>
    %47 = vector.extract_strided_slice %37 {offsets = [0, 384], sizes = [4, 128], strides = [1, 1]} : vector<4x512xf32> to vector<4x128xf32>
    %48 = math.tanh %47 : vector<4x128xf32>
    %49 = arith.mulf %45, %31 : vector<4x128xf32>
    %50 = arith.mulf %44, %48 : vector<4x128xf32>
    %51 = arith.addf %49, %50 : vector<4x128xf32>
    %52 = math.tanh %51 : vector<4x128xf32>
    %53 = arith.mulf %46, %52 : vector<4x128xf32>
    %54 = vector.extract_strided_slice %11 {offsets = [0, 2, 0], sizes = [4, 1, 512], strides = [1, 1, 1]} : vector<4x8x512xf32> to vector<4x1x512xf32>
    %55 = vector.shape_cast %54 : vector<4x1x512xf32> to vector<4x512xf32>
    %cst_15 = arith.constant dense<0.000000e+00> : vector<4x512xf32>
    %56 = tpu.matmul %53, %0, %cst_15 {dimension_numbers = #tpu.dot_dimension_numbers<[1], [0], [0], [1], [0, 0, 1, 1], [], []>} : vector<4x128xf32>, vector<128x512xf32>, vector<4x512xf32> -> vector<4x512xf32>
    %57 = arith.addf %55, %56 : vector<4x512xf32>
    %58 = vector.extract_strided_slice %57 {offsets = [0, 0], sizes = [4, 384], strides = [1, 1]} : vector<4x512xf32> to vector<4x384xf32>
    %59 = arith.negf %58 : vector<4x384xf32>
    %60 = math.exp %59 : vector<4x384xf32>
    %cst_16 = arith.constant 1.000000e+00 : f32
    %61 = vector.broadcast %cst_16 : f32 to vector<4x384xf32>
    %62 = arith.addf %61, %60 : vector<4x384xf32>
    %63 = arith.divf %61, %62 : vector<4x384xf32>
    %64 = vector.extract_strided_slice %63 {offsets = [0, 0], sizes = [4, 128], strides = [1, 1]} : vector<4x384xf32> to vector<4x128xf32>
    %65 = vector.extract_strided_slice %63 {offsets = [0, 128], sizes = [4, 128], strides = [1, 1]} : vector<4x384xf32> to vector<4x128xf32>
    %66 = vector.extract_strided_slice %63 {offsets = [0, 256], sizes = [4, 128], strides = [1, 1]} : vector<4x384xf32> to vector<4x128xf32>
    %67 = vector.extract_strided_slice %57 {offsets = [0, 384], sizes = [4, 128], strides = [1, 1]} : vector<4x512xf32> to vector<4x128xf32>
    %68 = math.tanh %67 : vector<4x128xf32>
    %69 = arith.mulf %65, %51 : vector<4x128xf32>
    %70 = arith.mulf %64, %68 : vector<4x128xf32>
    %71 = arith.addf %69, %70 : vector<4x128xf32>
    %72 = math.tanh %71 : vector<4x128xf32>
    %73 = arith.mulf %66, %72 : vector<4x128xf32>
    %74 = vector.extract_strided_slice %11 {offsets = [0, 3, 0], sizes = [4, 1, 512], strides = [1, 1, 1]} : vector<4x8x512xf32> to vector<4x1x512xf32>
    %75 = vector.shape_cast %74 : vector<4x1x512xf32> to vector<4x512xf32>
    %cst_17 = arith.constant dense<0.000000e+00> : vector<4x512xf32>
    %76 = tpu.matmul %73, %0, %cst_17 {dimension_numbers = #tpu.dot_dimension_numbers<[1], [0], [0], [1], [0, 0, 1, 1], [], []>} : vector<4x128xf32>, vector<128x512xf32>, vector<4x512xf32> -> vector<4x512xf32>
    %77 = arith.addf %75, %76 : vector<4x512xf32>
    %78 = vector.extract_strided_slice %77 {offsets = [0, 0], sizes = [4, 384], strides = [1, 1]} : vector<4x512xf32> to vector<4x384xf32>
    %79 = arith.negf %78 : vector<4x384xf32>
    %80 = math.exp %79 : vector<4x384xf32>
    %cst_18 = arith.constant 1.000000e+00 : f32
    %81 = vector.broadcast %cst_18 : f32 to vector<4x384xf32>
    %82 = arith.addf %81, %80 : vector<4x384xf32>
    %83 = arith.divf %81, %82 : vector<4x384xf32>
    %84 = vector.extract_strided_slice %83 {offsets = [0, 0], sizes = [4, 128], strides = [1, 1]} : vector<4x384xf32> to vector<4x128xf32>
    %85 = vector.extract_strided_slice %83 {offsets = [0, 128], sizes = [4, 128], strides = [1, 1]} : vector<4x384xf32> to vector<4x128xf32>
    %86 = vector.extract_strided_slice %83 {offsets = [0, 256], sizes = [4, 128], strides = [1, 1]} : vector<4x384xf32> to vector<4x128xf32>
    %87 = vector.extract_strided_slice %77 {offsets = [0, 384], sizes = [4, 128], strides = [1, 1]} : vector<4x512xf32> to vector<4x128xf32>
    %88 = math.tanh %87 : vector<4x128xf32>
    %89 = arith.mulf %85, %71 : vector<4x128xf32>
    %90 = arith.mulf %84, %88 : vector<4x128xf32>
    %91 = arith.addf %89, %90 : vector<4x128xf32>
    %92 = math.tanh %91 : vector<4x128xf32>
    %93 = arith.mulf %86, %92 : vector<4x128xf32>
    %94 = vector.extract_strided_slice %11 {offsets = [0, 4, 0], sizes = [4, 1, 512], strides = [1, 1, 1]} : vector<4x8x512xf32> to vector<4x1x512xf32>
    %95 = vector.shape_cast %94 : vector<4x1x512xf32> to vector<4x512xf32>
    %cst_19 = arith.constant dense<0.000000e+00> : vector<4x512xf32>
    %96 = tpu.matmul %93, %0, %cst_19 {dimension_numbers = #tpu.dot_dimension_numbers<[1], [0], [0], [1], [0, 0, 1, 1], [], []>} : vector<4x128xf32>, vector<128x512xf32>, vector<4x512xf32> -> vector<4x512xf32>
    %97 = arith.addf %95, %96 : vector<4x512xf32>
    %98 = vector.extract_strided_slice %97 {offsets = [0, 0], sizes = [4, 384], strides = [1, 1]} : vector<4x512xf32> to vector<4x384xf32>
    %99 = arith.negf %98 : vector<4x384xf32>
    %100 = math.exp %99 : vector<4x384xf32>
    %cst_20 = arith.constant 1.000000e+00 : f32
    %101 = vector.broadcast %cst_20 : f32 to vector<4x384xf32>
    %102 = arith.addf %101, %100 : vector<4x384xf32>
    %103 = arith.divf %101, %102 : vector<4x384xf32>
    %104 = vector.extract_strided_slice %103 {offsets = [0, 0], sizes = [4, 128], strides = [1, 1]} : vector<4x384xf32> to vector<4x128xf32>
    %105 = vector.extract_strided_slice %103 {offsets = [0, 128], sizes = [4, 128], strides = [1, 1]} : vector<4x384xf32> to vector<4x128xf32>
    %106 = vector.extract_strided_slice %103 {offsets = [0, 256], sizes = [4, 128], strides = [1, 1]} : vector<4x384xf32> to vector<4x128xf32>
    %107 = vector.extract_strided_slice %97 {offsets = [0, 384], sizes = [4, 128], strides = [1, 1]} : vector<4x512xf32> to vector<4x128xf32>
    %108 = math.tanh %107 : vector<4x128xf32>
    %109 = arith.mulf %105, %91 : vector<4x128xf32>
    %110 = arith.mulf %104, %108 : vector<4x128xf32>
    %111 = arith.addf %109, %110 : vector<4x128xf32>
    %112 = math.tanh %111 : vector<4x128xf32>
    %113 = arith.mulf %106, %112 : vector<4x128xf32>
    %114 = vector.extract_strided_slice %11 {offsets = [0, 5, 0], sizes = [4, 1, 512], strides = [1, 1, 1]} : vector<4x8x512xf32> to vector<4x1x512xf32>
    %115 = vector.shape_cast %114 : vector<4x1x512xf32> to vector<4x512xf32>
    %cst_21 = arith.constant dense<0.000000e+00> : vector<4x512xf32>
    %116 = tpu.matmul %113, %0, %cst_21 {dimension_numbers = #tpu.dot_dimension_numbers<[1], [0], [0], [1], [0, 0, 1, 1], [], []>} : vector<4x128xf32>, vector<128x512xf32>, vector<4x512xf32> -> vector<4x512xf32>
    %117 = arith.addf %115, %116 : vector<4x512xf32>
    %118 = vector.extract_strided_slice %117 {offsets = [0, 0], sizes = [4, 384], strides = [1, 1]} : vector<4x512xf32> to vector<4x384xf32>
    %119 = arith.negf %118 : vector<4x384xf32>
    %120 = math.exp %119 : vector<4x384xf32>
    %cst_22 = arith.constant 1.000000e+00 : f32
    %121 = vector.broadcast %cst_22 : f32 to vector<4x384xf32>
    %122 = arith.addf %121, %120 : vector<4x384xf32>
    %123 = arith.divf %121, %122 : vector<4x384xf32>
    %124 = vector.extract_strided_slice %123 {offsets = [0, 0], sizes = [4, 128], strides = [1, 1]} : vector<4x384xf32> to vector<4x128xf32>
    %125 = vector.extract_strided_slice %123 {offsets = [0, 128], sizes = [4, 128], strides = [1, 1]} : vector<4x384xf32> to vector<4x128xf32>
    %126 = vector.extract_strided_slice %123 {offsets = [0, 256], sizes = [4, 128], strides = [1, 1]} : vector<4x384xf32> to vector<4x128xf32>
    %127 = vector.extract_strided_slice %117 {offsets = [0, 384], sizes = [4, 128], strides = [1, 1]} : vector<4x512xf32> to vector<4x128xf32>
    %128 = math.tanh %127 : vector<4x128xf32>
    %129 = arith.mulf %125, %111 : vector<4x128xf32>
    %130 = arith.mulf %124, %128 : vector<4x128xf32>
    %131 = arith.addf %129, %130 : vector<4x128xf32>
    %132 = math.tanh %131 : vector<4x128xf32>
    %133 = arith.mulf %126, %132 : vector<4x128xf32>
    %134 = vector.extract_strided_slice %11 {offsets = [0, 6, 0], sizes = [4, 1, 512], strides = [1, 1, 1]} : vector<4x8x512xf32> to vector<4x1x512xf32>
    %135 = vector.shape_cast %134 : vector<4x1x512xf32> to vector<4x512xf32>
    %cst_23 = arith.constant dense<0.000000e+00> : vector<4x512xf32>
    %136 = tpu.matmul %133, %0, %cst_23 {dimension_numbers = #tpu.dot_dimension_numbers<[1], [0], [0], [1], [0, 0, 1, 1], [], []>} : vector<4x128xf32>, vector<128x512xf32>, vector<4x512xf32> -> vector<4x512xf32>
    %137 = arith.addf %135, %136 : vector<4x512xf32>
    %138 = vector.extract_strided_slice %137 {offsets = [0, 0], sizes = [4, 384], strides = [1, 1]} : vector<4x512xf32> to vector<4x384xf32>
    %139 = arith.negf %138 : vector<4x384xf32>
    %140 = math.exp %139 : vector<4x384xf32>
    %cst_24 = arith.constant 1.000000e+00 : f32
    %141 = vector.broadcast %cst_24 : f32 to vector<4x384xf32>
    %142 = arith.addf %141, %140 : vector<4x384xf32>
    %143 = arith.divf %141, %142 : vector<4x384xf32>
    %144 = vector.extract_strided_slice %143 {offsets = [0, 0], sizes = [4, 128], strides = [1, 1]} : vector<4x384xf32> to vector<4x128xf32>
    %145 = vector.extract_strided_slice %143 {offsets = [0, 128], sizes = [4, 128], strides = [1, 1]} : vector<4x384xf32> to vector<4x128xf32>
    %146 = vector.extract_strided_slice %143 {offsets = [0, 256], sizes = [4, 128], strides = [1, 1]} : vector<4x384xf32> to vector<4x128xf32>
    %147 = vector.extract_strided_slice %137 {offsets = [0, 384], sizes = [4, 128], strides = [1, 1]} : vector<4x512xf32> to vector<4x128xf32>
    %148 = math.tanh %147 : vector<4x128xf32>
    %149 = arith.mulf %145, %131 : vector<4x128xf32>
    %150 = arith.mulf %144, %148 : vector<4x128xf32>
    %151 = arith.addf %149, %150 : vector<4x128xf32>
    %152 = math.tanh %151 : vector<4x128xf32>
    %153 = arith.mulf %146, %152 : vector<4x128xf32>
    %154 = vector.extract_strided_slice %11 {offsets = [0, 7, 0], sizes = [4, 1, 512], strides = [1, 1, 1]} : vector<4x8x512xf32> to vector<4x1x512xf32>
    %155 = vector.shape_cast %154 : vector<4x1x512xf32> to vector<4x512xf32>
    %cst_25 = arith.constant dense<0.000000e+00> : vector<4x512xf32>
    %156 = tpu.matmul %153, %0, %cst_25 {dimension_numbers = #tpu.dot_dimension_numbers<[1], [0], [0], [1], [0, 0, 1, 1], [], []>} : vector<4x128xf32>, vector<128x512xf32>, vector<4x512xf32> -> vector<4x512xf32>
    %157 = arith.addf %155, %156 : vector<4x512xf32>
    %158 = vector.extract_strided_slice %157 {offsets = [0, 0], sizes = [4, 384], strides = [1, 1]} : vector<4x512xf32> to vector<4x384xf32>
    %159 = arith.negf %158 : vector<4x384xf32>
    %160 = math.exp %159 : vector<4x384xf32>
    %cst_26 = arith.constant 1.000000e+00 : f32
    %161 = vector.broadcast %cst_26 : f32 to vector<4x384xf32>
    %162 = arith.addf %161, %160 : vector<4x384xf32>
    %163 = arith.divf %161, %162 : vector<4x384xf32>
    %164 = vector.extract_strided_slice %163 {offsets = [0, 0], sizes = [4, 128], strides = [1, 1]} : vector<4x384xf32> to vector<4x128xf32>
    %165 = vector.extract_strided_slice %163 {offsets = [0, 128], sizes = [4, 128], strides = [1, 1]} : vector<4x384xf32> to vector<4x128xf32>
    %166 = vector.extract_strided_slice %163 {offsets = [0, 256], sizes = [4, 128], strides = [1, 1]} : vector<4x384xf32> to vector<4x128xf32>
    %167 = vector.extract_strided_slice %157 {offsets = [0, 384], sizes = [4, 128], strides = [1, 1]} : vector<4x512xf32> to vector<4x128xf32>
    %168 = math.tanh %167 : vector<4x128xf32>
    %169 = arith.mulf %165, %151 : vector<4x128xf32>
    %170 = arith.mulf %164, %168 : vector<4x128xf32>
    %171 = arith.addf %169, %170 : vector<4x128xf32>
    %172 = math.tanh %171 : vector<4x128xf32>
    %173 = arith.mulf %166, %172 : vector<4x128xf32>
    %c240 = arith.constant 240 : index
    %c0_27 = arith.constant 0 : index
    %174 = vector.load %arg2[%c240, %c0_27] : memref<416x512xf32, #tpu.memory_space<vmem>>, vector<128x32xf32>
    %c368 = arith.constant 368 : index
    %c0_28 = arith.constant 0 : index
    %175 = vector.load %arg2[%c368, %c0_28] : memref<416x512xf32, #tpu.memory_space<vmem>>, vector<1x32xf32>
    %c376 = arith.constant 376 : index
    %c0_29 = arith.constant 0 : index
    %176 = vector.load %arg2[%c376, %c0_29] : memref<416x512xf32, #tpu.memory_space<vmem>>, vector<32x2xf32>
    %c408 = arith.constant 408 : index
    %c0_30 = arith.constant 0 : index
    %177 = vector.load %arg2[%c408, %c0_30] : memref<416x512xf32, #tpu.memory_space<vmem>>, vector<1x2xf32>
    %178 = vector.extract_strided_slice %173 {offsets = [0, 0], sizes = [2, 128], strides = [1, 1]} : vector<4x128xf32> to vector<2x128xf32>
    %179 = vector.extract_strided_slice %173 {offsets = [2, 0], sizes = [2, 128], strides = [1, 1]} : vector<4x128xf32> to vector<2x128xf32>
    %180 = arith.subf %178, %179 : vector<2x128xf32>
    %181 = arith.mulf %180, %180 : vector<2x128xf32>
    %cst_31 = arith.constant dense<0.000000e+00> : vector<2x32xf32>
    %182 = tpu.matmul %181, %174, %cst_31 {dimension_numbers = #tpu.dot_dimension_numbers<[1], [0], [0], [1], [0, 0, 1, 1], [], []>} : vector<2x128xf32>, vector<128x32xf32>, vector<2x32xf32> -> vector<2x32xf32>
    %183 = vector.broadcast %175 : vector<1x32xf32> to vector<2x32xf32>
    %184 = arith.addf %182, %183 : vector<2x32xf32>
    %cst_32 = arith.constant dense<0.000000e+00> : vector<2x2xf32>
    %185 = tpu.matmul %184, %176, %cst_32 {dimension_numbers = #tpu.dot_dimension_numbers<[1], [0], [0], [1], [0, 0, 1, 1], [], []>} : vector<2x32xf32>, vector<32x2xf32>, vector<2x2xf32> -> vector<2x2xf32>
    %186 = vector.broadcast %177 : vector<1x2xf32> to vector<2x2xf32>
    %187 = arith.addf %185, %186 : vector<2x2xf32>
    %c0_33 = arith.constant 0 : index
    %c0_34 = arith.constant 0 : index
    %188 = vector.load %arg3[%c0_33, %c0_34] : memref<2x2xf32, #tpu.memory_space<vmem>>, vector<2x2xf32>
    tpu.vector_store %arg3[%c0_33, %c0_34], %187 {strides = array<i32>} : memref<2x2xf32, #tpu.memory_space<vmem>>, vector<2x2xf32>,
    return
  }
}

</mosaic_0001>

<llo_original>
// kernel: ree_forward.1
$region0: #{ree_forward.1}
  #allocation0 [shape = 'u32[]', space=smem, size = 0x4, offset = 0x4, fixed_abs, tag = 'smem constant byte address 0x4 - core index']
  #allocation1 [shape = 'u32[72,128]{1,0:T(1,128)}', space=vmem, size = 0x9000, scoped, tag = 'internal scratch']
  %s0 = inlined_call_operand.hbm [shape: f32[2,8,100], index: 0, kind: input, shape index: {}]
  %s1 = inlined_call_operand.hbm [shape: f32[2,8,100], index: 1, kind: input, shape index: {}]
  %s2 = inlined_call_operand.hbm [shape: f32[416,512], index: 2, kind: input, shape index: {}]
  %s3 = inlined_call_operand.hbm [shape: f32[2,2], index: 3, kind: output, shape index: {}]
  %s4 = sld [smem:[#allocation0]]
  $region34: #{ree_forward.1} parent=0
    _
  %s6 = ssub.s32 1, %s4
  %s7 = scalar_select 0, %s6, %s4
  $region1: #{ree_forward.1} parent=0
    #allocation2 [shape = 'u8[8192]{0}', space=vmem, size = 0x2000, scoped, tag = 'input window, operand 0, single buffered']
    #allocation3 [shape = 's32[1]{0}', space=sflag, size = 0x4, scoped, tag = 'scoped memory for ree_forward.1']
    #allocation4 [shape = 's32[1]{0}', space=sflag, size = 0x4, scoped, tag = 'scoped memory for ree_forward.1']
    #allocation5 [shape = 'u8[8192]{0}', space=vmem, size = 0x2000, scoped, tag = 'input window, operand 1, single buffered']
    #allocation6 [shape = 's32[1]{0}', space=sflag, size = 0x4, scoped, tag = 'scoped memory for ree_forward.1']
    #allocation7 [shape = 'u8[851968]{0}', space=vmem, size = 0xd0000, scoped, tag = 'input window, operand 2, single buffered']
    #allocation8 [shape = 'u8[1024]{0}', space=vmem, size = 0x400, scoped, tag = 'output window, operand 0, single buffered']
    %8 = vsyncpa [#allocation3], 0
    %9 = vsyncpa [#allocation6], 0
    %10 = vsyncpa [#allocation4], 0
    // Predicated region
    $region2: #{ree_forward.1} parent=1 // pred_check
      _
    $region3: #{ree_forward.1} parent=1 // pred_check_branch
      %12 = sbr.rel (0) target = $region5
    $region4: #{ree_forward.1} parent=1 // pred_region
      %14 = vsyncadd [#allocation3], 0
      %s15 = sshll.u32 %s0, 4
      %s16 = int_to_ptr.hbm [resolvable:$true] %s15
      %s17 = sshll.u32 [#allocation2], 4
      %s18 = int_to_ptr.vmem [resolvable:$true] %s17
      %23 = dma.hbm_to_vmem [thread:$0]  %s16, 256, %s18, [#allocation3], 128, 128, 8
    $region5: #{ree_forward.1} parent=1 // pred_fallthru
      _
    // Predicated region
    $region6: #{ree_forward.1} parent=1 // pred_check
      _
    $region7: #{ree_forward.1} parent=1 // pred_check_branch
      %25 = sbr.rel (0) target = $region9
    $region8: #{ree_forward.1} parent=1 // pred_region
      %27 = vsyncadd [#allocation6], 0
      %s28 = sshll.u32 %s1, 4
      %s29 = int_to_ptr.hbm [resolvable:$true] %s28
      %s30 = sshll.u32 [#allocation5], 4
      %s31 = int_to_ptr.vmem [resolvable:$true] %s30
      %36 = dma.hbm_to_vmem [thread:$0]  %s29, 256, %s31, [#allocation6], 128, 128, 8
    $region9: #{ree_forward.1} parent=1 // pred_fallthru
      _
    // Predicated region
    $region10: #{ree_forward.1} parent=1 // pred_check
      _
    $region11: #{ree_forward.1} parent=1 // pred_check_branch
      %38 = sbr.rel (0) target = $region13
    $region12: #{ree_forward.1} parent=1 // pred_region
      %40 = vsyncadd [#allocation6], 0
      %s41 = sshll.u32 %s2, 4
      %s42 = int_to_ptr.hbm [resolvable:$true] %s41
      %s43 = sshll.u32 [#allocation7], 4
      %s44 = int_to_ptr.vmem [resolvable:$true] %s43
      %49 = dma.hbm_to_vmem [thread:$0]  %s42, 26624, %s44, [#allocation6], 512, 512, 32
    $region13: #{ree_forward.1} parent=1 // pred_fallthru
      _
    // Predicated region
    $region14: #{ree_forward.1} parent=1 // pred_check
      _
    $region15: #{ree_forward.1} parent=1 // pred_check_branch
      %51 = sbr.rel (0) target = $region17
    $region16: #{ree_forward.1} parent=1 // pred_region
      %53 = dma.done [#allocation3], 256
    $region17: #{ree_forward.1} parent=1 // pred_fallthru
      _
    // Predicated region
    $region18: #{ree_forward.1} parent=1 // pred_check
      _
    $region19: #{ree_forward.1} parent=1 // pred_check_branch
      %55 = sbr.rel (0) target = $region21
    $region20: #{ree_forward.1} parent=1 // pred_region
      %57 = dma.done [#allocation6], 256
    $region21: #{ree_forward.1} parent=1 // pred_fallthru
      _
    // Predicated region
    $region22: #{ree_forward.1} parent=1 // pred_check
      _
    $region23: #{ree_forward.1} parent=1 // pred_check_branch
      %59 = sbr.rel (0) target = $region25
    $region24: #{ree_forward.1} parent=1 // pred_region
      %61 = dma.done [#allocation6], 26624
    $region25: #{ree_forward.1} parent=1 // pred_fallthru
      _
    %v62 = vld [vmem:[#allocation7] sm:$0xff]
    %v63 = vld [vmem:[#allocation7 + $0x8] sm:$0xff]
    %v64 = vld [vmem:[#allocation7 + $0x10] sm:$0xff]
    %v65 = vld [vmem:[#allocation7 + $0x18] sm:$0xff]
    %v66 = vld [vmem:[#allocation7 + $0x20] sm:$0xff]
    %v67 = vld [vmem:[#allocation7 + $0x28] sm:$0xff]
    %v68 = vld [vmem:[#allocation7 + $0x30] sm:$0xff]
    %v69 = vld [vmem:[#allocation7 + $0x38] sm:$0xff]
    %v70 = vld [vmem:[#allocation7 + $0x40] sm:$0xff]
    %v71 = vld [vmem:[#allocation7 + $0x48] sm:$0xff]
    %v72 = vld [vmem:[#allocation7 + $0x50] sm:$0xff]
    %v73 = vld [vmem:[#allocation7 + $0x58] sm:$0xff]
    %v74 = vld [vmem:[#allocation7 + $0x60] sm:$0xff]
    %v75 = vld [vmem:[#allocation7 + $0x68] sm:$0xff]
    %v76 = vld [vmem:[#allocation7 + $0x70] sm:$0xff]
    %v77 = vld [vmem:[#allocation7 + $0x78] sm:$0xff]
    %v78 = vld [vmem:[#allocation7 + $0x80] sm:$0xff]
    %v79 = vld [vmem:[#allocation7 + $0x88] sm:$0xff]
    %v80 = vld [vmem:[#allocation7 + $0x90] sm:$0xff]
    %v81 = vld [vmem:[#allocation7 + $0x98] sm:$0xff]
    %v82 = vld [vmem:[#allocation7 + $0xa0] sm:$0xff]
    %v83 = vld [vmem:[#allocation7 + $0xa8] sm:$0xff]
    %v84 = vld [vmem:[#allocation7 + $0xb0] sm:$0xff]
    %v85 = vld [vmem:[#allocation7 + $0xb8] sm:$0xff]
    %v86 = vld [vmem:[#allocation7 + $0xc0] sm:$0xff]
    %v87 = vld [vmem:[#allocation7 + $0xc8] sm:$0xff]
    %v88 = vld [vmem:[#allocation7 + $0xd0] sm:$0xff]
    %v89 = vld [vmem:[#allocation7 + $0xd8] sm:$0xff]
    %v90 = vld [vmem:[#allocation7 + $0xe0] sm:$0xff]
    %v91 = vld [vmem:[#allocation7 + $0xe8] sm:$0xff]
    %v92 = vld [vmem:[#allocation7 + $0xf0] sm:$0xff]
    %v93 = vld [vmem:[#allocation7 + $0xf8] sm:$0xff]
    %v94 = vld [vmem:[#allocation7 + $0x100] sm:$0xff]
    %v95 = vld [vmem:[#allocation7 + $0x108] sm:$0xff]
    %v96 = vld [vmem:[#allocation7 + $0x110] sm:$0xff]
    %v97 = vld [vmem:[#allocation7 + $0x118] sm:$0xff]
    %v98 = vld [vmem:[#allocation7 + $0x120] sm:$0xff]
    %v99 = vld [vmem:[#allocation7 + $0x128] sm:$0xff]
    %v100 = vld [vmem:[#allocation7 + $0x130] sm:$0xff]
    %v101 = vld [vmem:[#allocation7 + $0x138] sm:$0xff]
    %v102 = vld [vmem:[#allocation7 + $0x140] sm:$0xff]
    %v103 = vld [vmem:[#allocation7 + $0x148] sm:$0xff]
    %v104 = vld [vmem:[#allocation7 + $0x150] sm:$0xff]
    %v105 = vld [vmem:[#allocation7 + $0x158] sm:$0xff]
    %v106 = vld [vmem:[#allocation7 + $0x160] sm:$0xff]
    %v107 = vld [vmem:[#allocation7 + $0x168] sm:$0xff]
    %v108 = vld [vmem:[#allocation7 + $0x170] sm:$0xff]
    %v109 = vld [vmem:[#allocation7 + $0x178] sm:$0xff]
    %v110 = vld [vmem:[#allocation7 + $0x180] sm:$0xff]
    %v111 = vld [vmem:[#allocation7 + $0x188] sm:$0xff]
    %v112 = vld [vmem:[#allocation7 + $0x190] sm:$0xff]
    %v113 = vld [vmem:[#allocation7 + $0x198] sm:$0xff]
    %v114 = vld [vmem:[#allocation7 + $0x1a0] sm:$0xff]
    %v115 = vld [vmem:[#allocation7 + $0x1a8] sm:$0xff]
    %v116 = vld [vmem:[#allocation7 + $0x1b0] sm:$0xff]
    %v117 = vld [vmem:[#allocation7 + $0x1b8] sm:$0xff]
    %v118 = vld [vmem:[#allocation7 + $0x1c0] sm:$0xff]
    %v119 = vld [vmem:[#allocation7 + $0x1c8] sm:$0xff]
    %v120 = vld [vmem:[#allocation7 + $0x1d0] sm:$0xff]
    %v121 = vld [vmem:[#allocation7 + $0x1d8] sm:$0xff]
    %v122 = vld [vmem:[#allocation7 + $0x1e0] sm:$0xff]
    %v123 = vld [vmem:[#allocation7 + $0x1e8] sm:$0xff]
    %v124 = vld [vmem:[#allocation7 + $0x1f0] sm:$0xff]
    %v125 = vld [vmem:[#allocation7 + $0x1f8] sm:$0xff]
    %v126 = vld [vmem:[#allocation7 + $0x200] sm:$0xff]
    %v127 = vld [vmem:[#allocation7 + $0x208] sm:$0xff]
    %v128 = vld [vmem:[#allocation7 + $0x210] sm:$0xff]
    %v129 = vld [vmem:[#allocation7 + $0x218] sm:$0xff]
    %v130 = vld [vmem:[#allocation7 + $0x220] sm:$0xff]
    %v131 = vld [vmem:[#allocation7 + $0x228] sm:$0xff]
    %v132 = vld [vmem:[#allocation7 + $0x230] sm:$0xff]
    %v133 = vld [vmem:[#allocation7 + $0x238] sm:$0xff]
    %v134 = vld [vmem:[#allocation7 + $0x240] sm:$0xff]
    %v135 = vld [vmem:[#allocation7 + $0x248] sm:$0xff]
    %v136 = vld [vmem:[#allocation7 + $0x250] sm:$0xff]
    %v137 = vld [vmem:[#allocation7 + $0x258] sm:$0xff]
    %v138 = vld [vmem:[#allocation7 + $0x260] sm:$0xff]
    %v139 = vld [vmem:[#allocation7 + $0x268] sm:$0xff]
    %v140 = vld [vmem:[#allocation7 + $0x270] sm:$0xff]
    %v141 = vld [vmem:[#allocation7 + $0x278] sm:$0xff]
    %v142 = vld [vmem:[#allocation7 + $0x280] sm:$0xff]
    %v143 = vld [vmem:[#allocation7 + $0x288] sm:$0xff]
    %v144 = vld [vmem:[#allocation7 + $0x290] sm:$0xff]
    %v145 = vld [vmem:[#allocation7 + $0x298] sm:$0xff]
    %v146 = vld [vmem:[#allocation7 + $0x2a0] sm:$0xff]
    %v147 = vld [vmem:[#allocation7 + $0x2a8] sm:$0xff]
    %v148 = vld [vmem:[#allocation7 + $0x2b0] sm:$0xff]
    %v149 = vld [vmem:[#allocation7 + $0x2b8] sm:$0xff]
    %v150 = vld [vmem:[#allocation7 + $0x2c0] sm:$0xff]
    %v151 = vld [vmem:[#allocation7 + $0x2c8] sm:$0xff]
    %v152 = vld [vmem:[#allocation7 + $0x2d0] sm:$0xff]
    %v153 = vld [vmem:[#allocation7 + $0x2d8] sm:$0xff]
    %v154 = vld [vmem:[#allocation7 + $0x2e0] sm:$0xff]
    %v155 = vld [vmem:[#allocation7 + $0x2e8] sm:$0xff]
    %v156 = vld [vmem:[#allocation7 + $0x2f0] sm:$0xff]
    %v157 = vld [vmem:[#allocation7 + $0x2f8] sm:$0xff]
    %v158 = vld [vmem:[#allocation7 + $0x300] sm:$0xff]
    %v159 = vld [vmem:[#allocation7 + $0x308] sm:$0xff]
    %v160 = vld [vmem:[#allocation7 + $0x310] sm:$0xff]
    %v161 = vld [vmem:[#allocation7 + $0x318] sm:$0xff]
    %v162 = vld [vmem:[#allocation7 + $0x320] sm:$0xff]
    %v163 = vld [vmem:[#allocation7 + $0x328] sm:$0xff]
    %v164 = vld [vmem:[#allocation7 + $0x330] sm:$0xff]
    %v165 = vld [vmem:[#allocation7 + $0x338] sm:$0xff]
    %v166 = vld [vmem:[#allocation7 + $0x340] sm:$0xff]
    %v167 = vld [vmem:[#allocation7 + $0x348] sm:$0xff]
    %v168 = vld [vmem:[#allocation7 + $0x350] sm:$0xff]
    %v169 = vld [vmem:[#allocation7 + $0x358] sm:$0xff]
    %v170 = vld [vmem:[#allocation7 + $0x360] sm:$0xff]
    %v171 = vld [vmem:[#allocation7 + $0x368] sm:$0xff]
    %v172 = vld [vmem:[#allocation7 + $0x370] sm:$0xff]
    %v173 = vld [vmem:[#allocation7 + $0x378] sm:$0xff]
    %v174 = vld [vmem:[#allocation7 + $0x380] sm:$0xf]
    %v175 = vld [vmem:[#allocation7 + $0x388] sm:$0xf]
    %v176 = vld [vmem:[#allocation7 + $0x390] sm:$0xf]
    %v177 = vld [vmem:[#allocation7 + $0x398] sm:$0xf]
    %s178 = scalar_lea.vmem [#allocation7], 928
    %v179 = vld [vmem:[%s178] ss:$8 sm:$0xf]
    %v180 = vld [vmem:[#allocation2] sm:$0xff]
    %v181 = vld [vmem:[#allocation2 + $0x8] sm:$0xff]
    %v182 = vld [vmem:[#allocation5] sm:$0xff]
    %v183 = vld [vmem:[#allocation5 + $0x8] sm:$0xff]
    %v185 = vperm.slane %v179, 0
    %v186 = vperm.slane %v179, 1
    %v187 = vperm.slane %v179, 2
    %v188 = vperm.slane %v179, 3
    %vm193 = vcmask 818176
    %v195 = vsel %vm193, %v180, 0
    %v198 = vsel %vm193, %v181, 0
    %v201 = vsel %vm193, %v182, 0
    %v204 = vsel %vm193, %v183, 0
    %vm206 = vcmask 1043456
    %v208 = vsel %vm206, %v174, 0
    %v211 = vsel %vm206, %v175, 0
    %v214 = vsel %vm206, %v176, 0
    %v217 = vsel %vm206, %v177, 0
    %219 = vmatpush.msra.mxu0 0.0
    %220 = vmatpush.msra.mxu0 0.0
    %221 = vmatpush.msra.mxu0 0.0
    %222 = vmatpush.msra.mxu0 %v208
    %223 = vmatpush.msra.mxu0 %v170
    %224 = vmatpush.msra.mxu0 %v166
    %225 = vmatpush.msra.mxu0 %v162
    %226 = vmatpush.msra.mxu0 %v158
    %227 = vmatpush.msra.mxu0 %v154
    %228 = vmatpush.msra.mxu0 %v150
    %229 = vmatpush.msra.mxu0 %v146
    %230 = vmatpush.msra.mxu0 %v142
    %231 = vmatpush.msra.mxu0 %v138
    %232 = vmatpush.msra.mxu0 %v134
    %233 = vmatpush.msra.mxu0 %v130
    %234 = vmatpush.msra.mxu0 %v126
    %235 = vmatmul.f32.gmra.mxu0 %v195
    %v236 = vpop.f32.mrf.mxu0
    %v237 = vadd.f32 %v185, %v236
    %238 = vmatmul.f32.gmra.mxu0 %v198
    %v239 = vpop.f32.mrf.mxu0
    %v240 = vadd.f32 %v185, %v239
    %241 = vmatmul.f32.gmra.mxu0 %v201
    %v242 = vpop.f32.mrf.mxu0
    %v243 = vadd.f32 %v185, %v242
    %244 = vmatmul.f32.gmra.mxu0 %v204
    %v245 = vpop.f32.mrf.mxu0
    %v246 = vadd.f32 %v185, %v245
    %247 = vdwg.mxu0
    %248 = vmatpush.msra.mxu0 0.0
    %249 = vmatpush.msra.mxu0 0.0
    %250 = vmatpush.msra.mxu0 0.0
    %251 = vmatpush.msra.mxu0 %v211
    %252 = vmatpush.msra.mxu0 %v171
    %253 = vmatpush.msra.mxu0 %v167
    %254 = vmatpush.msra.mxu0 %v163
    %255 = vmatpush.msra.mxu0 %v159
    %256 = vmatpush.msra.mxu0 %v155
    %257 = vmatpush.msra.mxu0 %v151
    %258 = vmatpush.msra.mxu0 %v147
    %259 = vmatpush.msra.mxu0 %v143
    %260 = vmatpush.msra.mxu0 %v139
    %261 = vmatpush.msra.mxu0 %v135
    %262 = vmatpush.msra.mxu0 %v131
    %263 = vmatpush.msra.mxu0 %v127
    %264 = vmatmul.f32.gmra.mxu0 %v195
    %v265 = vpop.f32.mrf.mxu0
    %v266 = vadd.f32 %v186, %v265
    %267 = vmatmul.f32.gmra.mxu0 %v198
    %v268 = vpop.f32.mrf.mxu0
    %v269 = vadd.f32 %v186, %v268
    %270 = vmatmul.f32.gmra.mxu0 %v201
    %v271 = vpop.f32.mrf.mxu0
    %v272 = vadd.f32 %v186, %v271
    %273 = vmatmul.f32.gmra.mxu0 %v204
    %v274 = vpop.f32.mrf.mxu0
    %v275 = vadd.f32 %v186, %v274
    %276 = vdwg.mxu0
    %277 = vmatpush.msra.mxu0 0.0
    %278 = vmatpush.msra.mxu0 0.0
    %279 = vmatpush.msra.mxu0 0.0
    %280 = vmatpush.msra.mxu0 %v214
    %281 = vmatpush.msra.mxu0 %v172
    %282 = vmatpush.msra.mxu0 %v168
    %283 = vmatpush.msra.mxu0 %v164
    %284 = vmatpush.msra.mxu0 %v160
    %285 = vmatpush.msra.mxu0 %v156
    %286 = vmatpush.msra.mxu0 %v152
    %287 = vmatpush.msra.mxu0 %v148
    %288 = vmatpush.msra.mxu0 %v144
    %289 = vmatpush.msra.mxu0 %v140
    %290 = vmatpush.msra.mxu0 %v136
    %291 = vmatpush.msra.mxu0 %v132
    %292 = vmatpush.msra.mxu0 %v128
    %293 = vmatmul.f32.gmra.mxu0 %v195
    %v294 = vpop.f32.mrf.mxu0
    %v295 = vadd.f32 %v187, %v294
    %296 = vmatmul.f32.gmra.mxu0 %v198
    %v297 = vpop.f32.mrf.mxu0
    %v298 = vadd.f32 %v187, %v297
    %299 = vmatmul.f32.gmra.mxu0 %v201
    %v300 = vpop.f32.mrf.mxu0
    %v301 = vadd.f32 %v187, %v300
    %302 = vmatmul.f32.gmra.mxu0 %v204
    %v303 = vpop.f32.mrf.mxu0
    %v304 = vadd.f32 %v187, %v303
    %305 = vdwg.mxu0
    %306 = vmatpush.msra.mxu0 0.0
    %307 = vmatpush.msra.mxu0 0.0
    %308 = vmatpush.msra.mxu0 0.0
    %309 = vmatpush.msra.mxu0 %v217
    %310 = vmatpush.msra.mxu0 %v173
    %311 = vmatpush.msra.mxu0 %v169
    %312 = vmatpush.msra.mxu0 %v165
    %313 = vmatpush.msra.mxu0 %v161
    %314 = vmatpush.msra.mxu0 %v157
    %315 = vmatpush.msra.mxu0 %v153
    %316 = vmatpush.msra.mxu0 %v149
    %317 = vmatpush.msra.mxu0 %v145
    %318 = vmatpush.msra.mxu0 %v141
    %319 = vmatpush.msra.mxu0 %v137
    %320 = vmatpush.msra.mxu0 %v133
    %321 = vmatpush.msra.mxu0 %v129
    %322 = vmatmul.f32.gmra.mxu0 %v195
    %v323 = vpop.f32.mrf.mxu0
    %v324 = vadd.f32 %v188, %v323
    %325 = vmatmul.f32.gmra.mxu0 %v198
    %v326 = vpop.f32.mrf.mxu0
    %v327 = vadd.f32 %v188, %v326
    %328 = vmatmul.f32.gmra.mxu0 %v201
    %v329 = vpop.f32.mrf.mxu0
    %v330 = vadd.f32 %v188, %v329
    %331 = vmatmul.f32.gmra.mxu0 %v204
    %v332 = vpop.f32.mrf.mxu0
    %v333 = vadd.f32 %v188, %v332
    %334 = vdwg.mxu0
    %335 = vmatpush.msra.mxu0 %v122
    %336 = vmatpush.msra.mxu0 %v118
    %337 = vmatpush.msra.mxu0 %v114
    %338 = vmatpush.msra.mxu0 %v110
    %339 = vmatpush.msra.mxu0 %v106
    %340 = vmatpush.msra.mxu0 %v102
    %341 = vmatpush.msra.mxu0 %v98
    %342 = vmatpush.msra.mxu0 %v94
    %343 = vmatpush.msra.mxu0 %v90
    %344 = vmatpush.msra.mxu0 %v86
    %345 = vmatpush.msra.mxu0 %v82
    %346 = vmatpush.msra.mxu0 %v78
    %347 = vmatpush.msra.mxu0 %v74
    %348 = vmatpush.msra.mxu0 %v70
    %349 = vmatpush.msra.mxu0 %v66
    %350 = vmatpush.msra.mxu0 %v62
    %351 = vmatmul.f32.gmra.mxu0 0.0
    %v352 = vpop.f32.mrf.mxu0
    %v353 = vadd.f32 0.0, %v352
    %354 = vdwg.mxu0
    %355 = vmatpush.msra.mxu0 %v123
    %356 = vmatpush.msra.mxu0 %v119
    %357 = vmatpush.msra.mxu0 %v115
    %358 = vmatpush.msra.mxu0 %v111
    %359 = vmatpush.msra.mxu0 %v107
    %360 = vmatpush.msra.mxu0 %v103
    %361 = vmatpush.msra.mxu0 %v99
    %362 = vmatpush.msra.mxu0 %v95
    %363 = vmatpush.msra.mxu0 %v91
    %364 = vmatpush.msra.mxu0 %v87
    %365 = vmatpush.msra.mxu0 %v83
    %366 = vmatpush.msra.mxu0 %v79
    %367 = vmatpush.msra.mxu0 %v75
    %368 = vmatpush.msra.mxu0 %v71
    %369 = vmatpush.msra.mxu0 %v67
    %370 = vmatpush.msra.mxu0 %v63
    %371 = vmatmul.f32.gmra.mxu0 0.0
    %v372 = vpop.f32.mrf.mxu0
    %v373 = vadd.f32 0.0, %v372
    %374 = vdwg.mxu0
    %375 = vmatpush.msra.mxu0 %v124
    %376 = vmatpush.msra.mxu0 %v120
    %377 = vmatpush.msra.mxu0 %v116
    %378 = vmatpush.msra.mxu0 %v112
    %379 = vmatpush.msra.mxu0 %v108
    %380 = vmatpush.msra.mxu0 %v104
    %381 = vmatpush.msra.mxu0 %v100
    %382 = vmatpush.msra.mxu0 %v96
    %383 = vmatpush.msra.mxu0 %v92
    %384 = vmatpush.msra.mxu0 %v88
    %385 = vmatpush.msra.mxu0 %v84
    %386 = vmatpush.msra.mxu0 %v80
    %387 = vmatpush.msra.mxu0 %v76
    %388 = vmatpush.msra.mxu0 %v72
    %389 = vmatpush.msra.mxu0 %v68
    %390 = vmatpush.msra.mxu0 %v64
    %391 = vmatmul.f32.gmra.mxu0 0.0
    %v392 = vpop.f32.mrf.mxu0
    %v393 = vadd.f32 0.0, %v392
    %394 = vdwg.mxu0
    %395 = vmatpush.msra.mxu0 %v125
    %396 = vmatpush.msra.mxu0 %v121
    %397 = vmatpush.msra.mxu0 %v117
    %398 = vmatpush.msra.mxu0 %v113
    %399 = vmatpush.msra.mxu0 %v109
    %400 = vmatpush.msra.mxu0 %v105
    %401 = vmatpush.msra.mxu0 %v101
    %402 = vmatpush.msra.mxu0 %v97
    %403 = vmatpush.msra.mxu0 %v93
    %404 = vmatpush.msra.mxu0 %v89
    %405 = vmatpush.msra.mxu0 %v85
    %406 = vmatpush.msra.mxu0 %v81
    %407 = vmatpush.msra.mxu0 %v77
    %408 = vmatpush.msra.mxu0 %v73
    %409 = vmatpush.msra.mxu0 %v69
    %410 = vmatpush.msra.mxu0 %v65
    %411 = vmatmul.f32.gmra.mxu0 0.0
    %v412 = vpop.f32.mrf.mxu0
    %v413 = vadd.f32 0.0, %v412
    %414 = vdwg.mxu0
    %v419 = vrot.slane %v353, 1
    %v420 = vrot.slane %v373, 1
    %v421 = vrot.slane %v393, 1
    %v422 = vrot.slane %v413, 1
    %v423 = vrot.slane %v353, 2
    %v424 = vrot.slane %v373, 2
    %v425 = vrot.slane %v393, 2
    %v426 = vrot.slane %v413, 2
    %v427 = vrot.slane %v353, 3
    %v428 = vrot.slane %v373, 3
    %v429 = vrot.slane %v393, 3
    %v430 = vrot.slane %v413, 3
    %v447 = vadd.f32 %v237, %v353
    %v448 = vadd.f32 %v266, %v373
    %v449 = vadd.f32 %v295, %v393
    %v450 = vadd.f32 %v324, %v413
    %v451 = vadd.f32 %v240, %v419
    %v452 = vadd.f32 %v269, %v420
    %v453 = vadd.f32 %v298, %v421
    %v454 = vadd.f32 %v327, %v422
    %v455 = vadd.f32 %v243, %v423
    %v456 = vadd.f32 %v272, %v424
    %v457 = vadd.f32 %v301, %v425
    %v458 = vadd.f32 %v330, %v426
    %v459 = vadd.f32 %v246, %v427
    %v460 = vadd.f32 %v275, %v428
    %v461 = vadd.f32 %v304, %v429
    %v462 = vadd.f32 %v333, %v430
    %v463 = vxor.u32 %v447, 2147483648
    %v464 = vxor.u32 %v448, 2147483648
    %v465 = vxor.u32 %v449, 2147483648
    %v466 = vxor.u32 %v451, 2147483648
    %v467 = vxor.u32 %v452, 2147483648
    %v468 = vxor.u32 %v453, 2147483648
    %v469 = vxor.u32 %v455, 2147483648
    %v470 = vxor.u32 %v456, 2147483648
    %v471 = vxor.u32 %v457, 2147483648
    %v472 = vxor.u32 %v459, 2147483648
    %v473 = vxor.u32 %v460, 2147483648
    %v474 = vxor.u32 %v461, 2147483648
    %v475 = vmul.f32 %v463, 1.442695
    %v476 = vpow.pop %v475
    %v477 = vmul.f32 %v464, 1.442695
    %v478 = vpow.pop %v477
    %v479 = vmul.f32 %v465, 1.442695
    %v480 = vpow.pop %v479
    %v481 = vmul.f32 %v466, 1.442695
    %v482 = vpow.pop %v481
    %v483 = vmul.f32 %v467, 1.442695
    %v484 = vpow.pop %v483
    %v485 = vmul.f32 %v468, 1.442695
    %v486 = vpow.pop %v485
    %v487 = vmul.f32 %v469, 1.442695
    %v488 = vpow.pop %v487
    %v489 = vmul.f32 %v470, 1.442695
    %v490 = vpow.pop %v489
    %v491 = vmul.f32 %v471, 1.442695
    %v492 = vpow.pop %v491
    %v493 = vmul.f32 %v472, 1.442695
    %v494 = vpow.pop %v493
    %v495 = vmul.f32 %v473, 1.442695
    %v496 = vpow.pop %v495
    %v497 = vmul.f32 %v474, 1.442695
    %v498 = vpow.pop %v497
    %v499 = vadd.f32 %v476, 1.0
    %v500 = vadd.f32 %v478, 1.0
    %v501 = vadd.f32 %v480, 1.0
    %v502 = vadd.f32 %v482, 1.0
    %v503 = vadd.f32 %v484, 1.0
    %v504 = vadd.f32 %v486, 1.0
    %v505 = vadd.f32 %v488, 1.0
    %v506 = vadd.f32 %v490, 1.0
    %v507 = vadd.f32 %v492, 1.0
    %v508 = vadd.f32 %v494, 1.0
    %v509 = vadd.f32 %v496, 1.0
    %v510 = vadd.f32 %v498, 1.0
    %v511 = vrcp.pop %v499
    %v512 = vmul.f32 %v499, %v511
    %v513 = vsub.f32 1.0, %v512
    %v514 = vmul.f32 %v511, %v513
    %v515 = vadd.f32 %v511, %v514
    %vm516 = vweird.f32 %v499
    %vm517 = vweird.f32 %v511
    %vm518 = vmor %vm516, %vm517
    %v519 = vsel %vm518, %v511, %v515
    %v520 = vand.u32 2147483647, %v499
    %vm521 = vcmp.eq.f32.partialorder %v520, 8.507059e+37
    %v522 = vand.u32 %v499, 2147483648
    %v523 = vor.u32 1.1754944e-38, %v522
    %v524 = vsel %vm521, %v523, %v519
    %v525 = vmul.f32 1.0, %v524
    %v526 = vrcp.pop %v500
    %v527 = vmul.f32 %v500, %v526
    %v528 = vsub.f32 1.0, %v527
    %v529 = vmul.f32 %v526, %v528
    %v530 = vadd.f32 %v526, %v529
    %vm531 = vweird.f32 %v500
    %vm532 = vweird.f32 %v526
    %vm533 = vmor %vm531, %vm532
    %v534 = vsel %vm533, %v526, %v530
    %v535 = vand.u32 2147483647, %v500
    %vm536 = vcmp.eq.f32.partialorder %v535, 8.507059e+37
    %v537 = vand.u32 %v500, 2147483648
    %v538 = vor.u32 1.1754944e-38, %v537
    %v539 = vsel %vm536, %v538, %v534
    %v540 = vmul.f32 1.0, %v539
    %v541 = vrcp.pop %v501
    %v542 = vmul.f32 %v501, %v541
    %v543 = vsub.f32 1.0, %v542
    %v544 = vmul.f32 %v541, %v543
    %v545 = vadd.f32 %v541, %v544
    %vm546 = vweird.f32 %v501
    %vm547 = vweird.f32 %v541
    %vm548 = vmor %vm546, %vm547
    %v549 = vsel %vm548, %v541, %v545
    %v550 = vand.u32 2147483647, %v501
    %vm551 = vcmp.eq.f32.partialorder %v550, 8.507059e+37
    %v552 = vand.u32 %v501, 2147483648
    %v553 = vor.u32 1.1754944e-38, %v552
    %v554 = vsel %vm551, %v553, %v549
    %v555 = vmul.f32 1.0, %v554
    %v556 = vrcp.pop %v502
    %v557 = vmul.f32 %v502, %v556
    %v558 = vsub.f32 1.0, %v557
    %v559 = vmul.f32 %v556, %v558
    %v560 = vadd.f32 %v556, %v559
    %vm561 = vweird.f32 %v502
    %vm562 = vweird.f32 %v556
    %vm563 = vmor %vm561, %vm562
    %v564 = vsel %vm563, %v556, %v560
    %v565 = vand.u32 2147483647, %v502
    %vm566 = vcmp.eq.f32.partialorder %v565, 8.507059e+37
    %v567 = vand.u32 %v502, 2147483648
    %v568 = vor.u32 1.1754944e-38, %v567
    %v569 = vsel %vm566, %v568, %v564
    %v570 = vmul.f32 1.0, %v569
    %v571 = vrcp.pop %v503
    %v572 = vmul.f32 %v503, %v571
    %v573 = vsub.f32 1.0, %v572
    %v574 = vmul.f32 %v571, %v573
    %v575 = vadd.f32 %v571, %v574
    %vm576 = vweird.f32 %v503
    %vm577 = vweird.f32 %v571
    %vm578 = vmor %vm576, %vm577
    %v579 = vsel %vm578, %v571, %v575
    %v580 = vand.u32 2147483647, %v503
    %vm581 = vcmp.eq.f32.partialorder %v580, 8.507059e+37
    %v582 = vand.u32 %v503, 2147483648
    %v583 = vor.u32 1.1754944e-38, %v582
    %v584 = vsel %vm581, %v583, %v579
    %v585 = vmul.f32 1.0, %v584
    %v586 = vrcp.pop %v504
    %v587 = vmul.f32 %v504, %v586
    %v588 = vsub.f32 1.0, %v587
    %v589 = vmul.f32 %v586, %v588
    %v590 = vadd.f32 %v586, %v589
    %vm591 = vweird.f32 %v504
    %vm592 = vweird.f32 %v586
    %vm593 = vmor %vm591, %vm592
    %v594 = vsel %vm593, %v586, %v590
    %v595 = vand.u32 2147483647, %v504
    %vm596 = vcmp.eq.f32.partialorder %v595, 8.507059e+37
    %v597 = vand.u32 %v504, 2147483648
    %v598 = vor.u32 1.1754944e-38, %v597
    %v599 = vsel %vm596, %v598, %v594
    %v600 = vmul.f32 1.0, %v599
    %v601 = vrcp.pop %v505
    %v602 = vmul.f32 %v505, %v601
    %v603 = vsub.f32 1.0, %v602
    %v604 = vmul.f32 %v601, %v603
    %v605 = vadd.f32 %v601, %v604
    %vm606 = vweird.f32 %v505
    %vm607 = vweird.f32 %v601
    %vm608 = vmor %vm606, %vm607
    %v609 = vsel %vm608, %v601, %v605
    %v610 = vand.u32 2147483647, %v505
    %vm611 = vcmp.eq.f32.partialorder %v610, 8.507059e+37
    %v612 = vand.u32 %v505, 2147483648
    %v613 = vor.u32 1.1754944e-38, %v612
    %v614 = vsel %vm611, %v613, %v609
    %v615 = vmul.f32 1.0, %v614
    %v616 = vrcp.pop %v506
    %v617 = vmul.f32 %v506, %v616
    %v618 = vsub.f32 1.0, %v617
    %v619 = vmul.f32 %v616, %v618
    %v620 = vadd.f32 %v616, %v619
    %vm621 = vweird.f32 %v506
    %vm622 = vweird.f32 %v616
    %vm623 = vmor %vm621, %vm622
    %v624 = vsel %vm623, %v616, %v620
    %v625 = vand.u32 2147483647, %v506
    %vm626 = vcmp.eq.f32.partialorder %v625, 8.507059e+37
    %v627 = vand.u32 %v506, 2147483648
    %v628 = vor.u32 1.1754944e-38, %v627
    %v629 = vsel %vm626, %v628, %v624
    %v630 = vmul.f32 1.0, %v629
    %v631 = vrcp.pop %v507
    %v632 = vmul.f32 %v507, %v631
    %v633 = vsub.f32 1.0, %v632
    %v634 = vmul.f32 %v631, %v633
    %v635 = vadd.f32 %v631, %v634
    %vm636 = vweird.f32 %v507
    %vm637 = vweird.f32 %v631
    %vm638 = vmor %vm636, %vm637
    %v639 = vsel %vm638, %v631, %v635
    %v640 = vand.u32 2147483647, %v507
    %vm641 = vcmp.eq.f32.partialorder %v640, 8.507059e+37
    %v642 = vand.u32 %v507, 2147483648
    %v643 = vor.u32 1.1754944e-38, %v642
    %v644 = vsel %vm641, %v643, %v639
    %v645 = vmul.f32 1.0, %v644
    %v646 = vrcp.pop %v508
    %v647 = vmul.f32 %v508, %v646
    %v648 = vsub.f32 1.0, %v647
    %v649 = vmul.f32 %v646, %v648
    %v650 = vadd.f32 %v646, %v649
    %vm651 = vweird.f32 %v508
    %vm652 = vweird.f32 %v646
    %vm653 = vmor %vm651, %vm652
    %v654 = vsel %vm653, %v646, %v650
    %v655 = vand.u32 2147483647, %v508
    %vm656 = vcmp.eq.f32.partialorder %v655, 8.507059e+37
    %v657 = vand.u32 %v508, 2147483648
    %v658 = vor.u32 1.1754944e-38, %v657
    %v659 = vsel %vm656, %v658, %v654
    %v660 = vmul.f32 1.0, %v659
    %v661 = vrcp.pop %v509
    %v662 = vmul.f32 %v509, %v661
    %v663 = vsub.f32 1.0, %v662
    %v664 = vmul.f32 %v661, %v663
    %v665 = vadd.f32 %v661, %v664
    %vm666 = vweird.f32 %v509
    %vm667 = vweird.f32 %v661
    %vm668 = vmor %vm666, %vm667
    %v669 = vsel %vm668, %v661, %v665
    %v670 = vand.u32 2147483647, %v509
    %vm671 = vcmp.eq.f32.partialorder %v670, 8.507059e+37
    %v672 = vand.u32 %v509, 2147483648
    %v673 = vor.u32 1.1754944e-38, %v672
    %v674 = vsel %vm671, %v673, %v669
    %v675 = vmul.f32 1.0, %v674
    %v676 = vrcp.pop %v510
    %v677 = vmul.f32 %v510, %v676
    %v678 = vsub.f32 1.0, %v677
    %v679 = vmul.f32 %v676, %v678
    %v680 = vadd.f32 %v676, %v679
    %vm681 = vweird.f32 %v510
    %vm682 = vweird.f32 %v676
    %vm683 = vmor %vm681, %vm682
    %v684 = vsel %vm683, %v676, %v680
    %v685 = vand.u32 2147483647, %v510
    %vm686 = vcmp.eq.f32.partialorder %v685, 8.507059e+37
    %v687 = vand.u32 %v510, 2147483648
    %v688 = vor.u32 1.1754944e-38, %v687
    %v689 = vsel %vm686, %v688, %v684
    %v690 = vmul.f32 1.0, %v689
    %v691 = vtanh.pop %v450
    %v692 = vtanh.pop %v454
    %v693 = vtanh.pop %v458
    %v694 = vtanh.pop %v462
    %v695 = vmul.f32 %v540, 0.0
    %v696 = vmul.f32 %v585, 0.0
    %v697 = vmul.f32 %v630, 0.0
    %v698 = vmul.f32 %v675, 0.0
    %v699 = vmul.f32 %v525, %v691
    %v700 = vmul.f32 %v570, %v692
    %v701 = vmul.f32 %v615, %v693
    %v702 = vmul.f32 %v660, %v694
    %v703 = vadd.f32 %v695, %v699
    %v704 = vadd.f32 %v696, %v700
    %v705 = vadd.f32 %v697, %v701
    %v706 = vadd.f32 %v698, %v702
    %v707 = vtanh.pop %v703
    %v708 = vtanh.pop %v704
    %v709 = vtanh.pop %v705
    %v710 = vtanh.pop %v706
    %v711 = vmul.f32 %v555, %v707
    %v712 = vmul.f32 %v600, %v708
    %v713 = vmul.f32 %v645, %v709
    %v714 = vmul.f32 %v690, %v710
    %v719 = vrot.slane %v712, 7
    %vm720 = vcmask 1041409
    %v721 = vsel %vm720, %v719, %v711
    %v722 = vrot.slane %v713, 6
    %vm723 = vcmask 1042434
    %v724 = vsel %vm723, %v722, %v721
    %v725 = vrot.slane %v714, 5
    %vm726 = vcmask 1043459
    %v727 = vsel %vm726, %v725, %v724
    %729 = vmatpush.msra.mxu0 %v122
    %730 = vmatpush.msra.mxu0 %v118
    %731 = vmatpush.msra.mxu0 %v114
    %732 = vmatpush.msra.mxu0 %v110
    %733 = vmatpush.msra.mxu0 %v106
    %734 = vmatpush.msra.mxu0 %v102
    %735 = vmatpush.msra.mxu0 %v98
    %736 = vmatpush.msra.mxu0 %v94
    %737 = vmatpush.msra.mxu0 %v90
    %738 = vmatpush.msra.mxu0 %v86
    %739 = vmatpush.msra.mxu0 %v82
    %740 = vmatpush.msra.mxu0 %v78
    %741 = vmatpush.msra.mxu0 %v74
    %742 = vmatpush.msra.mxu0 %v70
    %743 = vmatpush.msra.mxu0 %v66
    %744 = vmatpush.msra.mxu0 %v62
    %745 = vmatmul.f32.gmra.mxu0 %v727
    %v746 = vpop.f32.mrf.mxu0
    %v747 = vadd.f32 0.0, %v746
    %748 = vdwg.mxu0
    %749 = vmatpush.msra.mxu0 %v123
    %750 = vmatpush.msra.mxu0 %v119
    %751 = vmatpush.msra.mxu0 %v115
    %752 = vmatpush.msra.mxu0 %v111
    %753 = vmatpush.msra.mxu0 %v107
    %754 = vmatpush.msra.mxu0 %v103
    %755 = vmatpush.msra.mxu0 %v99
    %756 = vmatpush.msra.mxu0 %v95
    %757 = vmatpush.msra.mxu0 %v91
    %758 = vmatpush.msra.mxu0 %v87
    %759 = vmatpush.msra.mxu0 %v83
    %760 = vmatpush.msra.mxu0 %v79
    %761 = vmatpush.msra.mxu0 %v75
    %762 = vmatpush.msra.mxu0 %v71
    %763 = vmatpush.msra.mxu0 %v67
    %764 = vmatpush.msra.mxu0 %v63
    %765 = vmatmul.f32.gmra.mxu0 %v727
    %v766 = vpop.f32.mrf.mxu0
    %v767 = vadd.f32 0.0, %v766
    %768 = vdwg.mxu0
    %769 = vmatpush.msra.mxu0 %v124
    %770 = vmatpush.msra.mxu0 %v120
    %771 = vmatpush.msra.mxu0 %v116
    %772 = vmatpush.msra.mxu0 %v112
    %773 = vmatpush.msra.mxu0 %v108
    %774 = vmatpush.msra.mxu0 %v104
    %775 = vmatpush.msra.mxu0 %v100
    %776 = vmatpush.msra.mxu0 %v96
    %777 = vmatpush.msra.mxu0 %v92
    %778 = vmatpush.msra.mxu0 %v88
    %779 = vmatpush.msra.mxu0 %v84
    %780 = vmatpush.msra.mxu0 %v80
    %781 = vmatpush.msra.mxu0 %v76
    %782 = vmatpush.msra.mxu0 %v72
    %783 = vmatpush.msra.mxu0 %v68
    %784 = vmatpush.msra.mxu0 %v64
    %785 = vmatmul.f32.gmra.mxu0 %v727
    %v786 = vpop.f32.mrf.mxu0
    %v787 = vadd.f32 0.0, %v786
    %788 = vdwg.mxu0
    %789 = vmatpush.msra.mxu0 %v125
    %790 = vmatpush.msra.mxu0 %v121
    %791 = vmatpush.msra.mxu0 %v117
    %792 = vmatpush.msra.mxu0 %v113
    %793 = vmatpush.msra.mxu0 %v109
    %794 = vmatpush.msra.mxu0 %v105
    %795 = vmatpush.msra.mxu0 %v101
    %796 = vmatpush.msra.mxu0 %v97
    %797 = vmatpush.msra.mxu0 %v93
    %798 = vmatpush.msra.mxu0 %v89
    %799 = vmatpush.msra.mxu0 %v85
    %800 = vmatpush.msra.mxu0 %v81
    %801 = vmatpush.msra.mxu0 %v77
    %802 = vmatpush.msra.mxu0 %v73
    %803 = vmatpush.msra.mxu0 %v69
    %804 = vmatpush.msra.mxu0 %v65
    %805 = vmatmul.f32.gmra.mxu0 %v727
    %v806 = vpop.f32.mrf.mxu0
    %v807 = vadd.f32 0.0, %v806
    %808 = vdwg.mxu0
    %v813 = vrot.slane %v747, 7
    %v814 = vrot.slane %v767, 7
    %v815 = vrot.slane %v787, 7
    %v816 = vrot.slane %v807, 7
    %v817 = vrot.slane %v747, 1
    %v818 = vrot.slane %v767, 1
    %v819 = vrot.slane %v787, 1
    %v820 = vrot.slane %v807, 1
    %v821 = vrot.slane %v747, 2
    %v822 = vrot.slane %v767, 2
    %v823 = vrot.slane %v787, 2
    %v824 = vrot.slane %v807, 2
    %v841 = vadd.f32 %v237, %v813
    %v842 = vadd.f32 %v266, %v814
    %v843 = vadd.f32 %v295, %v815
    %v844 = vadd.f32 %v324, %v816
    %v845 = vadd.f32 %v240, %v747
    %v846 = vadd.f32 %v269, %v767
    %v847 = vadd.f32 %v298, %v787
    %v848 = vadd.f32 %v327, %v807
    %v849 = vadd.f32 %v243, %v817
    %v850 = vadd.f32 %v272, %v818
    %v851 = vadd.f32 %v301, %v819
    %v852 = vadd.f32 %v330, %v820
    %v853 = vadd.f32 %v246, %v821
    %v854 = vadd.f32 %v275, %v822
    %v855 = vadd.f32 %v304, %v823
    %v856 = vadd.f32 %v333, %v824
    %v857 = vxor.u32 %v841, 2147483648
    %v858 = vxor.u32 %v842, 2147483648
    %v859 = vxor.u32 %v843, 2147483648
    %v860 = vxor.u32 %v845, 2147483648
    %v861 = vxor.u32 %v846, 2147483648
    %v862 = vxor.u32 %v847, 2147483648
    %v863 = vxor.u32 %v849, 2147483648
    %v864 = vxor.u32 %v850, 2147483648
    %v865 = vxor.u32 %v851, 2147483648
    %v866 = vxor.u32 %v853, 2147483648
    %v867 = vxor.u32 %v854, 2147483648
    %v868 = vxor.u32 %v855, 2147483648
    %v869 = vmul.f32 %v857, 1.442695
    %v870 = vpow.pop %v869
    %v871 = vmul.f32 %v858, 1.442695
    %v872 = vpow.pop %v871
    %v873 = vmul.f32 %v859, 1.442695
    %v874 = vpow.pop %v873
    %v875 = vmul.f32 %v860, 1.442695
    %v876 = vpow.pop %v875
    %v877 = vmul.f32 %v861, 1.442695
    %v878 = vpow.pop %v877
    %v879 = vmul.f32 %v862, 1.442695
    %v880 = vpow.pop %v879
    %v881 = vmul.f32 %v863, 1.442695
    %v882 = vpow.pop %v881
    %v883 = vmul.f32 %v864, 1.442695
    %v884 = vpow.pop %v883
    %v885 = vmul.f32 %v865, 1.442695
    %v886 = vpow.pop %v885
    %v887 = vmul.f32 %v866, 1.442695
    %v888 = vpow.pop %v887
    %v889 = vmul.f32 %v867, 1.442695
    %v890 = vpow.pop %v889
    %v891 = vmul.f32 %v868, 1.442695
    %v892 = vpow.pop %v891
    %v893 = vadd.f32 %v870, 1.0
    %v894 = vadd.f32 %v872, 1.0
    %v895 = vadd.f32 %v874, 1.0
    %v896 = vadd.f32 %v876, 1.0
    %v897 = vadd.f32 %v878, 1.0
    %v898 = vadd.f32 %v880, 1.0
    %v899 = vadd.f32 %v882, 1.0
    %v900 = vadd.f32 %v884, 1.0
    %v901 = vadd.f32 %v886, 1.0
    %v902 = vadd.f32 %v888, 1.0
    %v903 = vadd.f32 %v890, 1.0
    %v904 = vadd.f32 %v892, 1.0
    %v905 = vrcp.pop %v893
    %v906 = vmul.f32 %v893, %v905
    %v907 = vsub.f32 1.0, %v906
    %v908 = vmul.f32 %v905, %v907
    %v909 = vadd.f32 %v905, %v908
    %vm910 = vweird.f32 %v893
    %vm911 = vweird.f32 %v905
    %vm912 = vmor %vm910, %vm911
    %v913 = vsel %vm912, %v905, %v909
    %v914 = vand.u32 2147483647, %v893
    %vm915 = vcmp.eq.f32.partialorder %v914, 8.507059e+37
    %v916 = vand.u32 %v893, 2147483648
    %v917 = vor.u32 1.1754944e-38, %v916
    %v918 = vsel %vm915, %v917, %v913
    %v919 = vmul.f32 1.0, %v918
    %v920 = vrcp.pop %v894
    %v921 = vmul.f32 %v894, %v920
    %v922 = vsub.f32 1.0, %v921
    %v923 = vmul.f32 %v920, %v922
    %v924 = vadd.f32 %v920, %v923
    %vm925 = vweird.f32 %v894
    %vm926 = vweird.f32 %v920
    %vm927 = vmor %vm925, %vm926
    %v928 = vsel %vm927, %v920, %v924
    %v929 = vand.u32 2147483647, %v894
    %vm930 = vcmp.eq.f32.partialorder %v929, 8.507059e+37
    %v931 = vand.u32 %v894, 2147483648
    %v932 = vor.u32 1.1754944e-38, %v931
    %v933 = vsel %vm930, %v932, %v928
    %v934 = vmul.f32 1.0, %v933
    %v935 = vrcp.pop %v895
    %v936 = vmul.f32 %v895, %v935
    %v937 = vsub.f32 1.0, %v936
    %v938 = vmul.f32 %v935, %v937
    %v939 = vadd.f32 %v935, %v938
    %vm940 = vweird.f32 %v895
    %vm941 = vweird.f32 %v935
    %vm942 = vmor %vm940, %vm941
    %v943 = vsel %vm942, %v935, %v939
    %v944 = vand.u32 2147483647, %v895
    %vm945 = vcmp.eq.f32.partialorder %v944, 8.507059e+37
    %v946 = vand.u32 %v895, 2147483648
    %v947 = vor.u32 1.1754944e-38, %v946
    %v948 = vsel %vm945, %v947, %v943
    %v949 = vmul.f32 1.0, %v948
    %v950 = vrcp.pop %v896
    %v951 = vmul.f32 %v896, %v950
    %v952 = vsub.f32 1.0, %v951
    %v953 = vmul.f32 %v950, %v952
    %v954 = vadd.f32 %v950, %v953
    %vm955 = vweird.f32 %v896
    %vm956 = vweird.f32 %v950
    %vm957 = vmor %vm955, %vm956
    %v958 = vsel %vm957, %v950, %v954
    %v959 = vand.u32 2147483647, %v896
    %vm960 = vcmp.eq.f32.partialorder %v959, 8.507059e+37
    %v961 = vand.u32 %v896, 2147483648
    %v962 = vor.u32 1.1754944e-38, %v961
    %v963 = vsel %vm960, %v962, %v958
    %v964 = vmul.f32 1.0, %v963
    %v965 = vrcp.pop %v897
    %v966 = vmul.f32 %v897, %v965
    %v967 = vsub.f32 1.0, %v966
    %v968 = vmul.f32 %v965, %v967
    %v969 = vadd.f32 %v965, %v968
    %vm970 = vweird.f32 %v897
    %vm971 = vweird.f32 %v965
    %vm972 = vmor %vm970, %vm971
    %v973 = vsel %vm972, %v965, %v969
    %v974 = vand.u32 2147483647, %v897
    %vm975 = vcmp.eq.f32.partialorder %v974, 8.507059e+37
    %v976 = vand.u32 %v897, 2147483648
    %v977 = vor.u32 1.1754944e-38, %v976
    %v978 = vsel %vm975, %v977, %v973
    %v979 = vmul.f32 1.0, %v978
    %v980 = vrcp.pop %v898
    %v981 = vmul.f32 %v898, %v980
    %v982 = vsub.f32 1.0, %v981
    %v983 = vmul.f32 %v980, %v982
    %v984 = vadd.f32 %v980, %v983
    %vm985 = vweird.f32 %v898
    %vm986 = vweird.f32 %v980
    %vm987 = vmor %vm985, %vm986
    %v988 = vsel %vm987, %v980, %v984
    %v989 = vand.u32 2147483647, %v898
    %vm990 = vcmp.eq.f32.partialorder %v989, 8.507059e+37
    %v991 = vand.u32 %v898, 2147483648
    %v992 = vor.u32 1.1754944e-38, %v991
    %v993 = vsel %vm990, %v992, %v988
    %v994 = vmul.f32 1.0, %v993
    %v995 = vrcp.pop %v899
    %v996 = vmul.f32 %v899, %v995
    %v997 = vsub.f32 1.0, %v996
    %v998 = vmul.f32 %v995, %v997
    %v999 = vadd.f32 %v995, %v998
    %vm1000 = vweird.f32 %v899
    %vm1001 = vweird.f32 %v995
    %vm1002 = vmor %vm1000, %vm1001
    %v1003 = vsel %vm1002, %v995, %v999
    %v1004 = vand.u32 2147483647, %v899
    %vm1005 = vcmp.eq.f32.partialorder %v1004, 8.507059e+37
    %v1006 = vand.u32 %v899, 2147483648
    %v1007 = vor.u32 1.1754944e-38, %v1006
    %v1008 = vsel %vm1005, %v1007, %v1003
    %v1009 = vmul.f32 1.0, %v1008
    %v1010 = vrcp.pop %v900
    %v1011 = vmul.f32 %v900, %v1010
    %v1012 = vsub.f32 1.0, %v1011
    %v1013 = vmul.f32 %v1010, %v1012
    %v1014 = vadd.f32 %v1010, %v1013
    %vm1015 = vweird.f32 %v900
    %vm1016 = vweird.f32 %v1010
    %vm1017 = vmor %vm1015, %vm1016
    %v1018 = vsel %vm1017, %v1010, %v1014
    %v1019 = vand.u32 2147483647, %v900
    %vm1020 = vcmp.eq.f32.partialorder %v1019, 8.507059e+37
    %v1021 = vand.u32 %v900, 2147483648
    %v1022 = vor.u32 1.1754944e-38, %v1021
    %v1023 = vsel %vm1020, %v1022, %v1018
    %v1024 = vmul.f32 1.0, %v1023
    %v1025 = vrcp.pop %v901
    %v1026 = vmul.f32 %v901, %v1025
    %v1027 = vsub.f32 1.0, %v1026
    %v1028 = vmul.f32 %v1025, %v1027
    %v1029 = vadd.f32 %v1025, %v1028
    %vm1030 = vweird.f32 %v901
    %vm1031 = vweird.f32 %v1025
    %vm1032 = vmor %vm1030, %vm1031
    %v1033 = vsel %vm1032, %v1025, %v1029
    %v1034 = vand.u32 2147483647, %v901
    %vm1035 = vcmp.eq.f32.partialorder %v1034, 8.507059e+37
    %v1036 = vand.u32 %v901, 2147483648
    %v1037 = vor.u32 1.1754944e-38, %v1036
    %v1038 = vsel %vm1035, %v1037, %v1033
    %v1039 = vmul.f32 1.0, %v1038
    %v1040 = vrcp.pop %v902
    %v1041 = vmul.f32 %v902, %v1040
    %v1042 = vsub.f32 1.0, %v1041
    %v1043 = vmul.f32 %v1040, %v1042
    %v1044 = vadd.f32 %v1040, %v1043
    %vm1045 = vweird.f32 %v902
    %vm1046 = vweird.f32 %v1040
    %vm1047 = vmor %vm1045, %vm1046
    %v1048 = vsel %vm1047, %v1040, %v1044
    %v1049 = vand.u32 2147483647, %v902
    %vm1050 = vcmp.eq.f32.partialorder %v1049, 8.507059e+37
    %v1051 = vand.u32 %v902, 2147483648
    %v1052 = vor.u32 1.1754944e-38, %v1051
    %v1053 = vsel %vm1050, %v1052, %v1048
    %v1054 = vmul.f32 1.0, %v1053
    %v1055 = vrcp.pop %v903
    %v1056 = vmul.f32 %v903, %v1055
    %v1057 = vsub.f32 1.0, %v1056
    %v1058 = vmul.f32 %v1055, %v1057
    %v1059 = vadd.f32 %v1055, %v1058
    %vm1060 = vweird.f32 %v903
    %vm1061 = vweird.f32 %v1055
    %vm1062 = vmor %vm1060, %vm1061
    %v1063 = vsel %vm1062, %v1055, %v1059
    %v1064 = vand.u32 2147483647, %v903
    %vm1065 = vcmp.eq.f32.partialorder %v1064, 8.507059e+37
    %v1066 = vand.u32 %v903, 2147483648
    %v1067 = vor.u32 1.1754944e-38, %v1066
    %v1068 = vsel %vm1065, %v1067, %v1063
    %v1069 = vmul.f32 1.0, %v1068
    %v1070 = vrcp.pop %v904
    %v1071 = vmul.f32 %v904, %v1070
    %v1072 = vsub.f32 1.0, %v1071
    %v1073 = vmul.f32 %v1070, %v1072
    %v1074 = vadd.f32 %v1070, %v1073
    %vm1075 = vweird.f32 %v904
    %vm1076 = vweird.f32 %v1070
    %vm1077 = vmor %vm1075, %vm1076
    %v1078 = vsel %vm1077, %v1070, %v1074
    %v1079 = vand.u32 2147483647, %v904
    %vm1080 = vcmp.eq.f32.partialorder %v1079, 8.507059e+37
    %v1081 = vand.u32 %v904, 2147483648
    %v1082 = vor.u32 1.1754944e-38, %v1081
    %v1083 = vsel %vm1080, %v1082, %v1078
    %v1084 = vmul.f32 1.0, %v1083
    %v1085 = vtanh.pop %v844
    %v1086 = vtanh.pop %v848
    %v1087 = vtanh.pop %v852
    %v1088 = vtanh.pop %v856
    %v1093 = vrot.slane %v703, 7
    %v1094 = vrot.slane %v704, 7
    %v1095 = vrot.slane %v705, 7
    %v1096 = vrot.slane %v706, 7
    %v1101 = vmul.f32 %v934, %v1093
    %v1102 = vmul.f32 %v979, %v1094
    %v1103 = vmul.f32 %v1024, %v1095
    %v1104 = vmul.f32 %v1069, %v1096
    %v1105 = vmul.f32 %v919, %v1085
    %v1106 = vmul.f32 %v964, %v1086
    %v1107 = vmul.f32 %v1009, %v1087
    %v1108 = vmul.f32 %v1054, %v1088
    %v1109 = vadd.f32 %v1101, %v1105
    %v1110 = vadd.f32 %v1102, %v1106
    %v1111 = vadd.f32 %v1103, %v1107
    %v1112 = vadd.f32 %v1104, %v1108
    %v1113 = vtanh.pop %v1109
    %v1114 = vtanh.pop %v1110
    %v1115 = vtanh.pop %v1111
    %v1116 = vtanh.pop %v1112
    %v1117 = vmul.f32 %v949, %v1113
    %v1118 = vmul.f32 %v994, %v1114
    %v1119 = vmul.f32 %v1039, %v1115
    %v1120 = vmul.f32 %v1084, %v1116
    %v1125 = vrot.slane %v1117, 1
    %v1126 = vsel %vm720, %v1118, %v1125
    %v1127 = vrot.slane %v1119, 7
    %v1128 = vsel %vm723, %v1127, %v1126
    %v1129 = vrot.slane %v1120, 6
    %v1130 = vsel %vm726, %v1129, %v1128
    %1132 = vmatpush.msra.mxu0 %v122
    %1133 = vmatpush.msra.mxu0 %v118
    %1134 = vmatpush.msra.mxu0 %v114
    %1135 = vmatpush.msra.mxu0 %v110
    %1136 = vmatpush.msra.mxu0 %v106
    %1137 = vmatpush.msra.mxu0 %v102
    %1138 = vmatpush.msra.mxu0 %v98
    %1139 = vmatpush.msra.mxu0 %v94
    %1140 = vmatpush.msra.mxu0 %v90
    %1141 = vmatpush.msra.mxu0 %v86
    %1142 = vmatpush.msra.mxu0 %v82
    %1143 = vmatpush.msra.mxu0 %v78
    %1144 = vmatpush.msra.mxu0 %v74
    %1145 = vmatpush.msra.mxu0 %v70
    %1146 = vmatpush.msra.mxu0 %v66
    %1147 = vmatpush.msra.mxu0 %v62
    %1148 = vmatmul.f32.gmra.mxu0 %v1130
    %v1149 = vpop.f32.mrf.mxu0
    %v1150 = vadd.f32 0.0, %v1149
    %1151 = vdwg.mxu0
    %1152 = vmatpush.msra.mxu0 %v123
    %1153 = vmatpush.msra.mxu0 %v119
    %1154 = vmatpush.msra.mxu0 %v115
    %1155 = vmatpush.msra.mxu0 %v111
    %1156 = vmatpush.msra.mxu0 %v107
    %1157 = vmatpush.msra.mxu0 %v103
    %1158 = vmatpush.msra.mxu0 %v99
    %1159 = vmatpush.msra.mxu0 %v95
    %1160 = vmatpush.msra.mxu0 %v91
    %1161 = vmatpush.msra.mxu0 %v87
    %1162 = vmatpush.msra.mxu0 %v83
    %1163 = vmatpush.msra.mxu0 %v79
    %1164 = vmatpush.msra.mxu0 %v75
    %1165 = vmatpush.msra.mxu0 %v71
    %1166 = vmatpush.msra.mxu0 %v67
    %1167 = vmatpush.msra.mxu0 %v63
    %1168 = vmatmul.f32.gmra.mxu0 %v1130
    %v1169 = vpop.f32.mrf.mxu0
    %v1170 = vadd.f32 0.0, %v1169
    %1171 = vdwg.mxu0
    %1172 = vmatpush.msra.mxu0 %v124
    %1173 = vmatpush.msra.mxu0 %v120
    %1174 = vmatpush.msra.mxu0 %v116
    %1175 = vmatpush.msra.mxu0 %v112
    %1176 = vmatpush.msra.mxu0 %v108
    %1177 = vmatpush.msra.mxu0 %v104
    %1178 = vmatpush.msra.mxu0 %v100
    %1179 = vmatpush.msra.mxu0 %v96
    %1180 = vmatpush.msra.mxu0 %v92
    %1181 = vmatpush.msra.mxu0 %v88
    %1182 = vmatpush.msra.mxu0 %v84
    %1183 = vmatpush.msra.mxu0 %v80
    %1184 = vmatpush.msra.mxu0 %v76
    %1185 = vmatpush.msra.mxu0 %v72
    %1186 = vmatpush.msra.mxu0 %v68
    %1187 = vmatpush.msra.mxu0 %v64
    %1188 = vmatmul.f32.gmra.mxu0 %v1130
    %v1189 = vpop.f32.mrf.mxu0
    %v1190 = vadd.f32 0.0, %v1189
    %1191 = vdwg.mxu0
    %1192 = vmatpush.msra.mxu0 %v125
    %1193 = vmatpush.msra.mxu0 %v121
    %1194 = vmatpush.msra.mxu0 %v117
    %1195 = vmatpush.msra.mxu0 %v113
    %1196 = vmatpush.msra.mxu0 %v109
    %1197 = vmatpush.msra.mxu0 %v105
    %1198 = vmatpush.msra.mxu0 %v101
    %1199 = vmatpush.msra.mxu0 %v97
    %1200 = vmatpush.msra.mxu0 %v93
    %1201 = vmatpush.msra.mxu0 %v89
    %1202 = vmatpush.msra.mxu0 %v85
    %1203 = vmatpush.msra.mxu0 %v81
    %1204 = vmatpush.msra.mxu0 %v77
    %1205 = vmatpush.msra.mxu0 %v73
    %1206 = vmatpush.msra.mxu0 %v69
    %1207 = vmatpush.msra.mxu0 %v65
    %1208 = vmatmul.f32.gmra.mxu0 %v1130
    %v1209 = vpop.f32.mrf.mxu0
    %v1210 = vadd.f32 0.0, %v1209
    %1211 = vdwg.mxu0
    %v1216 = vrot.slane %v1150, 6
    %v1217 = vrot.slane %v1170, 6
    %v1218 = vrot.slane %v1190, 6
    %v1219 = vrot.slane %v1210, 6
    %v1220 = vrot.slane %v1150, 7
    %v1221 = vrot.slane %v1170, 7
    %v1222 = vrot.slane %v1190, 7
    %v1223 = vrot.slane %v1210, 7
    %v1224 = vrot.slane %v1150, 1
    %v1225 = vrot.slane %v1170, 1
    %v1226 = vrot.slane %v1190, 1
    %v1227 = vrot.slane %v1210, 1
    %v1244 = vadd.f32 %v237, %v1216
    %v1245 = vadd.f32 %v266, %v1217
    %v1246 = vadd.f32 %v295, %v1218
    %v1247 = vadd.f32 %v324, %v1219
    %v1248 = vadd.f32 %v240, %v1220
    %v1249 = vadd.f32 %v269, %v1221
    %v1250 = vadd.f32 %v298, %v1222
    %v1251 = vadd.f32 %v327, %v1223
    %v1252 = vadd.f32 %v243, %v1150
    %v1253 = vadd.f32 %v272, %v1170
    %v1254 = vadd.f32 %v301, %v1190
    %v1255 = vadd.f32 %v330, %v1210
    %v1256 = vadd.f32 %v246, %v1224
    %v1257 = vadd.f32 %v275, %v1225
    %v1258 = vadd.f32 %v304, %v1226
    %v1259 = vadd.f32 %v333, %v1227
    %v1260 = vxor.u32 %v1244, 2147483648
    %v1261 = vxor.u32 %v1245, 2147483648
    %v1262 = vxor.u32 %v1246, 2147483648
    %v1263 = vxor.u32 %v1248, 2147483648
    %v1264 = vxor.u32 %v1249, 2147483648
    %v1265 = vxor.u32 %v1250, 2147483648
    %v1266 = vxor.u32 %v1252, 2147483648
    %v1267 = vxor.u32 %v1253, 2147483648
    %v1268 = vxor.u32 %v1254, 2147483648
    %v1269 = vxor.u32 %v1256, 2147483648
    %v1270 = vxor.u32 %v1257, 2147483648
    %v1271 = vxor.u32 %v1258, 2147483648
    %v1272 = vmul.f32 %v1260, 1.442695
    %v1273 = vpow.pop %v1272
    %v1274 = vmul.f32 %v1261, 1.442695
    %v1275 = vpow.pop %v1274
    %v1276 = vmul.f32 %v1262, 1.442695
    %v1277 = vpow.pop %v1276
    %v1278 = vmul.f32 %v1263, 1.442695
    %v1279 = vpow.pop %v1278
    %v1280 = vmul.f32 %v1264, 1.442695
    %v1281 = vpow.pop %v1280
    %v1282 = vmul.f32 %v1265, 1.442695
    %v1283 = vpow.pop %v1282
    %v1284 = vmul.f32 %v1266, 1.442695
    %v1285 = vpow.pop %v1284
    %v1286 = vmul.f32 %v1267, 1.442695
    %v1287 = vpow.pop %v1286
    %v1288 = vmul.f32 %v1268, 1.442695
    %v1289 = vpow.pop %v1288
    %v1290 = vmul.f32 %v1269, 1.442695
    %v1291 = vpow.pop %v1290
    %v1292 = vmul.f32 %v1270, 1.442695
    %v1293 = vpow.pop %v1292
    %v1294 = vmul.f32 %v1271, 1.442695
    %v1295 = vpow.pop %v1294
    %v1296 = vadd.f32 %v1273, 1.0
    %v1297 = vadd.f32 %v1275, 1.0
    %v1298 = vadd.f32 %v1277, 1.0
    %v1299 = vadd.f32 %v1279, 1.0
    %v1300 = vadd.f32 %v1281, 1.0
    %v1301 = vadd.f32 %v1283, 1.0
    %v1302 = vadd.f32 %v1285, 1.0
    %v1303 = vadd.f32 %v1287, 1.0
    %v1304 = vadd.f32 %v1289, 1.0
    %v1305 = vadd.f32 %v1291, 1.0
    %v1306 = vadd.f32 %v1293, 1.0
    %v1307 = vadd.f32 %v1295, 1.0
    %v1308 = vrcp.pop %v1296
    %v1309 = vmul.f32 %v1296, %v1308
    %v1310 = vsub.f32 1.0, %v1309
    %v1311 = vmul.f32 %v1308, %v1310
    %v1312 = vadd.f32 %v1308, %v1311
    %vm1313 = vweird.f32 %v1296
    %vm1314 = vweird.f32 %v1308
    %vm1315 = vmor %vm1313, %vm1314
    %v1316 = vsel %vm1315, %v1308, %v1312
    %v1317 = vand.u32 2147483647, %v1296
    %vm1318 = vcmp.eq.f32.partialorder %v1317, 8.507059e+37
    %v1319 = vand.u32 %v1296, 2147483648
    %v1320 = vor.u32 1.1754944e-38, %v1319
    %v1321 = vsel %vm1318, %v1320, %v1316
    %v1322 = vmul.f32 1.0, %v1321
    %v1323 = vrcp.pop %v1297
    %v1324 = vmul.f32 %v1297, %v1323
    %v1325 = vsub.f32 1.0, %v1324
    %v1326 = vmul.f32 %v1323, %v1325
    %v1327 = vadd.f32 %v1323, %v1326
    %vm1328 = vweird.f32 %v1297
    %vm1329 = vweird.f32 %v1323
    %vm1330 = vmor %vm1328, %vm1329
    %v1331 = vsel %vm1330, %v1323, %v1327
    %v1332 = vand.u32 2147483647, %v1297
    %vm1333 = vcmp.eq.f32.partialorder %v1332, 8.507059e+37
    %v1334 = vand.u32 %v1297, 2147483648
    %v1335 = vor.u32 1.1754944e-38, %v1334
    %v1336 = vsel %vm1333, %v1335, %v1331
    %v1337 = vmul.f32 1.0, %v1336
    %v1338 = vrcp.pop %v1298
    %v1339 = vmul.f32 %v1298, %v1338
    %v1340 = vsub.f32 1.0, %v1339
    %v1341 = vmul.f32 %v1338, %v1340
    %v1342 = vadd.f32 %v1338, %v1341
    %vm1343 = vweird.f32 %v1298
    %vm1344 = vweird.f32 %v1338
    %vm1345 = vmor %vm1343, %vm1344
    %v1346 = vsel %vm1345, %v1338, %v1342
    %v1347 = vand.u32 2147483647, %v1298
    %vm1348 = vcmp.eq.f32.partialorder %v1347, 8.507059e+37
    %v1349 = vand.u32 %v1298, 2147483648
    %v1350 = vor.u32 1.1754944e-38, %v1349
    %v1351 = vsel %vm1348, %v1350, %v1346
    %v1352 = vmul.f32 1.0, %v1351
    %v1353 = vrcp.pop %v1299
    %v1354 = vmul.f32 %v1299, %v1353
    %v1355 = vsub.f32 1.0, %v1354
    %v1356 = vmul.f32 %v1353, %v1355
    %v1357 = vadd.f32 %v1353, %v1356
    %vm1358 = vweird.f32 %v1299
    %vm1359 = vweird.f32 %v1353
    %vm1360 = vmor %vm1358, %vm1359
    %v1361 = vsel %vm1360, %v1353, %v1357
    %v1362 = vand.u32 2147483647, %v1299
    %vm1363 = vcmp.eq.f32.partialorder %v1362, 8.507059e+37
    %v1364 = vand.u32 %v1299, 2147483648
    %v1365 = vor.u32 1.1754944e-38, %v1364
    %v1366 = vsel %vm1363, %v1365, %v1361
    %v1367 = vmul.f32 1.0, %v1366
    %v1368 = vrcp.pop %v1300
    %v1369 = vmul.f32 %v1300, %v1368
    %v1370 = vsub.f32 1.0, %v1369
    %v1371 = vmul.f32 %v1368, %v1370
    %v1372 = vadd.f32 %v1368, %v1371
    %vm1373 = vweird.f32 %v1300
    %vm1374 = vweird.f32 %v1368
    %vm1375 = vmor %vm1373, %vm1374
    %v1376 = vsel %vm1375, %v1368, %v1372
    %v1377 = vand.u32 2147483647, %v1300
    %vm1378 = vcmp.eq.f32.partialorder %v1377, 8.507059e+37
    %v1379 = vand.u32 %v1300, 2147483648
    %v1380 = vor.u32 1.1754944e-38, %v1379
    %v1381 = vsel %vm1378, %v1380, %v1376
    %v1382 = vmul.f32 1.0, %v1381
    %v1383 = vrcp.pop %v1301
    %v1384 = vmul.f32 %v1301, %v1383
    %v1385 = vsub.f32 1.0, %v1384
    %v1386 = vmul.f32 %v1383, %v1385
    %v1387 = vadd.f32 %v1383, %v1386
    %vm1388 = vweird.f32 %v1301
    %vm1389 = vweird.f32 %v1383
    %vm1390 = vmor %vm1388, %vm1389
    %v1391 = vsel %vm1390, %v1383, %v1387
    %v1392 = vand.u32 2147483647, %v1301
    %vm1393 = vcmp.eq.f32.partialorder %v1392, 8.507059e+37
    %v1394 = vand.u32 %v1301, 2147483648
    %v1395 = vor.u32 1.1754944e-38, %v1394
    %v1396 = vsel %vm1393, %v1395, %v1391
    %v1397 = vmul.f32 1.0, %v1396
    %v1398 = vrcp.pop %v1302
    %v1399 = vmul.f32 %v1302, %v1398
    %v1400 = vsub.f32 1.0, %v1399
    %v1401 = vmul.f32 %v1398, %v1400
    %v1402 = vadd.f32 %v1398, %v1401
    %vm1403 = vweird.f32 %v1302
    %vm1404 = vweird.f32 %v1398
    %vm1405 = vmor %vm1403, %vm1404
    %v1406 = vsel %vm1405, %v1398, %v1402
    %v1407 = vand.u32 2147483647, %v1302
    %vm1408 = vcmp.eq.f32.partialorder %v1407, 8.507059e+37
    %v1409 = vand.u32 %v1302, 2147483648
    %v1410 = vor.u32 1.1754944e-38, %v1409
    %v1411 = vsel %vm1408, %v1410, %v1406
    %v1412 = vmul.f32 1.0, %v1411
    %v1413 = vrcp.pop %v1303
    %v1414 = vmul.f32 %v1303, %v1413
    %v1415 = vsub.f32 1.0, %v1414
    %v1416 = vmul.f32 %v1413, %v1415
    %v1417 = vadd.f32 %v1413, %v1416
    %vm1418 = vweird.f32 %v1303
    %vm1419 = vweird.f32 %v1413
    %vm1420 = vmor %vm1418, %vm1419
    %v1421 = vsel %vm1420, %v1413, %v1417
    %v1422 = vand.u32 2147483647, %v1303
    %vm1423 = vcmp.eq.f32.partialorder %v1422, 8.507059e+37
    %v1424 = vand.u32 %v1303, 2147483648
    %v1425 = vor.u32 1.1754944e-38, %v1424
    %v1426 = vsel %vm1423, %v1425, %v1421
    %v1427 = vmul.f32 1.0, %v1426
    %v1428 = vrcp.pop %v1304
    %v1429 = vmul.f32 %v1304, %v1428
    %v1430 = vsub.f32 1.0, %v1429
    %v1431 = vmul.f32 %v1428, %v1430
    %v1432 = vadd.f32 %v1428, %v1431
    %vm1433 = vweird.f32 %v1304
    %vm1434 = vweird.f32 %v1428
    %vm1435 = vmor %vm1433, %vm1434
    %v1436 = vsel %vm1435, %v1428, %v1432
    %v1437 = vand.u32 2147483647, %v1304
    %vm1438 = vcmp.eq.f32.partialorder %v1437, 8.507059e+37
    %v1439 = vand.u32 %v1304, 2147483648
    %v1440 = vor.u32 1.1754944e-38, %v1439
    %v1441 = vsel %vm1438, %v1440, %v1436
    %v1442 = vmul.f32 1.0, %v1441
    %v1443 = vrcp.pop %v1305
    %v1444 = vmul.f32 %v1305, %v1443
    %v1445 = vsub.f32 1.0, %v1444
    %v1446 = vmul.f32 %v1443, %v1445
    %v1447 = vadd.f32 %v1443, %v1446
    %vm1448 = vweird.f32 %v1305
    %vm1449 = vweird.f32 %v1443
    %vm1450 = vmor %vm1448, %vm1449
    %v1451 = vsel %vm1450, %v1443, %v1447
    %v1452 = vand.u32 2147483647, %v1305
    %vm1453 = vcmp.eq.f32.partialorder %v1452, 8.507059e+37
    %v1454 = vand.u32 %v1305, 2147483648
    %v1455 = vor.u32 1.1754944e-38, %v1454
    %v1456 = vsel %vm1453, %v1455, %v1451
    %v1457 = vmul.f32 1.0, %v1456
    %v1458 = vrcp.pop %v1306
    %v1459 = vmul.f32 %v1306, %v1458
    %v1460 = vsub.f32 1.0, %v1459
    %v1461 = vmul.f32 %v1458, %v1460
    %v1462 = vadd.f32 %v1458, %v1461
    %vm1463 = vweird.f32 %v1306
    %vm1464 = vweird.f32 %v1458
    %vm1465 = vmor %vm1463, %vm1464
    %v1466 = vsel %vm1465, %v1458, %v1462
    %v1467 = vand.u32 2147483647, %v1306
    %vm1468 = vcmp.eq.f32.partialorder %v1467, 8.507059e+37
    %v1469 = vand.u32 %v1306, 2147483648
    %v1470 = vor.u32 1.1754944e-38, %v1469
    %v1471 = vsel %vm1468, %v1470, %v1466
    %v1472 = vmul.f32 1.0, %v1471
    %v1473 = vrcp.pop %v1307
    %v1474 = vmul.f32 %v1307, %v1473
    %v1475 = vsub.f32 1.0, %v1474
    %v1476 = vmul.f32 %v1473, %v1475
    %v1477 = vadd.f32 %v1473, %v1476
    %vm1478 = vweird.f32 %v1307
    %vm1479 = vweird.f32 %v1473
    %vm1480 = vmor %vm1478, %vm1479
    %v1481 = vsel %vm1480, %v1473, %v1477
    %v1482 = vand.u32 2147483647, %v1307
    %vm1483 = vcmp.eq.f32.partialorder %v1482, 8.507059e+37
    %v1484 = vand.u32 %v1307, 2147483648
    %v1485 = vor.u32 1.1754944e-38, %v1484
    %v1486 = vsel %vm1483, %v1485, %v1481
    %v1487 = vmul.f32 1.0, %v1486
    %v1488 = vtanh.pop %v1247
    %v1489 = vtanh.pop %v1251
    %v1490 = vtanh.pop %v1255
    %v1491 = vtanh.pop %v1259
    %v1496 = vrot.slane %v1109, 7
    %v1497 = vrot.slane %v1110, 7
    %v1498 = vrot.slane %v1111, 7
    %v1499 = vrot.slane %v1112, 7
    %v1504 = vmul.f32 %v1337, %v1496
    %v1505 = vmul.f32 %v1382, %v1497
    %v1506 = vmul.f32 %v1427, %v1498
    %v1507 = vmul.f32 %v1472, %v1499
    %v1508 = vmul.f32 %v1322, %v1488
    %v1509 = vmul.f32 %v1367, %v1489
    %v1510 = vmul.f32 %v1412, %v1490
    %v1511 = vmul.f32 %v1457, %v1491
    %v1512 = vadd.f32 %v1504, %v1508
    %v1513 = vadd.f32 %v1505, %v1509
    %v1514 = vadd.f32 %v1506, %v1510
    %v1515 = vadd.f32 %v1507, %v1511
    %v1516 = vtanh.pop %v1512
    %v1517 = vtanh.pop %v1513
    %v1518 = vtanh.pop %v1514
    %v1519 = vtanh.pop %v1515
    %v1520 = vmul.f32 %v1352, %v1516
    %v1521 = vmul.f32 %v1397, %v1517
    %v1522 = vmul.f32 %v1442, %v1518
    %v1523 = vmul.f32 %v1487, %v1519
    %v1528 = vrot.slane %v1520, 2
    %v1529 = vrot.slane %v1521, 1
    %v1530 = vsel %vm720, %v1529, %v1528
    %v1531 = vsel %vm723, %v1522, %v1530
    %v1532 = vrot.slane %v1523, 7
    %v1533 = vsel %vm726, %v1532, %v1531
    %1535 = vmatpush.msra.mxu0 %v122
    %1536 = vmatpush.msra.mxu0 %v118
    %1537 = vmatpush.msra.mxu0 %v114
    %1538 = vmatpush.msra.mxu0 %v110
    %1539 = vmatpush.msra.mxu0 %v106
    %1540 = vmatpush.msra.mxu0 %v102
    %1541 = vmatpush.msra.mxu0 %v98
    %1542 = vmatpush.msra.mxu0 %v94
    %1543 = vmatpush.msra.mxu0 %v90
    %1544 = vmatpush.msra.mxu0 %v86
    %1545 = vmatpush.msra.mxu0 %v82
    %1546 = vmatpush.msra.mxu0 %v78
    %1547 = vmatpush.msra.mxu0 %v74
    %1548 = vmatpush.msra.mxu0 %v70
    %1549 = vmatpush.msra.mxu0 %v66
    %1550 = vmatpush.msra.mxu0 %v62
    %1551 = vmatmul.f32.gmra.mxu0 %v1533
    %v1552 = vpop.f32.mrf.mxu0
    %v1553 = vadd.f32 0.0, %v1552
    %1554 = vdwg.mxu0
    %1555 = vmatpush.msra.mxu0 %v123
    %1556 = vmatpush.msra.mxu0 %v119
    %1557 = vmatpush.msra.mxu0 %v115
    %1558 = vmatpush.msra.mxu0 %v111
    %1559 = vmatpush.msra.mxu0 %v107
    %1560 = vmatpush.msra.mxu0 %v103
    %1561 = vmatpush.msra.mxu0 %v99
    %1562 = vmatpush.msra.mxu0 %v95
    %1563 = vmatpush.msra.mxu0 %v91
    %1564 = vmatpush.msra.mxu0 %v87
    %1565 = vmatpush.msra.mxu0 %v83
    %1566 = vmatpush.msra.mxu0 %v79
    %1567 = vmatpush.msra.mxu0 %v75
    %1568 = vmatpush.msra.mxu0 %v71
    %1569 = vmatpush.msra.mxu0 %v67
    %1570 = vmatpush.msra.mxu0 %v63
    %1571 = vmatmul.f32.gmra.mxu0 %v1533
    %v1572 = vpop.f32.mrf.mxu0
    %v1573 = vadd.f32 0.0, %v1572
    %1574 = vdwg.mxu0
    %1575 = vmatpush.msra.mxu0 %v124
    %1576 = vmatpush.msra.mxu0 %v120
    %1577 = vmatpush.msra.mxu0 %v116
    %1578 = vmatpush.msra.mxu0 %v112
    %1579 = vmatpush.msra.mxu0 %v108
    %1580 = vmatpush.msra.mxu0 %v104
    %1581 = vmatpush.msra.mxu0 %v100
    %1582 = vmatpush.msra.mxu0 %v96
    %1583 = vmatpush.msra.mxu0 %v92
    %1584 = vmatpush.msra.mxu0 %v88
    %1585 = vmatpush.msra.mxu0 %v84
    %1586 = vmatpush.msra.mxu0 %v80
    %1587 = vmatpush.msra.mxu0 %v76
    %1588 = vmatpush.msra.mxu0 %v72
    %1589 = vmatpush.msra.mxu0 %v68
    %1590 = vmatpush.msra.mxu0 %v64
    %1591 = vmatmul.f32.gmra.mxu0 %v1533
    %v1592 = vpop.f32.mrf.mxu0
    %v1593 = vadd.f32 0.0, %v1592
    %1594 = vdwg.mxu0
    %1595 = vmatpush.msra.mxu0 %v125
    %1596 = vmatpush.msra.mxu0 %v121
    %1597 = vmatpush.msra.mxu0 %v117
    %1598 = vmatpush.msra.mxu0 %v113
    %1599 = vmatpush.msra.mxu0 %v109
    %1600 = vmatpush.msra.mxu0 %v105
    %1601 = vmatpush.msra.mxu0 %v101
    %1602 = vmatpush.msra.mxu0 %v97
    %1603 = vmatpush.msra.mxu0 %v93
    %1604 = vmatpush.msra.mxu0 %v89
    %1605 = vmatpush.msra.mxu0 %v85
    %1606 = vmatpush.msra.mxu0 %v81
    %1607 = vmatpush.msra.mxu0 %v77
    %1608 = vmatpush.msra.mxu0 %v73
    %1609 = vmatpush.msra.mxu0 %v69
    %1610 = vmatpush.msra.mxu0 %v65
    %1611 = vmatmul.f32.gmra.mxu0 %v1533
    %v1612 = vpop.f32.mrf.mxu0
    %v1613 = vadd.f32 0.0, %v1612
    %1614 = vdwg.mxu0
    %v1619 = vrot.slane %v1553, 5
    %v1620 = vrot.slane %v1573, 5
    %v1621 = vrot.slane %v1593, 5
    %v1622 = vrot.slane %v1613, 5
    %v1623 = vrot.slane %v1553, 6
    %v1624 = vrot.slane %v1573, 6
    %v1625 = vrot.slane %v1593, 6
    %v1626 = vrot.slane %v1613, 6
    %v1627 = vrot.slane %v1553, 7
    %v1628 = vrot.slane %v1573, 7
    %v1629 = vrot.slane %v1593, 7
    %v1630 = vrot.slane %v1613, 7
    %v1647 = vadd.f32 %v237, %v1619
    %v1648 = vadd.f32 %v266, %v1620
    %v1649 = vadd.f32 %v295, %v1621
    %v1650 = vadd.f32 %v324, %v1622
    %v1651 = vadd.f32 %v240, %v1623
    %v1652 = vadd.f32 %v269, %v1624
    %v1653 = vadd.f32 %v298, %v1625
    %v1654 = vadd.f32 %v327, %v1626
    %v1655 = vadd.f32 %v243, %v1627
    %v1656 = vadd.f32 %v272, %v1628
    %v1657 = vadd.f32 %v301, %v1629
    %v1658 = vadd.f32 %v330, %v1630
    %v1659 = vadd.f32 %v246, %v1553
    %v1660 = vadd.f32 %v275, %v1573
    %v1661 = vadd.f32 %v304, %v1593
    %v1662 = vadd.f32 %v333, %v1613
    %v1663 = vxor.u32 %v1647, 2147483648
    %v1664 = vxor.u32 %v1648, 2147483648
    %v1665 = vxor.u32 %v1649, 2147483648
    %v1666 = vxor.u32 %v1651, 2147483648
    %v1667 = vxor.u32 %v1652, 2147483648
    %v1668 = vxor.u32 %v1653, 2147483648
    %v1669 = vxor.u32 %v1655, 2147483648
    %v1670 = vxor.u32 %v1656, 2147483648
    %v1671 = vxor.u32 %v1657, 2147483648
    %v1672 = vxor.u32 %v1659, 2147483648
    %v1673 = vxor.u32 %v1660, 2147483648
    %v1674 = vxor.u32 %v1661, 2147483648
    %v1675 = vmul.f32 %v1663, 1.442695
    %v1676 = vpow.pop %v1675
    %v1677 = vmul.f32 %v1664, 1.442695
    %v1678 = vpow.pop %v1677
    %v1679 = vmul.f32 %v1665, 1.442695
    %v1680 = vpow.pop %v1679
    %v1681 = vmul.f32 %v1666, 1.442695
    %v1682 = vpow.pop %v1681
    %v1683 = vmul.f32 %v1667, 1.442695
    %v1684 = vpow.pop %v1683
    %v1685 = vmul.f32 %v1668, 1.442695
    %v1686 = vpow.pop %v1685
    %v1687 = vmul.f32 %v1669, 1.442695
    %v1688 = vpow.pop %v1687
    %v1689 = vmul.f32 %v1670, 1.442695
    %v1690 = vpow.pop %v1689
    %v1691 = vmul.f32 %v1671, 1.442695
    %v1692 = vpow.pop %v1691
    %v1693 = vmul.f32 %v1672, 1.442695
    %v1694 = vpow.pop %v1693
    %v1695 = vmul.f32 %v1673, 1.442695
    %v1696 = vpow.pop %v1695
    %v1697 = vmul.f32 %v1674, 1.442695
    %v1698 = vpow.pop %v1697
    %v1699 = vadd.f32 %v1676, 1.0
    %v1700 = vadd.f32 %v1678, 1.0
    %v1701 = vadd.f32 %v1680, 1.0
    %v1702 = vadd.f32 %v1682, 1.0
    %v1703 = vadd.f32 %v1684, 1.0
    %v1704 = vadd.f32 %v1686, 1.0
    %v1705 = vadd.f32 %v1688, 1.0
    %v1706 = vadd.f32 %v1690, 1.0
    %v1707 = vadd.f32 %v1692, 1.0
    %v1708 = vadd.f32 %v1694, 1.0
    %v1709 = vadd.f32 %v1696, 1.0
    %v1710 = vadd.f32 %v1698, 1.0
    %v1711 = vrcp.pop %v1699
    %v1712 = vmul.f32 %v1699, %v1711
    %v1713 = vsub.f32 1.0, %v1712
    %v1714 = vmul.f32 %v1711, %v1713
    %v1715 = vadd.f32 %v1711, %v1714
    %vm1716 = vweird.f32 %v1699
    %vm1717 = vweird.f32 %v1711
    %vm1718 = vmor %vm1716, %vm1717
    %v1719 = vsel %vm1718, %v1711, %v1715
    %v1720 = vand.u32 2147483647, %v1699
    %vm1721 = vcmp.eq.f32.partialorder %v1720, 8.507059e+37
    %v1722 = vand.u32 %v1699, 2147483648
    %v1723 = vor.u32 1.1754944e-38, %v1722
    %v1724 = vsel %vm1721, %v1723, %v1719
    %v1725 = vmul.f32 1.0, %v1724
    %v1726 = vrcp.pop %v1700
    %v1727 = vmul.f32 %v1700, %v1726
    %v1728 = vsub.f32 1.0, %v1727
    %v1729 = vmul.f32 %v1726, %v1728
    %v1730 = vadd.f32 %v1726, %v1729
    %vm1731 = vweird.f32 %v1700
    %vm1732 = vweird.f32 %v1726
    %vm1733 = vmor %vm1731, %vm1732
    %v1734 = vsel %vm1733, %v1726, %v1730
    %v1735 = vand.u32 2147483647, %v1700
    %vm1736 = vcmp.eq.f32.partialorder %v1735, 8.507059e+37
    %v1737 = vand.u32 %v1700, 2147483648
    %v1738 = vor.u32 1.1754944e-38, %v1737
    %v1739 = vsel %vm1736, %v1738, %v1734
    %v1740 = vmul.f32 1.0, %v1739
    %v1741 = vrcp.pop %v1701
    %v1742 = vmul.f32 %v1701, %v1741
    %v1743 = vsub.f32 1.0, %v1742
    %v1744 = vmul.f32 %v1741, %v1743
    %v1745 = vadd.f32 %v1741, %v1744
    %vm1746 = vweird.f32 %v1701
    %vm1747 = vweird.f32 %v1741
    %vm1748 = vmor %vm1746, %vm1747
    %v1749 = vsel %vm1748, %v1741, %v1745
    %v1750 = vand.u32 2147483647, %v1701
    %vm1751 = vcmp.eq.f32.partialorder %v1750, 8.507059e+37
    %v1752 = vand.u32 %v1701, 2147483648
    %v1753 = vor.u32 1.1754944e-38, %v1752
    %v1754 = vsel %vm1751, %v1753, %v1749
    %v1755 = vmul.f32 1.0, %v1754
    %v1756 = vrcp.pop %v1702
    %v1757 = vmul.f32 %v1702, %v1756
    %v1758 = vsub.f32 1.0, %v1757
    %v1759 = vmul.f32 %v1756, %v1758
    %v1760 = vadd.f32 %v1756, %v1759
    %vm1761 = vweird.f32 %v1702
    %vm1762 = vweird.f32 %v1756
    %vm1763 = vmor %vm1761, %vm1762
    %v1764 = vsel %vm1763, %v1756, %v1760
    %v1765 = vand.u32 2147483647, %v1702
    %vm1766 = vcmp.eq.f32.partialorder %v1765, 8.507059e+37
    %v1767 = vand.u32 %v1702, 2147483648
    %v1768 = vor.u32 1.1754944e-38, %v1767
    %v1769 = vsel %vm1766, %v1768, %v1764
    %v1770 = vmul.f32 1.0, %v1769
    %v1771 = vrcp.pop %v1703
    %v1772 = vmul.f32 %v1703, %v1771
    %v1773 = vsub.f32 1.0, %v1772
    %v1774 = vmul.f32 %v1771, %v1773
    %v1775 = vadd.f32 %v1771, %v1774
    %vm1776 = vweird.f32 %v1703
    %vm1777 = vweird.f32 %v1771
    %vm1778 = vmor %vm1776, %vm1777
    %v1779 = vsel %vm1778, %v1771, %v1775
    %v1780 = vand.u32 2147483647, %v1703
    %vm1781 = vcmp.eq.f32.partialorder %v1780, 8.507059e+37
    %v1782 = vand.u32 %v1703, 2147483648
    %v1783 = vor.u32 1.1754944e-38, %v1782
    %v1784 = vsel %vm1781, %v1783, %v1779
    %v1785 = vmul.f32 1.0, %v1784
    %v1786 = vrcp.pop %v1704
    %v1787 = vmul.f32 %v1704, %v1786
    %v1788 = vsub.f32 1.0, %v1787
    %v1789 = vmul.f32 %v1786, %v1788
    %v1790 = vadd.f32 %v1786, %v1789
    %vm1791 = vweird.f32 %v1704
    %vm1792 = vweird.f32 %v1786
    %vm1793 = vmor %vm1791, %vm1792
    %v1794 = vsel %vm1793, %v1786, %v1790
    %v1795 = vand.u32 2147483647, %v1704
    %vm1796 = vcmp.eq.f32.partialorder %v1795, 8.507059e+37
    %v1797 = vand.u32 %v1704, 2147483648
    %v1798 = vor.u32 1.1754944e-38, %v1797
    %v1799 = vsel %vm1796, %v1798, %v1794
    %v1800 = vmul.f32 1.0, %v1799
    %v1801 = vrcp.pop %v1705
    %v1802 = vmul.f32 %v1705, %v1801
    %v1803 = vsub.f32 1.0, %v1802
    %v1804 = vmul.f32 %v1801, %v1803
    %v1805 = vadd.f32 %v1801, %v1804
    %vm1806 = vweird.f32 %v1705
    %vm1807 = vweird.f32 %v1801
    %vm1808 = vmor %vm1806, %vm1807
    %v1809 = vsel %vm1808, %v1801, %v1805
    %v1810 = vand.u32 2147483647, %v1705
    %vm1811 = vcmp.eq.f32.partialorder %v1810, 8.507059e+37
    %v1812 = vand.u32 %v1705, 2147483648
    %v1813 = vor.u32 1.1754944e-38, %v1812
    %v1814 = vsel %vm1811, %v1813, %v1809
    %v1815 = vmul.f32 1.0, %v1814
    %v1816 = vrcp.pop %v1706
    %v1817 = vmul.f32 %v1706, %v1816
    %v1818 = vsub.f32 1.0, %v1817
    %v1819 = vmul.f32 %v1816, %v1818
    %v1820 = vadd.f32 %v1816, %v1819
    %vm1821 = vweird.f32 %v1706
    %vm1822 = vweird.f32 %v1816
    %vm1823 = vmor %vm1821, %vm1822
    %v1824 = vsel %vm1823, %v1816, %v1820
    %v1825 = vand.u32 2147483647, %v1706
    %vm1826 = vcmp.eq.f32.partialorder %v1825, 8.507059e+37
    %v1827 = vand.u32 %v1706, 2147483648
    %v1828 = vor.u32 1.1754944e-38, %v1827
    %v1829 = vsel %vm1826, %v1828, %v1824
    %v1830 = vmul.f32 1.0, %v1829
    %v1831 = vrcp.pop %v1707
    %v1832 = vmul.f32 %v1707, %v1831
    %v1833 = vsub.f32 1.0, %v1832
    %v1834 = vmul.f32 %v1831, %v1833
    %v1835 = vadd.f32 %v1831, %v1834
    %vm1836 = vweird.f32 %v1707
    %vm1837 = vweird.f32 %v1831
    %vm1838 = vmor %vm1836, %vm1837
    %v1839 = vsel %vm1838, %v1831, %v1835
    %v1840 = vand.u32 2147483647, %v1707
    %vm1841 = vcmp.eq.f32.partialorder %v1840, 8.507059e+37
    %v1842 = vand.u32 %v1707, 2147483648
    %v1843 = vor.u32 1.1754944e-38, %v1842
    %v1844 = vsel %vm1841, %v1843, %v1839
    %v1845 = vmul.f32 1.0, %v1844
    %v1846 = vrcp.pop %v1708
    %v1847 = vmul.f32 %v1708, %v1846
    %v1848 = vsub.f32 1.0, %v1847
    %v1849 = vmul.f32 %v1846, %v1848
    %v1850 = vadd.f32 %v1846, %v1849
    %vm1851 = vweird.f32 %v1708
    %vm1852 = vweird.f32 %v1846
    %vm1853 = vmor %vm1851, %vm1852
    %v1854 = vsel %vm1853, %v1846, %v1850
    %v1855 = vand.u32 2147483647, %v1708
    %vm1856 = vcmp.eq.f32.partialorder %v1855, 8.507059e+37
    %v1857 = vand.u32 %v1708, 2147483648
    %v1858 = vor.u32 1.1754944e-38, %v1857
    %v1859 = vsel %vm1856, %v1858, %v1854
    %v1860 = vmul.f32 1.0, %v1859
    %v1861 = vrcp.pop %v1709
    %v1862 = vmul.f32 %v1709, %v1861
    %v1863 = vsub.f32 1.0, %v1862
    %v1864 = vmul.f32 %v1861, %v1863
    %v1865 = vadd.f32 %v1861, %v1864
    %vm1866 = vweird.f32 %v1709
    %vm1867 = vweird.f32 %v1861
    %vm1868 = vmor %vm1866, %vm1867
    %v1869 = vsel %vm1868, %v1861, %v1865
    %v1870 = vand.u32 2147483647, %v1709
    %vm1871 = vcmp.eq.f32.partialorder %v1870, 8.507059e+37
    %v1872 = vand.u32 %v1709, 2147483648
    %v1873 = vor.u32 1.1754944e-38, %v1872
    %v1874 = vsel %vm1871, %v1873, %v1869
    %v1875 = vmul.f32 1.0, %v1874
    %v1876 = vrcp.pop %v1710
    %v1877 = vmul.f32 %v1710, %v1876
    %v1878 = vsub.f32 1.0, %v1877
    %v1879 = vmul.f32 %v1876, %v1878
    %v1880 = vadd.f32 %v1876, %v1879
    %vm1881 = vweird.f32 %v1710
    %vm1882 = vweird.f32 %v1876
    %vm1883 = vmor %vm1881, %vm1882
    %v1884 = vsel %vm1883, %v1876, %v1880
    %v1885 = vand.u32 2147483647, %v1710
    %vm1886 = vcmp.eq.f32.partialorder %v1885, 8.507059e+37
    %v1887 = vand.u32 %v1710, 2147483648
    %v1888 = vor.u32 1.1754944e-38, %v1887
    %v1889 = vsel %vm1886, %v1888, %v1884
    %v1890 = vmul.f32 1.0, %v1889
    %v1891 = vtanh.pop %v1650
    %v1892 = vtanh.pop %v1654
    %v1893 = vtanh.pop %v1658
    %v1894 = vtanh.pop %v1662
    %v1899 = vrot.slane %v1512, 7
    %v1900 = vrot.slane %v1513, 7
    %v1901 = vrot.slane %v1514, 7
    %v1902 = vrot.slane %v1515, 7
    %v1907 = vmul.f32 %v1740, %v1899
    %v1908 = vmul.f32 %v1785, %v1900
    %v1909 = vmul.f32 %v1830, %v1901
    %v1910 = vmul.f32 %v1875, %v1902
    %v1911 = vmul.f32 %v1725, %v1891
    %v1912 = vmul.f32 %v1770, %v1892
    %v1913 = vmul.f32 %v1815, %v1893
    %v1914 = vmul.f32 %v1860, %v1894
    %v1915 = vadd.f32 %v1907, %v1911
    %v1916 = vadd.f32 %v1908, %v1912
    %v1917 = vadd.f32 %v1909, %v1913
    %v1918 = vadd.f32 %v1910, %v1914
    %v1919 = vtanh.pop %v1915
    %v1920 = vtanh.pop %v1916
    %v1921 = vtanh.pop %v1917
    %v1922 = vtanh.pop %v1918
    %v1923 = vmul.f32 %v1755, %v1919
    %v1924 = vmul.f32 %v1800, %v1920
    %v1925 = vmul.f32 %v1845, %v1921
    %v1926 = vmul.f32 %v1890, %v1922
    %v1931 = vrot.slane %v1923, 3
    %v1932 = vrot.slane %v1924, 2
    %v1933 = vsel %vm720, %v1932, %v1931
    %v1934 = vrot.slane %v1925, 1
    %v1935 = vsel %vm723, %v1934, %v1933
    %v1936 = vsel %vm726, %v1926, %v1935
    %1938 = vmatpush.msra.mxu0 %v122
    %1939 = vmatpush.msra.mxu0 %v118
    %1940 = vmatpush.msra.mxu0 %v114
    %1941 = vmatpush.msra.mxu0 %v110
    %1942 = vmatpush.msra.mxu0 %v106
    %1943 = vmatpush.msra.mxu0 %v102
    %1944 = vmatpush.msra.mxu0 %v98
    %1945 = vmatpush.msra.mxu0 %v94
    %1946 = vmatpush.msra.mxu0 %v90
    %1947 = vmatpush.msra.mxu0 %v86
    %1948 = vmatpush.msra.mxu0 %v82
    %1949 = vmatpush.msra.mxu0 %v78
    %1950 = vmatpush.msra.mxu0 %v74
    %1951 = vmatpush.msra.mxu0 %v70
    %1952 = vmatpush.msra.mxu0 %v66
    %1953 = vmatpush.msra.mxu0 %v62
    %1954 = vmatmul.f32.gmra.mxu0 %v1936
    %v1955 = vpop.f32.mrf.mxu0
    %v1956 = vadd.f32 0.0, %v1955
    %1957 = vdwg.mxu0
    %1958 = vmatpush.msra.mxu0 %v123
    %1959 = vmatpush.msra.mxu0 %v119
    %1960 = vmatpush.msra.mxu0 %v115
    %1961 = vmatpush.msra.mxu0 %v111
    %1962 = vmatpush.msra.mxu0 %v107
    %1963 = vmatpush.msra.mxu0 %v103
    %1964 = vmatpush.msra.mxu0 %v99
    %1965 = vmatpush.msra.mxu0 %v95
    %1966 = vmatpush.msra.mxu0 %v91
    %1967 = vmatpush.msra.mxu0 %v87
    %1968 = vmatpush.msra.mxu0 %v83
    %1969 = vmatpush.msra.mxu0 %v79
    %1970 = vmatpush.msra.mxu0 %v75
    %1971 = vmatpush.msra.mxu0 %v71
    %1972 = vmatpush.msra.mxu0 %v67
    %1973 = vmatpush.msra.mxu0 %v63
    %1974 = vmatmul.f32.gmra.mxu0 %v1936
    %v1975 = vpop.f32.mrf.mxu0
    %v1976 = vadd.f32 0.0, %v1975
    %1977 = vdwg.mxu0
    %1978 = vmatpush.msra.mxu0 %v124
    %1979 = vmatpush.msra.mxu0 %v120
    %1980 = vmatpush.msra.mxu0 %v116
    %1981 = vmatpush.msra.mxu0 %v112
    %1982 = vmatpush.msra.mxu0 %v108
    %1983 = vmatpush.msra.mxu0 %v104
    %1984 = vmatpush.msra.mxu0 %v100
    %1985 = vmatpush.msra.mxu0 %v96
    %1986 = vmatpush.msra.mxu0 %v92
    %1987 = vmatpush.msra.mxu0 %v88
    %1988 = vmatpush.msra.mxu0 %v84
    %1989 = vmatpush.msra.mxu0 %v80
    %1990 = vmatpush.msra.mxu0 %v76
    %1991 = vmatpush.msra.mxu0 %v72
    %1992 = vmatpush.msra.mxu0 %v68
    %1993 = vmatpush.msra.mxu0 %v64
    %1994 = vmatmul.f32.gmra.mxu0 %v1936
    %v1995 = vpop.f32.mrf.mxu0
    %v1996 = vadd.f32 0.0, %v1995
    %1997 = vdwg.mxu0
    %1998 = vmatpush.msra.mxu0 %v125
    %1999 = vmatpush.msra.mxu0 %v121
    %2000 = vmatpush.msra.mxu0 %v117
    %2001 = vmatpush.msra.mxu0 %v113
    %2002 = vmatpush.msra.mxu0 %v109
    %2003 = vmatpush.msra.mxu0 %v105
    %2004 = vmatpush.msra.mxu0 %v101
    %2005 = vmatpush.msra.mxu0 %v97
    %2006 = vmatpush.msra.mxu0 %v93
    %2007 = vmatpush.msra.mxu0 %v89
    %2008 = vmatpush.msra.mxu0 %v85
    %2009 = vmatpush.msra.mxu0 %v81
    %2010 = vmatpush.msra.mxu0 %v77
    %2011 = vmatpush.msra.mxu0 %v73
    %2012 = vmatpush.msra.mxu0 %v69
    %2013 = vmatpush.msra.mxu0 %v65
    %2014 = vmatmul.f32.gmra.mxu0 %v1936
    %v2015 = vpop.f32.mrf.mxu0
    %v2016 = vadd.f32 0.0, %v2015
    %2017 = vdwg.mxu0
    %v2022 = vrot.slane %v1956, 4
    %v2023 = vrot.slane %v1976, 4
    %v2024 = vrot.slane %v1996, 4
    %v2025 = vrot.slane %v2016, 4
    %v2026 = vrot.slane %v1956, 5
    %v2027 = vrot.slane %v1976, 5
    %v2028 = vrot.slane %v1996, 5
    %v2029 = vrot.slane %v2016, 5
    %v2030 = vrot.slane %v1956, 6
    %v2031 = vrot.slane %v1976, 6
    %v2032 = vrot.slane %v1996, 6
    %v2033 = vrot.slane %v2016, 6
    %v2034 = vrot.slane %v1956, 7
    %v2035 = vrot.slane %v1976, 7
    %v2036 = vrot.slane %v1996, 7
    %v2037 = vrot.slane %v2016, 7
    %v2054 = vadd.f32 %v237, %v2022
    %v2055 = vadd.f32 %v266, %v2023
    %v2056 = vadd.f32 %v295, %v2024
    %v2057 = vadd.f32 %v324, %v2025
    %v2058 = vadd.f32 %v240, %v2026
    %v2059 = vadd.f32 %v269, %v2027
    %v2060 = vadd.f32 %v298, %v2028
    %v2061 = vadd.f32 %v327, %v2029
    %v2062 = vadd.f32 %v243, %v2030
    %v2063 = vadd.f32 %v272, %v2031
    %v2064 = vadd.f32 %v301, %v2032
    %v2065 = vadd.f32 %v330, %v2033
    %v2066 = vadd.f32 %v246, %v2034
    %v2067 = vadd.f32 %v275, %v2035
    %v2068 = vadd.f32 %v304, %v2036
    %v2069 = vadd.f32 %v333, %v2037
    %v2070 = vxor.u32 %v2054, 2147483648
    %v2071 = vxor.u32 %v2055, 2147483648
    %v2072 = vxor.u32 %v2056, 2147483648
    %v2073 = vxor.u32 %v2058, 2147483648
    %v2074 = vxor.u32 %v2059, 2147483648
    %v2075 = vxor.u32 %v2060, 2147483648
    %v2076 = vxor.u32 %v2062, 2147483648
    %v2077 = vxor.u32 %v2063, 2147483648
    %v2078 = vxor.u32 %v2064, 2147483648
    %v2079 = vxor.u32 %v2066, 2147483648
    %v2080 = vxor.u32 %v2067, 2147483648
    %v2081 = vxor.u32 %v2068, 2147483648
    %v2082 = vmul.f32 %v2070, 1.442695
    %v2083 = vpow.pop %v2082
    %v2084 = vmul.f32 %v2071, 1.442695
    %v2085 = vpow.pop %v2084
    %v2086 = vmul.f32 %v2072, 1.442695
    %v2087 = vpow.pop %v2086
    %v2088 = vmul.f32 %v2073, 1.442695
    %v2089 = vpow.pop %v2088
    %v2090 = vmul.f32 %v2074, 1.442695
    %v2091 = vpow.pop %v2090
    %v2092 = vmul.f32 %v2075, 1.442695
    %v2093 = vpow.pop %v2092
    %v2094 = vmul.f32 %v2076, 1.442695
    %v2095 = vpow.pop %v2094
    %v2096 = vmul.f32 %v2077, 1.442695
    %v2097 = vpow.pop %v2096
    %v2098 = vmul.f32 %v2078, 1.442695
    %v2099 = vpow.pop %v2098
    %v2100 = vmul.f32 %v2079, 1.442695
    %v2101 = vpow.pop %v2100
    %v2102 = vmul.f32 %v2080, 1.442695
    %v2103 = vpow.pop %v2102
    %v2104 = vmul.f32 %v2081, 1.442695
    %v2105 = vpow.pop %v2104
    %v2106 = vadd.f32 %v2083, 1.0
    %v2107 = vadd.f32 %v2085, 1.0
    %v2108 = vadd.f32 %v2087, 1.0
    %v2109 = vadd.f32 %v2089, 1.0
    %v2110 = vadd.f32 %v2091, 1.0
    %v2111 = vadd.f32 %v2093, 1.0
    %v2112 = vadd.f32 %v2095, 1.0
    %v2113 = vadd.f32 %v2097, 1.0
    %v2114 = vadd.f32 %v2099, 1.0
    %v2115 = vadd.f32 %v2101, 1.0
    %v2116 = vadd.f32 %v2103, 1.0
    %v2117 = vadd.f32 %v2105, 1.0
    %v2118 = vrcp.pop %v2106
    %v2119 = vmul.f32 %v2106, %v2118
    %v2120 = vsub.f32 1.0, %v2119
    %v2121 = vmul.f32 %v2118, %v2120
    %v2122 = vadd.f32 %v2118, %v2121
    %vm2123 = vweird.f32 %v2106
    %vm2124 = vweird.f32 %v2118
    %vm2125 = vmor %vm2123, %vm2124
    %v2126 = vsel %vm2125, %v2118, %v2122
    %v2127 = vand.u32 2147483647, %v2106
    %vm2128 = vcmp.eq.f32.partialorder %v2127, 8.507059e+37
    %v2129 = vand.u32 %v2106, 2147483648
    %v2130 = vor.u32 1.1754944e-38, %v2129
    %v2131 = vsel %vm2128, %v2130, %v2126
    %v2132 = vmul.f32 1.0, %v2131
    %v2133 = vrcp.pop %v2107
    %v2134 = vmul.f32 %v2107, %v2133
    %v2135 = vsub.f32 1.0, %v2134
    %v2136 = vmul.f32 %v2133, %v2135
    %v2137 = vadd.f32 %v2133, %v2136
    %vm2138 = vweird.f32 %v2107
    %vm2139 = vweird.f32 %v2133
    %vm2140 = vmor %vm2138, %vm2139
    %v2141 = vsel %vm2140, %v2133, %v2137
    %v2142 = vand.u32 2147483647, %v2107
    %vm2143 = vcmp.eq.f32.partialorder %v2142, 8.507059e+37
    %v2144 = vand.u32 %v2107, 2147483648
    %v2145 = vor.u32 1.1754944e-38, %v2144
    %v2146 = vsel %vm2143, %v2145, %v2141
    %v2147 = vmul.f32 1.0, %v2146
    %v2148 = vrcp.pop %v2108
    %v2149 = vmul.f32 %v2108, %v2148
    %v2150 = vsub.f32 1.0, %v2149
    %v2151 = vmul.f32 %v2148, %v2150
    %v2152 = vadd.f32 %v2148, %v2151
    %vm2153 = vweird.f32 %v2108
    %vm2154 = vweird.f32 %v2148
    %vm2155 = vmor %vm2153, %vm2154
    %v2156 = vsel %vm2155, %v2148, %v2152
    %v2157 = vand.u32 2147483647, %v2108
    %vm2158 = vcmp.eq.f32.partialorder %v2157, 8.507059e+37
    %v2159 = vand.u32 %v2108, 2147483648
    %v2160 = vor.u32 1.1754944e-38, %v2159
    %v2161 = vsel %vm2158, %v2160, %v2156
    %v2162 = vmul.f32 1.0, %v2161
    %v2163 = vrcp.pop %v2109
    %v2164 = vmul.f32 %v2109, %v2163
    %v2165 = vsub.f32 1.0, %v2164
    %v2166 = vmul.f32 %v2163, %v2165
    %v2167 = vadd.f32 %v2163, %v2166
    %vm2168 = vweird.f32 %v2109
    %vm2169 = vweird.f32 %v2163
    %vm2170 = vmor %vm2168, %vm2169
    %v2171 = vsel %vm2170, %v2163, %v2167
    %v2172 = vand.u32 2147483647, %v2109
    %vm2173 = vcmp.eq.f32.partialorder %v2172, 8.507059e+37
    %v2174 = vand.u32 %v2109, 2147483648
    %v2175 = vor.u32 1.1754944e-38, %v2174
    %v2176 = vsel %vm2173, %v2175, %v2171
    %v2177 = vmul.f32 1.0, %v2176
    %v2178 = vrcp.pop %v2110
    %v2179 = vmul.f32 %v2110, %v2178
    %v2180 = vsub.f32 1.0, %v2179
    %v2181 = vmul.f32 %v2178, %v2180
    %v2182 = vadd.f32 %v2178, %v2181
    %vm2183 = vweird.f32 %v2110
    %vm2184 = vweird.f32 %v2178
    %vm2185 = vmor %vm2183, %vm2184
    %v2186 = vsel %vm2185, %v2178, %v2182
    %v2187 = vand.u32 2147483647, %v2110
    %vm2188 = vcmp.eq.f32.partialorder %v2187, 8.507059e+37
    %v2189 = vand.u32 %v2110, 2147483648
    %v2190 = vor.u32 1.1754944e-38, %v2189
    %v2191 = vsel %vm2188, %v2190, %v2186
    %v2192 = vmul.f32 1.0, %v2191
    %v2193 = vrcp.pop %v2111
    %v2194 = vmul.f32 %v2111, %v2193
    %v2195 = vsub.f32 1.0, %v2194
    %v2196 = vmul.f32 %v2193, %v2195
    %v2197 = vadd.f32 %v2193, %v2196
    %vm2198 = vweird.f32 %v2111
    %vm2199 = vweird.f32 %v2193
    %vm2200 = vmor %vm2198, %vm2199
    %v2201 = vsel %vm2200, %v2193, %v2197
    %v2202 = vand.u32 2147483647, %v2111
    %vm2203 = vcmp.eq.f32.partialorder %v2202, 8.507059e+37
    %v2204 = vand.u32 %v2111, 2147483648
    %v2205 = vor.u32 1.1754944e-38, %v2204
    %v2206 = vsel %vm2203, %v2205, %v2201
    %v2207 = vmul.f32 1.0, %v2206
    %v2208 = vrcp.pop %v2112
    %v2209 = vmul.f32 %v2112, %v2208
    %v2210 = vsub.f32 1.0, %v2209
    %v2211 = vmul.f32 %v2208, %v2210
    %v2212 = vadd.f32 %v2208, %v2211
    %vm2213 = vweird.f32 %v2112
    %vm2214 = vweird.f32 %v2208
    %vm2215 = vmor %vm2213, %vm2214
    %v2216 = vsel %vm2215, %v2208, %v2212
    %v2217 = vand.u32 2147483647, %v2112
    %vm2218 = vcmp.eq.f32.partialorder %v2217, 8.507059e+37
    %v2219 = vand.u32 %v2112, 2147483648
    %v2220 = vor.u32 1.1754944e-38, %v2219
    %v2221 = vsel %vm2218, %v2220, %v2216
    %v2222 = vmul.f32 1.0, %v2221
    %v2223 = vrcp.pop %v2113
    %v2224 = vmul.f32 %v2113, %v2223
    %v2225 = vsub.f32 1.0, %v2224
    %v2226 = vmul.f32 %v2223, %v2225
    %v2227 = vadd.f32 %v2223, %v2226
    %vm2228 = vweird.f32 %v2113
    %vm2229 = vweird.f32 %v2223
    %vm2230 = vmor %vm2228, %vm2229
    %v2231 = vsel %vm2230, %v2223, %v2227
    %v2232 = vand.u32 2147483647, %v2113
    %vm2233 = vcmp.eq.f32.partialorder %v2232, 8.507059e+37
    %v2234 = vand.u32 %v2113, 2147483648
    %v2235 = vor.u32 1.1754944e-38, %v2234
    %v2236 = vsel %vm2233, %v2235, %v2231
    %v2237 = vmul.f32 1.0, %v2236
    %v2238 = vrcp.pop %v2114
    %v2239 = vmul.f32 %v2114, %v2238
    %v2240 = vsub.f32 1.0, %v2239
    %v2241 = vmul.f32 %v2238, %v2240
    %v2242 = vadd.f32 %v2238, %v2241
    %vm2243 = vweird.f32 %v2114
    %vm2244 = vweird.f32 %v2238
    %vm2245 = vmor %vm2243, %vm2244
    %v2246 = vsel %vm2245, %v2238, %v2242
    %v2247 = vand.u32 2147483647, %v2114
    %vm2248 = vcmp.eq.f32.partialorder %v2247, 8.507059e+37
    %v2249 = vand.u32 %v2114, 2147483648
    %v2250 = vor.u32 1.1754944e-38, %v2249
    %v2251 = vsel %vm2248, %v2250, %v2246
    %v2252 = vmul.f32 1.0, %v2251
    %v2253 = vrcp.pop %v2115
    %v2254 = vmul.f32 %v2115, %v2253
    %v2255 = vsub.f32 1.0, %v2254
    %v2256 = vmul.f32 %v2253, %v2255
    %v2257 = vadd.f32 %v2253, %v2256
    %vm2258 = vweird.f32 %v2115
    %vm2259 = vweird.f32 %v2253
    %vm2260 = vmor %vm2258, %vm2259
    %v2261 = vsel %vm2260, %v2253, %v2257
    %v2262 = vand.u32 2147483647, %v2115
    %vm2263 = vcmp.eq.f32.partialorder %v2262, 8.507059e+37
    %v2264 = vand.u32 %v2115, 2147483648
    %v2265 = vor.u32 1.1754944e-38, %v2264
    %v2266 = vsel %vm2263, %v2265, %v2261
    %v2267 = vmul.f32 1.0, %v2266
    %v2268 = vrcp.pop %v2116
    %v2269 = vmul.f32 %v2116, %v2268
    %v2270 = vsub.f32 1.0, %v2269
    %v2271 = vmul.f32 %v2268, %v2270
    %v2272 = vadd.f32 %v2268, %v2271
    %vm2273 = vweird.f32 %v2116
    %vm2274 = vweird.f32 %v2268
    %vm2275 = vmor %vm2273, %vm2274
    %v2276 = vsel %vm2275, %v2268, %v2272
    %v2277 = vand.u32 2147483647, %v2116
    %vm2278 = vcmp.eq.f32.partialorder %v2277, 8.507059e+37
    %v2279 = vand.u32 %v2116, 2147483648
    %v2280 = vor.u32 1.1754944e-38, %v2279
    %v2281 = vsel %vm2278, %v2280, %v2276
    %v2282 = vmul.f32 1.0, %v2281
    %v2283 = vrcp.pop %v2117
    %v2284 = vmul.f32 %v2117, %v2283
    %v2285 = vsub.f32 1.0, %v2284
    %v2286 = vmul.f32 %v2283, %v2285
    %v2287 = vadd.f32 %v2283, %v2286
    %vm2288 = vweird.f32 %v2117
    %vm2289 = vweird.f32 %v2283
    %vm2290 = vmor %vm2288, %vm2289
    %v2291 = vsel %vm2290, %v2283, %v2287
    %v2292 = vand.u32 2147483647, %v2117
    %vm2293 = vcmp.eq.f32.partialorder %v2292, 8.507059e+37
    %v2294 = vand.u32 %v2117, 2147483648
    %v2295 = vor.u32 1.1754944e-38, %v2294
    %v2296 = vsel %vm2293, %v2295, %v2291
    %v2297 = vmul.f32 1.0, %v2296
    %v2298 = vtanh.pop %v2057
    %v2299 = vtanh.pop %v2061
    %v2300 = vtanh.pop %v2065
    %v2301 = vtanh.pop %v2069
    %v2306 = vrot.slane %v1915, 7
    %v2307 = vrot.slane %v1916, 7
    %v2308 = vrot.slane %v1917, 7
    %v2309 = vrot.slane %v1918, 7
    %v2314 = vmul.f32 %v2147, %v2306
    %v2315 = vmul.f32 %v2192, %v2307
    %v2316 = vmul.f32 %v2237, %v2308
    %v2317 = vmul.f32 %v2282, %v2309
    %v2318 = vmul.f32 %v2132, %v2298
    %v2319 = vmul.f32 %v2177, %v2299
    %v2320 = vmul.f32 %v2222, %v2300
    %v2321 = vmul.f32 %v2267, %v2301
    %v2322 = vadd.f32 %v2314, %v2318
    %v2323 = vadd.f32 %v2315, %v2319
    %v2324 = vadd.f32 %v2316, %v2320
    %v2325 = vadd.f32 %v2317, %v2321
    %v2326 = vtanh.pop %v2322
    %v2327 = vtanh.pop %v2323
    %v2328 = vtanh.pop %v2324
    %v2329 = vtanh.pop %v2325
    %v2330 = vmul.f32 %v2162, %v2326
    %v2331 = vmul.f32 %v2207, %v2327
    %v2332 = vmul.f32 %v2252, %v2328
    %v2333 = vmul.f32 %v2297, %v2329
    %v2338 = vrot.slane %v2330, 4
    %v2339 = vrot.slane %v2331, 3
    %v2340 = vsel %vm720, %v2339, %v2338
    %v2341 = vrot.slane %v2332, 2
    %v2342 = vsel %vm723, %v2341, %v2340
    %v2343 = vrot.slane %v2333, 1
    %v2344 = vsel %vm726, %v2343, %v2342
    %2346 = vmatpush.msra.mxu0 %v122
    %2347 = vmatpush.msra.mxu0 %v118
    %2348 = vmatpush.msra.mxu0 %v114
    %2349 = vmatpush.msra.mxu0 %v110
    %2350 = vmatpush.msra.mxu0 %v106
    %2351 = vmatpush.msra.mxu0 %v102
    %2352 = vmatpush.msra.mxu0 %v98
    %2353 = vmatpush.msra.mxu0 %v94
    %2354 = vmatpush.msra.mxu0 %v90
    %2355 = vmatpush.msra.mxu0 %v86
    %2356 = vmatpush.msra.mxu0 %v82
    %2357 = vmatpush.msra.mxu0 %v78
    %2358 = vmatpush.msra.mxu0 %v74
    %2359 = vmatpush.msra.mxu0 %v70
    %2360 = vmatpush.msra.mxu0 %v66
    %2361 = vmatpush.msra.mxu0 %v62
    %2362 = vmatmul.f32.gmra.mxu0 %v2344
    %v2363 = vpop.f32.mrf.mxu0
    %v2364 = vadd.f32 0.0, %v2363
    %2365 = vdwg.mxu0
    %2366 = vmatpush.msra.mxu0 %v123
    %2367 = vmatpush.msra.mxu0 %v119
    %2368 = vmatpush.msra.mxu0 %v115
    %2369 = vmatpush.msra.mxu0 %v111
    %2370 = vmatpush.msra.mxu0 %v107
    %2371 = vmatpush.msra.mxu0 %v103
    %2372 = vmatpush.msra.mxu0 %v99
    %2373 = vmatpush.msra.mxu0 %v95
    %2374 = vmatpush.msra.mxu0 %v91
    %2375 = vmatpush.msra.mxu0 %v87
    %2376 = vmatpush.msra.mxu0 %v83
    %2377 = vmatpush.msra.mxu0 %v79
    %2378 = vmatpush.msra.mxu0 %v75
    %2379 = vmatpush.msra.mxu0 %v71
    %2380 = vmatpush.msra.mxu0 %v67
    %2381 = vmatpush.msra.mxu0 %v63
    %2382 = vmatmul.f32.gmra.mxu0 %v2344
    %v2383 = vpop.f32.mrf.mxu0
    %v2384 = vadd.f32 0.0, %v2383
    %2385 = vdwg.mxu0
    %2386 = vmatpush.msra.mxu0 %v124
    %2387 = vmatpush.msra.mxu0 %v120
    %2388 = vmatpush.msra.mxu0 %v116
    %2389 = vmatpush.msra.mxu0 %v112
    %2390 = vmatpush.msra.mxu0 %v108
    %2391 = vmatpush.msra.mxu0 %v104
    %2392 = vmatpush.msra.mxu0 %v100
    %2393 = vmatpush.msra.mxu0 %v96
    %2394 = vmatpush.msra.mxu0 %v92
    %2395 = vmatpush.msra.mxu0 %v88
    %2396 = vmatpush.msra.mxu0 %v84
    %2397 = vmatpush.msra.mxu0 %v80
    %2398 = vmatpush.msra.mxu0 %v76
    %2399 = vmatpush.msra.mxu0 %v72
    %2400 = vmatpush.msra.mxu0 %v68
    %2401 = vmatpush.msra.mxu0 %v64
    %2402 = vmatmul.f32.gmra.mxu0 %v2344
    %v2403 = vpop.f32.mrf.mxu0
    %v2404 = vadd.f32 0.0, %v2403
    %2405 = vdwg.mxu0
    %2406 = vmatpush.msra.mxu0 %v125
    %2407 = vmatpush.msra.mxu0 %v121
    %2408 = vmatpush.msra.mxu0 %v117
    %2409 = vmatpush.msra.mxu0 %v113
    %2410 = vmatpush.msra.mxu0 %v109
    %2411 = vmatpush.msra.mxu0 %v105
    %2412 = vmatpush.msra.mxu0 %v101
    %2413 = vmatpush.msra.mxu0 %v97
    %2414 = vmatpush.msra.mxu0 %v93
    %2415 = vmatpush.msra.mxu0 %v89
    %2416 = vmatpush.msra.mxu0 %v85
    %2417 = vmatpush.msra.mxu0 %v81
    %2418 = vmatpush.msra.mxu0 %v77
    %2419 = vmatpush.msra.mxu0 %v73
    %2420 = vmatpush.msra.mxu0 %v69
    %2421 = vmatpush.msra.mxu0 %v65
    %2422 = vmatmul.f32.gmra.mxu0 %v2344
    %v2423 = vpop.f32.mrf.mxu0
    %v2424 = vadd.f32 0.0, %v2423
    %2425 = vdwg.mxu0
    %v2430 = vrot.slane %v2364, 3
    %v2431 = vrot.slane %v2384, 3
    %v2432 = vrot.slane %v2404, 3
    %v2433 = vrot.slane %v2424, 3
    %v2434 = vrot.slane %v2364, 4
    %v2435 = vrot.slane %v2384, 4
    %v2436 = vrot.slane %v2404, 4
    %v2437 = vrot.slane %v2424, 4
    %v2438 = vrot.slane %v2364, 5
    %v2439 = vrot.slane %v2384, 5
    %v2440 = vrot.slane %v2404, 5
    %v2441 = vrot.slane %v2424, 5
    %v2442 = vrot.slane %v2364, 6
    %v2443 = vrot.slane %v2384, 6
    %v2444 = vrot.slane %v2404, 6
    %v2445 = vrot.slane %v2424, 6
    %v2462 = vadd.f32 %v237, %v2430
    %v2463 = vadd.f32 %v266, %v2431
    %v2464 = vadd.f32 %v295, %v2432
    %v2465 = vadd.f32 %v324, %v2433
    %v2466 = vadd.f32 %v240, %v2434
    %v2467 = vadd.f32 %v269, %v2435
    %v2468 = vadd.f32 %v298, %v2436
    %v2469 = vadd.f32 %v327, %v2437
    %v2470 = vadd.f32 %v243, %v2438
    %v2471 = vadd.f32 %v272, %v2439
    %v2472 = vadd.f32 %v301, %v2440
    %v2473 = vadd.f32 %v330, %v2441
    %v2474 = vadd.f32 %v246, %v2442
    %v2475 = vadd.f32 %v275, %v2443
    %v2476 = vadd.f32 %v304, %v2444
    %v2477 = vadd.f32 %v333, %v2445
    %v2478 = vxor.u32 %v2462, 2147483648
    %v2479 = vxor.u32 %v2463, 2147483648
    %v2480 = vxor.u32 %v2464, 2147483648
    %v2481 = vxor.u32 %v2466, 2147483648
    %v2482 = vxor.u32 %v2467, 2147483648
    %v2483 = vxor.u32 %v2468, 2147483648
    %v2484 = vxor.u32 %v2470, 2147483648
    %v2485 = vxor.u32 %v2471, 2147483648
    %v2486 = vxor.u32 %v2472, 2147483648
    %v2487 = vxor.u32 %v2474, 2147483648
    %v2488 = vxor.u32 %v2475, 2147483648
    %v2489 = vxor.u32 %v2476, 2147483648
    %v2490 = vmul.f32 %v2478, 1.442695
    %v2491 = vpow.pop %v2490
    %v2492 = vmul.f32 %v2479, 1.442695
    %v2493 = vpow.pop %v2492
    %v2494 = vmul.f32 %v2480, 1.442695
    %v2495 = vpow.pop %v2494
    %v2496 = vmul.f32 %v2481, 1.442695
    %v2497 = vpow.pop %v2496
    %v2498 = vmul.f32 %v2482, 1.442695
    %v2499 = vpow.pop %v2498
    %v2500 = vmul.f32 %v2483, 1.442695
    %v2501 = vpow.pop %v2500
    %v2502 = vmul.f32 %v2484, 1.442695
    %v2503 = vpow.pop %v2502
    %v2504 = vmul.f32 %v2485, 1.442695
    %v2505 = vpow.pop %v2504
    %v2506 = vmul.f32 %v2486, 1.442695
    %v2507 = vpow.pop %v2506
    %v2508 = vmul.f32 %v2487, 1.442695
    %v2509 = vpow.pop %v2508
    %v2510 = vmul.f32 %v2488, 1.442695
    %v2511 = vpow.pop %v2510
    %v2512 = vmul.f32 %v2489, 1.442695
    %v2513 = vpow.pop %v2512
    %v2514 = vadd.f32 %v2491, 1.0
    %v2515 = vadd.f32 %v2493, 1.0
    %v2516 = vadd.f32 %v2495, 1.0
    %v2517 = vadd.f32 %v2497, 1.0
    %v2518 = vadd.f32 %v2499, 1.0
    %v2519 = vadd.f32 %v2501, 1.0
    %v2520 = vadd.f32 %v2503, 1.0
    %v2521 = vadd.f32 %v2505, 1.0
    %v2522 = vadd.f32 %v2507, 1.0
    %v2523 = vadd.f32 %v2509, 1.0
    %v2524 = vadd.f32 %v2511, 1.0
    %v2525 = vadd.f32 %v2513, 1.0
    %v2526 = vrcp.pop %v2514
    %v2527 = vmul.f32 %v2514, %v2526
    %v2528 = vsub.f32 1.0, %v2527
    %v2529 = vmul.f32 %v2526, %v2528
    %v2530 = vadd.f32 %v2526, %v2529
    %vm2531 = vweird.f32 %v2514
    %vm2532 = vweird.f32 %v2526
    %vm2533 = vmor %vm2531, %vm2532
    %v2534 = vsel %vm2533, %v2526, %v2530
    %v2535 = vand.u32 2147483647, %v2514
    %vm2536 = vcmp.eq.f32.partialorder %v2535, 8.507059e+37
    %v2537 = vand.u32 %v2514, 2147483648
    %v2538 = vor.u32 1.1754944e-38, %v2537
    %v2539 = vsel %vm2536, %v2538, %v2534
    %v2540 = vmul.f32 1.0, %v2539
    %v2541 = vrcp.pop %v2515
    %v2542 = vmul.f32 %v2515, %v2541
    %v2543 = vsub.f32 1.0, %v2542
    %v2544 = vmul.f32 %v2541, %v2543
    %v2545 = vadd.f32 %v2541, %v2544
    %vm2546 = vweird.f32 %v2515
    %vm2547 = vweird.f32 %v2541
    %vm2548 = vmor %vm2546, %vm2547
    %v2549 = vsel %vm2548, %v2541, %v2545
    %v2550 = vand.u32 2147483647, %v2515
    %vm2551 = vcmp.eq.f32.partialorder %v2550, 8.507059e+37
    %v2552 = vand.u32 %v2515, 2147483648
    %v2553 = vor.u32 1.1754944e-38, %v2552
    %v2554 = vsel %vm2551, %v2553, %v2549
    %v2555 = vmul.f32 1.0, %v2554
    %v2556 = vrcp.pop %v2516
    %v2557 = vmul.f32 %v2516, %v2556
    %v2558 = vsub.f32 1.0, %v2557
    %v2559 = vmul.f32 %v2556, %v2558
    %v2560 = vadd.f32 %v2556, %v2559
    %vm2561 = vweird.f32 %v2516
    %vm2562 = vweird.f32 %v2556
    %vm2563 = vmor %vm2561, %vm2562
    %v2564 = vsel %vm2563, %v2556, %v2560
    %v2565 = vand.u32 2147483647, %v2516
    %vm2566 = vcmp.eq.f32.partialorder %v2565, 8.507059e+37
    %v2567 = vand.u32 %v2516, 2147483648
    %v2568 = vor.u32 1.1754944e-38, %v2567
    %v2569 = vsel %vm2566, %v2568, %v2564
    %v2570 = vmul.f32 1.0, %v2569
    %v2571 = vrcp.pop %v2517
    %v2572 = vmul.f32 %v2517, %v2571
    %v2573 = vsub.f32 1.0, %v2572
    %v2574 = vmul.f32 %v2571, %v2573
    %v2575 = vadd.f32 %v2571, %v2574
    %vm2576 = vweird.f32 %v2517
    %vm2577 = vweird.f32 %v2571
    %vm2578 = vmor %vm2576, %vm2577
    %v2579 = vsel %vm2578, %v2571, %v2575
    %v2580 = vand.u32 2147483647, %v2517
    %vm2581 = vcmp.eq.f32.partialorder %v2580, 8.507059e+37
    %v2582 = vand.u32 %v2517, 2147483648
    %v2583 = vor.u32 1.1754944e-38, %v2582
    %v2584 = vsel %vm2581, %v2583, %v2579
    %v2585 = vmul.f32 1.0, %v2584
    %v2586 = vrcp.pop %v2518
    %v2587 = vmul.f32 %v2518, %v2586
    %v2588 = vsub.f32 1.0, %v2587
    %v2589 = vmul.f32 %v2586, %v2588
    %v2590 = vadd.f32 %v2586, %v2589
    %vm2591 = vweird.f32 %v2518
    %vm2592 = vweird.f32 %v2586
    %vm2593 = vmor %vm2591, %vm2592
    %v2594 = vsel %vm2593, %v2586, %v2590
    %v2595 = vand.u32 2147483647, %v2518
    %vm2596 = vcmp.eq.f32.partialorder %v2595, 8.507059e+37
    %v2597 = vand.u32 %v2518, 2147483648
    %v2598 = vor.u32 1.1754944e-38, %v2597
    %v2599 = vsel %vm2596, %v2598, %v2594
    %v2600 = vmul.f32 1.0, %v2599
    %v2601 = vrcp.pop %v2519
    %v2602 = vmul.f32 %v2519, %v2601
    %v2603 = vsub.f32 1.0, %v2602
    %v2604 = vmul.f32 %v2601, %v2603
    %v2605 = vadd.f32 %v2601, %v2604
    %vm2606 = vweird.f32 %v2519
    %vm2607 = vweird.f32 %v2601
    %vm2608 = vmor %vm2606, %vm2607
    %v2609 = vsel %vm2608, %v2601, %v2605
    %v2610 = vand.u32 2147483647, %v2519
    %vm2611 = vcmp.eq.f32.partialorder %v2610, 8.507059e+37
    %v2612 = vand.u32 %v2519, 2147483648
    %v2613 = vor.u32 1.1754944e-38, %v2612
    %v2614 = vsel %vm2611, %v2613, %v2609
    %v2615 = vmul.f32 1.0, %v2614
    %v2616 = vrcp.pop %v2520
    %v2617 = vmul.f32 %v2520, %v2616
    %v2618 = vsub.f32 1.0, %v2617
    %v2619 = vmul.f32 %v2616, %v2618
    %v2620 = vadd.f32 %v2616, %v2619
    %vm2621 = vweird.f32 %v2520
    %vm2622 = vweird.f32 %v2616
    %vm2623 = vmor %vm2621, %vm2622
    %v2624 = vsel %vm2623, %v2616, %v2620
    %v2625 = vand.u32 2147483647, %v2520
    %vm2626 = vcmp.eq.f32.partialorder %v2625, 8.507059e+37
    %v2627 = vand.u32 %v2520, 2147483648
    %v2628 = vor.u32 1.1754944e-38, %v2627
    %v2629 = vsel %vm2626, %v2628, %v2624
    %v2630 = vmul.f32 1.0, %v2629
    %v2631 = vrcp.pop %v2521
    %v2632 = vmul.f32 %v2521, %v2631
    %v2633 = vsub.f32 1.0, %v2632
    %v2634 = vmul.f32 %v2631, %v2633
    %v2635 = vadd.f32 %v2631, %v2634
    %vm2636 = vweird.f32 %v2521
    %vm2637 = vweird.f32 %v2631
    %vm2638 = vmor %vm2636, %vm2637
    %v2639 = vsel %vm2638, %v2631, %v2635
    %v2640 = vand.u32 2147483647, %v2521
    %vm2641 = vcmp.eq.f32.partialorder %v2640, 8.507059e+37
    %v2642 = vand.u32 %v2521, 2147483648
    %v2643 = vor.u32 1.1754944e-38, %v2642
    %v2644 = vsel %vm2641, %v2643, %v2639
    %v2645 = vmul.f32 1.0, %v2644
    %v2646 = vrcp.pop %v2522
    %v2647 = vmul.f32 %v2522, %v2646
    %v2648 = vsub.f32 1.0, %v2647
    %v2649 = vmul.f32 %v2646, %v2648
    %v2650 = vadd.f32 %v2646, %v2649
    %vm2651 = vweird.f32 %v2522
    %vm2652 = vweird.f32 %v2646
    %vm2653 = vmor %vm2651, %vm2652
    %v2654 = vsel %vm2653, %v2646, %v2650
    %v2655 = vand.u32 2147483647, %v2522
    %vm2656 = vcmp.eq.f32.partialorder %v2655, 8.507059e+37
    %v2657 = vand.u32 %v2522, 2147483648
    %v2658 = vor.u32 1.1754944e-38, %v2657
    %v2659 = vsel %vm2656, %v2658, %v2654
    %v2660 = vmul.f32 1.0, %v2659
    %v2661 = vrcp.pop %v2523
    %v2662 = vmul.f32 %v2523, %v2661
    %v2663 = vsub.f32 1.0, %v2662
    %v2664 = vmul.f32 %v2661, %v2663
    %v2665 = vadd.f32 %v2661, %v2664
    %vm2666 = vweird.f32 %v2523
    %vm2667 = vweird.f32 %v2661
    %vm2668 = vmor %vm2666, %vm2667
    %v2669 = vsel %vm2668, %v2661, %v2665
    %v2670 = vand.u32 2147483647, %v2523
    %vm2671 = vcmp.eq.f32.partialorder %v2670, 8.507059e+37
    %v2672 = vand.u32 %v2523, 2147483648
    %v2673 = vor.u32 1.1754944e-38, %v2672
    %v2674 = vsel %vm2671, %v2673, %v2669
    %v2675 = vmul.f32 1.0, %v2674
    %v2676 = vrcp.pop %v2524
    %v2677 = vmul.f32 %v2524, %v2676
    %v2678 = vsub.f32 1.0, %v2677
    %v2679 = vmul.f32 %v2676, %v2678
    %v2680 = vadd.f32 %v2676, %v2679
    %vm2681 = vweird.f32 %v2524
    %vm2682 = vweird.f32 %v2676
    %vm2683 = vmor %vm2681, %vm2682
    %v2684 = vsel %vm2683, %v2676, %v2680
    %v2685 = vand.u32 2147483647, %v2524
    %vm2686 = vcmp.eq.f32.partialorder %v2685, 8.507059e+37
    %v2687 = vand.u32 %v2524, 2147483648
    %v2688 = vor.u32 1.1754944e-38, %v2687
    %v2689 = vsel %vm2686, %v2688, %v2684
    %v2690 = vmul.f32 1.0, %v2689
    %v2691 = vrcp.pop %v2525
    %v2692 = vmul.f32 %v2525, %v2691
    %v2693 = vsub.f32 1.0, %v2692
    %v2694 = vmul.f32 %v2691, %v2693
    %v2695 = vadd.f32 %v2691, %v2694
    %vm2696 = vweird.f32 %v2525
    %vm2697 = vweird.f32 %v2691
    %vm2698 = vmor %vm2696, %vm2697
    %v2699 = vsel %vm2698, %v2691, %v2695
    %v2700 = vand.u32 2147483647, %v2525
    %vm2701 = vcmp.eq.f32.partialorder %v2700, 8.507059e+37
    %v2702 = vand.u32 %v2525, 2147483648
    %v2703 = vor.u32 1.1754944e-38, %v2702
    %v2704 = vsel %vm2701, %v2703, %v2699
    %v2705 = vmul.f32 1.0, %v2704
    %v2706 = vtanh.pop %v2465
    %v2707 = vtanh.pop %v2469
    %v2708 = vtanh.pop %v2473
    %v2709 = vtanh.pop %v2477
    %v2714 = vrot.slane %v2322, 7
    %v2715 = vrot.slane %v2323, 7
    %v2716 = vrot.slane %v2324, 7
    %v2717 = vrot.slane %v2325, 7
    %v2722 = vmul.f32 %v2555, %v2714
    %v2723 = vmul.f32 %v2600, %v2715
    %v2724 = vmul.f32 %v2645, %v2716
    %v2725 = vmul.f32 %v2690, %v2717
    %v2726 = vmul.f32 %v2540, %v2706
    %v2727 = vmul.f32 %v2585, %v2707
    %v2728 = vmul.f32 %v2630, %v2708
    %v2729 = vmul.f32 %v2675, %v2709
    %v2730 = vadd.f32 %v2722, %v2726
    %v2731 = vadd.f32 %v2723, %v2727
    %v2732 = vadd.f32 %v2724, %v2728
    %v2733 = vadd.f32 %v2725, %v2729
    %v2734 = vtanh.pop %v2730
    %v2735 = vtanh.pop %v2731
    %v2736 = vtanh.pop %v2732
    %v2737 = vtanh.pop %v2733
    %v2738 = vmul.f32 %v2570, %v2734
    %v2739 = vmul.f32 %v2615, %v2735
    %v2740 = vmul.f32 %v2660, %v2736
    %v2741 = vmul.f32 %v2705, %v2737
    %v2746 = vrot.slane %v2738, 5
    %v2747 = vrot.slane %v2739, 4
    %v2748 = vsel %vm720, %v2747, %v2746
    %v2749 = vrot.slane %v2740, 3
    %v2750 = vsel %vm723, %v2749, %v2748
    %v2751 = vrot.slane %v2741, 2
    %v2752 = vsel %vm726, %v2751, %v2750
    %2754 = vmatpush.msra.mxu0 %v122
    %2755 = vmatpush.msra.mxu0 %v118
    %2756 = vmatpush.msra.mxu0 %v114
    %2757 = vmatpush.msra.mxu0 %v110
    %2758 = vmatpush.msra.mxu0 %v106
    %2759 = vmatpush.msra.mxu0 %v102
    %2760 = vmatpush.msra.mxu0 %v98
    %2761 = vmatpush.msra.mxu0 %v94
    %2762 = vmatpush.msra.mxu0 %v90
    %2763 = vmatpush.msra.mxu0 %v86
    %2764 = vmatpush.msra.mxu0 %v82
    %2765 = vmatpush.msra.mxu0 %v78
    %2766 = vmatpush.msra.mxu0 %v74
    %2767 = vmatpush.msra.mxu0 %v70
    %2768 = vmatpush.msra.mxu0 %v66
    %2769 = vmatpush.msra.mxu0 %v62
    %2770 = vmatmul.f32.gmra.mxu0 %v2752
    %v2771 = vpop.f32.mrf.mxu0
    %v2772 = vadd.f32 0.0, %v2771
    %2773 = vdwg.mxu0
    %2774 = vmatpush.msra.mxu0 %v123
    %2775 = vmatpush.msra.mxu0 %v119
    %2776 = vmatpush.msra.mxu0 %v115
    %2777 = vmatpush.msra.mxu0 %v111
    %2778 = vmatpush.msra.mxu0 %v107
    %2779 = vmatpush.msra.mxu0 %v103
    %2780 = vmatpush.msra.mxu0 %v99
    %2781 = vmatpush.msra.mxu0 %v95
    %2782 = vmatpush.msra.mxu0 %v91
    %2783 = vmatpush.msra.mxu0 %v87
    %2784 = vmatpush.msra.mxu0 %v83
    %2785 = vmatpush.msra.mxu0 %v79
    %2786 = vmatpush.msra.mxu0 %v75
    %2787 = vmatpush.msra.mxu0 %v71
    %2788 = vmatpush.msra.mxu0 %v67
    %2789 = vmatpush.msra.mxu0 %v63
    %2790 = vmatmul.f32.gmra.mxu0 %v2752
    %v2791 = vpop.f32.mrf.mxu0
    %v2792 = vadd.f32 0.0, %v2791
    %2793 = vdwg.mxu0
    %2794 = vmatpush.msra.mxu0 %v124
    %2795 = vmatpush.msra.mxu0 %v120
    %2796 = vmatpush.msra.mxu0 %v116
    %2797 = vmatpush.msra.mxu0 %v112
    %2798 = vmatpush.msra.mxu0 %v108
    %2799 = vmatpush.msra.mxu0 %v104
    %2800 = vmatpush.msra.mxu0 %v100
    %2801 = vmatpush.msra.mxu0 %v96
    %2802 = vmatpush.msra.mxu0 %v92
    %2803 = vmatpush.msra.mxu0 %v88
    %2804 = vmatpush.msra.mxu0 %v84
    %2805 = vmatpush.msra.mxu0 %v80
    %2806 = vmatpush.msra.mxu0 %v76
    %2807 = vmatpush.msra.mxu0 %v72
    %2808 = vmatpush.msra.mxu0 %v68
    %2809 = vmatpush.msra.mxu0 %v64
    %2810 = vmatmul.f32.gmra.mxu0 %v2752
    %v2811 = vpop.f32.mrf.mxu0
    %v2812 = vadd.f32 0.0, %v2811
    %2813 = vdwg.mxu0
    %2814 = vmatpush.msra.mxu0 %v125
    %2815 = vmatpush.msra.mxu0 %v121
    %2816 = vmatpush.msra.mxu0 %v117
    %2817 = vmatpush.msra.mxu0 %v113
    %2818 = vmatpush.msra.mxu0 %v109
    %2819 = vmatpush.msra.mxu0 %v105
    %2820 = vmatpush.msra.mxu0 %v101
    %2821 = vmatpush.msra.mxu0 %v97
    %2822 = vmatpush.msra.mxu0 %v93
    %2823 = vmatpush.msra.mxu0 %v89
    %2824 = vmatpush.msra.mxu0 %v85
    %2825 = vmatpush.msra.mxu0 %v81
    %2826 = vmatpush.msra.mxu0 %v77
    %2827 = vmatpush.msra.mxu0 %v73
    %2828 = vmatpush.msra.mxu0 %v69
    %2829 = vmatpush.msra.mxu0 %v65
    %2830 = vmatmul.f32.gmra.mxu0 %v2752
    %v2831 = vpop.f32.mrf.mxu0
    %v2832 = vadd.f32 0.0, %v2831
    %2833 = vdwg.mxu0
    %v2838 = vrot.slane %v2772, 2
    %v2839 = vrot.slane %v2792, 2
    %v2840 = vrot.slane %v2812, 2
    %v2841 = vrot.slane %v2832, 2
    %v2842 = vrot.slane %v2772, 3
    %v2843 = vrot.slane %v2792, 3
    %v2844 = vrot.slane %v2812, 3
    %v2845 = vrot.slane %v2832, 3
    %v2846 = vrot.slane %v2772, 4
    %v2847 = vrot.slane %v2792, 4
    %v2848 = vrot.slane %v2812, 4
    %v2849 = vrot.slane %v2832, 4
    %v2850 = vrot.slane %v2772, 5
    %v2851 = vrot.slane %v2792, 5
    %v2852 = vrot.slane %v2812, 5
    %v2853 = vrot.slane %v2832, 5
    %v2870 = vadd.f32 %v237, %v2838
    %v2871 = vadd.f32 %v266, %v2839
    %v2872 = vadd.f32 %v295, %v2840
    %v2873 = vadd.f32 %v324, %v2841
    %v2874 = vadd.f32 %v240, %v2842
    %v2875 = vadd.f32 %v269, %v2843
    %v2876 = vadd.f32 %v298, %v2844
    %v2877 = vadd.f32 %v327, %v2845
    %v2878 = vadd.f32 %v243, %v2846
    %v2879 = vadd.f32 %v272, %v2847
    %v2880 = vadd.f32 %v301, %v2848
    %v2881 = vadd.f32 %v330, %v2849
    %v2882 = vadd.f32 %v246, %v2850
    %v2883 = vadd.f32 %v275, %v2851
    %v2884 = vadd.f32 %v304, %v2852
    %v2885 = vadd.f32 %v333, %v2853
    %v2886 = vxor.u32 %v2870, 2147483648
    %v2887 = vxor.u32 %v2871, 2147483648
    %v2888 = vxor.u32 %v2872, 2147483648
    %v2889 = vxor.u32 %v2874, 2147483648
    %v2890 = vxor.u32 %v2875, 2147483648
    %v2891 = vxor.u32 %v2876, 2147483648
    %v2892 = vxor.u32 %v2878, 2147483648
    %v2893 = vxor.u32 %v2879, 2147483648
    %v2894 = vxor.u32 %v2880, 2147483648
    %v2895 = vxor.u32 %v2882, 2147483648
    %v2896 = vxor.u32 %v2883, 2147483648
    %v2897 = vxor.u32 %v2884, 2147483648
    %v2898 = vmul.f32 %v2886, 1.442695
    %v2899 = vpow.pop %v2898
    %v2900 = vmul.f32 %v2887, 1.442695
    %v2901 = vpow.pop %v2900
    %v2902 = vmul.f32 %v2888, 1.442695
    %v2903 = vpow.pop %v2902
    %v2904 = vmul.f32 %v2889, 1.442695
    %v2905 = vpow.pop %v2904
    %v2906 = vmul.f32 %v2890, 1.442695
    %v2907 = vpow.pop %v2906
    %v2908 = vmul.f32 %v2891, 1.442695
    %v2909 = vpow.pop %v2908
    %v2910 = vmul.f32 %v2892, 1.442695
    %v2911 = vpow.pop %v2910
    %v2912 = vmul.f32 %v2893, 1.442695
    %v2913 = vpow.pop %v2912
    %v2914 = vmul.f32 %v2894, 1.442695
    %v2915 = vpow.pop %v2914
    %v2916 = vmul.f32 %v2895, 1.442695
    %v2917 = vpow.pop %v2916
    %v2918 = vmul.f32 %v2896, 1.442695
    %v2919 = vpow.pop %v2918
    %v2920 = vmul.f32 %v2897, 1.442695
    %v2921 = vpow.pop %v2920
    %v2922 = vadd.f32 %v2899, 1.0
    %v2923 = vadd.f32 %v2901, 1.0
    %v2924 = vadd.f32 %v2903, 1.0
    %v2925 = vadd.f32 %v2905, 1.0
    %v2926 = vadd.f32 %v2907, 1.0
    %v2927 = vadd.f32 %v2909, 1.0
    %v2928 = vadd.f32 %v2911, 1.0
    %v2929 = vadd.f32 %v2913, 1.0
    %v2930 = vadd.f32 %v2915, 1.0
    %v2931 = vadd.f32 %v2917, 1.0
    %v2932 = vadd.f32 %v2919, 1.0
    %v2933 = vadd.f32 %v2921, 1.0
    %v2934 = vrcp.pop %v2922
    %v2935 = vmul.f32 %v2922, %v2934
    %v2936 = vsub.f32 1.0, %v2935
    %v2937 = vmul.f32 %v2934, %v2936
    %v2938 = vadd.f32 %v2934, %v2937
    %vm2939 = vweird.f32 %v2922
    %vm2940 = vweird.f32 %v2934
    %vm2941 = vmor %vm2939, %vm2940
    %v2942 = vsel %vm2941, %v2934, %v2938
    %v2943 = vand.u32 2147483647, %v2922
    %vm2944 = vcmp.eq.f32.partialorder %v2943, 8.507059e+37
    %v2945 = vand.u32 %v2922, 2147483648
    %v2946 = vor.u32 1.1754944e-38, %v2945
    %v2947 = vsel %vm2944, %v2946, %v2942
    %v2948 = vmul.f32 1.0, %v2947
    %v2949 = vrcp.pop %v2923
    %v2950 = vmul.f32 %v2923, %v2949
    %v2951 = vsub.f32 1.0, %v2950
    %v2952 = vmul.f32 %v2949, %v2951
    %v2953 = vadd.f32 %v2949, %v2952
    %vm2954 = vweird.f32 %v2923
    %vm2955 = vweird.f32 %v2949
    %vm2956 = vmor %vm2954, %vm2955
    %v2957 = vsel %vm2956, %v2949, %v2953
    %v2958 = vand.u32 2147483647, %v2923
    %vm2959 = vcmp.eq.f32.partialorder %v2958, 8.507059e+37
    %v2960 = vand.u32 %v2923, 2147483648
    %v2961 = vor.u32 1.1754944e-38, %v2960
    %v2962 = vsel %vm2959, %v2961, %v2957
    %v2963 = vmul.f32 1.0, %v2962
    %v2964 = vrcp.pop %v2924
    %v2965 = vmul.f32 %v2924, %v2964
    %v2966 = vsub.f32 1.0, %v2965
    %v2967 = vmul.f32 %v2964, %v2966
    %v2968 = vadd.f32 %v2964, %v2967
    %vm2969 = vweird.f32 %v2924
    %vm2970 = vweird.f32 %v2964
    %vm2971 = vmor %vm2969, %vm2970
    %v2972 = vsel %vm2971, %v2964, %v2968
    %v2973 = vand.u32 2147483647, %v2924
    %vm2974 = vcmp.eq.f32.partialorder %v2973, 8.507059e+37
    %v2975 = vand.u32 %v2924, 2147483648
    %v2976 = vor.u32 1.1754944e-38, %v2975
    %v2977 = vsel %vm2974, %v2976, %v2972
    %v2978 = vmul.f32 1.0, %v2977
    %v2979 = vrcp.pop %v2925
    %v2980 = vmul.f32 %v2925, %v2979
    %v2981 = vsub.f32 1.0, %v2980
    %v2982 = vmul.f32 %v2979, %v2981
    %v2983 = vadd.f32 %v2979, %v2982
    %vm2984 = vweird.f32 %v2925
    %vm2985 = vweird.f32 %v2979
    %vm2986 = vmor %vm2984, %vm2985
    %v2987 = vsel %vm2986, %v2979, %v2983
    %v2988 = vand.u32 2147483647, %v2925
    %vm2989 = vcmp.eq.f32.partialorder %v2988, 8.507059e+37
    %v2990 = vand.u32 %v2925, 2147483648
    %v2991 = vor.u32 1.1754944e-38, %v2990
    %v2992 = vsel %vm2989, %v2991, %v2987
    %v2993 = vmul.f32 1.0, %v2992
    %v2994 = vrcp.pop %v2926
    %v2995 = vmul.f32 %v2926, %v2994
    %v2996 = vsub.f32 1.0, %v2995
    %v2997 = vmul.f32 %v2994, %v2996
    %v2998 = vadd.f32 %v2994, %v2997
    %vm2999 = vweird.f32 %v2926
    %vm3000 = vweird.f32 %v2994
    %vm3001 = vmor %vm2999, %vm3000
    %v3002 = vsel %vm3001, %v2994, %v2998
    %v3003 = vand.u32 2147483647, %v2926
    %vm3004 = vcmp.eq.f32.partialorder %v3003, 8.507059e+37
    %v3005 = vand.u32 %v2926, 2147483648
    %v3006 = vor.u32 1.1754944e-38, %v3005
    %v3007 = vsel %vm3004, %v3006, %v3002
    %v3008 = vmul.f32 1.0, %v3007
    %v3009 = vrcp.pop %v2927
    %v3010 = vmul.f32 %v2927, %v3009
    %v3011 = vsub.f32 1.0, %v3010
    %v3012 = vmul.f32 %v3009, %v3011
    %v3013 = vadd.f32 %v3009, %v3012
    %vm3014 = vweird.f32 %v2927
    %vm3015 = vweird.f32 %v3009
    %vm3016 = vmor %vm3014, %vm3015
    %v3017 = vsel %vm3016, %v3009, %v3013
    %v3018 = vand.u32 2147483647, %v2927
    %vm3019 = vcmp.eq.f32.partialorder %v3018, 8.507059e+37
    %v3020 = vand.u32 %v2927, 2147483648
    %v3021 = vor.u32 1.1754944e-38, %v3020
    %v3022 = vsel %vm3019, %v3021, %v3017
    %v3023 = vmul.f32 1.0, %v3022
    %v3024 = vrcp.pop %v2928
    %v3025 = vmul.f32 %v2928, %v3024
    %v3026 = vsub.f32 1.0, %v3025
    %v3027 = vmul.f32 %v3024, %v3026
    %v3028 = vadd.f32 %v3024, %v3027
    %vm3029 = vweird.f32 %v2928
    %vm3030 = vweird.f32 %v3024
    %vm3031 = vmor %vm3029, %vm3030
    %v3032 = vsel %vm3031, %v3024, %v3028
    %v3033 = vand.u32 2147483647, %v2928
    %vm3034 = vcmp.eq.f32.partialorder %v3033, 8.507059e+37
    %v3035 = vand.u32 %v2928, 2147483648
    %v3036 = vor.u32 1.1754944e-38, %v3035
    %v3037 = vsel %vm3034, %v3036, %v3032
    %v3038 = vmul.f32 1.0, %v3037
    %v3039 = vrcp.pop %v2929
    %v3040 = vmul.f32 %v2929, %v3039
    %v3041 = vsub.f32 1.0, %v3040
    %v3042 = vmul.f32 %v3039, %v3041
    %v3043 = vadd.f32 %v3039, %v3042
    %vm3044 = vweird.f32 %v2929
    %vm3045 = vweird.f32 %v3039
    %vm3046 = vmor %vm3044, %vm3045
    %v3047 = vsel %vm3046, %v3039, %v3043
    %v3048 = vand.u32 2147483647, %v2929
    %vm3049 = vcmp.eq.f32.partialorder %v3048, 8.507059e+37
    %v3050 = vand.u32 %v2929, 2147483648
    %v3051 = vor.u32 1.1754944e-38, %v3050
    %v3052 = vsel %vm3049, %v3051, %v3047
    %v3053 = vmul.f32 1.0, %v3052
    %v3054 = vrcp.pop %v2930
    %v3055 = vmul.f32 %v2930, %v3054
    %v3056 = vsub.f32 1.0, %v3055
    %v3057 = vmul.f32 %v3054, %v3056
    %v3058 = vadd.f32 %v3054, %v3057
    %vm3059 = vweird.f32 %v2930
    %vm3060 = vweird.f32 %v3054
    %vm3061 = vmor %vm3059, %vm3060
    %v3062 = vsel %vm3061, %v3054, %v3058
    %v3063 = vand.u32 2147483647, %v2930
    %vm3064 = vcmp.eq.f32.partialorder %v3063, 8.507059e+37
    %v3065 = vand.u32 %v2930, 2147483648
    %v3066 = vor.u32 1.1754944e-38, %v3065
    %v3067 = vsel %vm3064, %v3066, %v3062
    %v3068 = vmul.f32 1.0, %v3067
    %v3069 = vrcp.pop %v2931
    %v3070 = vmul.f32 %v2931, %v3069
    %v3071 = vsub.f32 1.0, %v3070
    %v3072 = vmul.f32 %v3069, %v3071
    %v3073 = vadd.f32 %v3069, %v3072
    %vm3074 = vweird.f32 %v2931
    %vm3075 = vweird.f32 %v3069
    %vm3076 = vmor %vm3074, %vm3075
    %v3077 = vsel %vm3076, %v3069, %v3073
    %v3078 = vand.u32 2147483647, %v2931
    %vm3079 = vcmp.eq.f32.partialorder %v3078, 8.507059e+37
    %v3080 = vand.u32 %v2931, 2147483648
    %v3081 = vor.u32 1.1754944e-38, %v3080
    %v3082 = vsel %vm3079, %v3081, %v3077
    %v3083 = vmul.f32 1.0, %v3082
    %v3084 = vrcp.pop %v2932
    %v3085 = vmul.f32 %v2932, %v3084
    %v3086 = vsub.f32 1.0, %v3085
    %v3087 = vmul.f32 %v3084, %v3086
    %v3088 = vadd.f32 %v3084, %v3087
    %vm3089 = vweird.f32 %v2932
    %vm3090 = vweird.f32 %v3084
    %vm3091 = vmor %vm3089, %vm3090
    %v3092 = vsel %vm3091, %v3084, %v3088
    %v3093 = vand.u32 2147483647, %v2932
    %vm3094 = vcmp.eq.f32.partialorder %v3093, 8.507059e+37
    %v3095 = vand.u32 %v2932, 2147483648
    %v3096 = vor.u32 1.1754944e-38, %v3095
    %v3097 = vsel %vm3094, %v3096, %v3092
    %v3098 = vmul.f32 1.0, %v3097
    %v3099 = vrcp.pop %v2933
    %v3100 = vmul.f32 %v2933, %v3099
    %v3101 = vsub.f32 1.0, %v3100
    %v3102 = vmul.f32 %v3099, %v3101
    %v3103 = vadd.f32 %v3099, %v3102
    %vm3104 = vweird.f32 %v2933
    %vm3105 = vweird.f32 %v3099
    %vm3106 = vmor %vm3104, %vm3105
    %v3107 = vsel %vm3106, %v3099, %v3103
    %v3108 = vand.u32 2147483647, %v2933
    %vm3109 = vcmp.eq.f32.partialorder %v3108, 8.507059e+37
    %v3110 = vand.u32 %v2933, 2147483648
    %v3111 = vor.u32 1.1754944e-38, %v3110
    %v3112 = vsel %vm3109, %v3111, %v3107
    %v3113 = vmul.f32 1.0, %v3112
    %v3114 = vtanh.pop %v2873
    %v3115 = vtanh.pop %v2877
    %v3116 = vtanh.pop %v2881
    %v3117 = vtanh.pop %v2885
    %v3122 = vrot.slane %v2730, 7
    %v3123 = vrot.slane %v2731, 7
    %v3124 = vrot.slane %v2732, 7
    %v3125 = vrot.slane %v2733, 7
    %v3130 = vmul.f32 %v2963, %v3122
    %v3131 = vmul.f32 %v3008, %v3123
    %v3132 = vmul.f32 %v3053, %v3124
    %v3133 = vmul.f32 %v3098, %v3125
    %v3134 = vmul.f32 %v2948, %v3114
    %v3135 = vmul.f32 %v2993, %v3115
    %v3136 = vmul.f32 %v3038, %v3116
    %v3137 = vmul.f32 %v3083, %v3117
    %v3138 = vadd.f32 %v3130, %v3134
    %v3139 = vadd.f32 %v3131, %v3135
    %v3140 = vadd.f32 %v3132, %v3136
    %v3141 = vadd.f32 %v3133, %v3137
    %v3142 = vtanh.pop %v3138
    %v3143 = vtanh.pop %v3139
    %v3144 = vtanh.pop %v3140
    %v3145 = vtanh.pop %v3141
    %v3146 = vmul.f32 %v2978, %v3142
    %v3147 = vmul.f32 %v3023, %v3143
    %v3148 = vmul.f32 %v3068, %v3144
    %v3149 = vmul.f32 %v3113, %v3145
    %v3154 = vrot.slane %v3146, 6
    %v3155 = vrot.slane %v3147, 5
    %v3156 = vsel %vm720, %v3155, %v3154
    %v3157 = vrot.slane %v3148, 4
    %v3158 = vsel %vm723, %v3157, %v3156
    %v3159 = vrot.slane %v3149, 3
    %v3160 = vsel %vm726, %v3159, %v3158
    %3162 = vmatpush.msra.mxu0 %v122
    %3163 = vmatpush.msra.mxu0 %v118
    %3164 = vmatpush.msra.mxu0 %v114
    %3165 = vmatpush.msra.mxu0 %v110
    %3166 = vmatpush.msra.mxu0 %v106
    %3167 = vmatpush.msra.mxu0 %v102
    %3168 = vmatpush.msra.mxu0 %v98
    %3169 = vmatpush.msra.mxu0 %v94
    %3170 = vmatpush.msra.mxu0 %v90
    %3171 = vmatpush.msra.mxu0 %v86
    %3172 = vmatpush.msra.mxu0 %v82
    %3173 = vmatpush.msra.mxu0 %v78
    %3174 = vmatpush.msra.mxu0 %v74
    %3175 = vmatpush.msra.mxu0 %v70
    %3176 = vmatpush.msra.mxu0 %v66
    %3177 = vmatpush.msra.mxu0 %v62
    %3178 = vmatmul.f32.gmra.mxu0 %v3160
    %v3179 = vpop.f32.mrf.mxu0
    %v3180 = vadd.f32 0.0, %v3179
    %3181 = vdwg.mxu0
    %3182 = vmatpush.msra.mxu0 %v123
    %3183 = vmatpush.msra.mxu0 %v119
    %3184 = vmatpush.msra.mxu0 %v115
    %3185 = vmatpush.msra.mxu0 %v111
    %3186 = vmatpush.msra.mxu0 %v107
    %3187 = vmatpush.msra.mxu0 %v103
    %3188 = vmatpush.msra.mxu0 %v99
    %3189 = vmatpush.msra.mxu0 %v95
    %3190 = vmatpush.msra.mxu0 %v91
    %3191 = vmatpush.msra.mxu0 %v87
    %3192 = vmatpush.msra.mxu0 %v83
    %3193 = vmatpush.msra.mxu0 %v79
    %3194 = vmatpush.msra.mxu0 %v75
    %3195 = vmatpush.msra.mxu0 %v71
    %3196 = vmatpush.msra.mxu0 %v67
    %3197 = vmatpush.msra.mxu0 %v63
    %3198 = vmatmul.f32.gmra.mxu0 %v3160
    %v3199 = vpop.f32.mrf.mxu0
    %v3200 = vadd.f32 0.0, %v3199
    %3201 = vdwg.mxu0
    %3202 = vmatpush.msra.mxu0 %v124
    %3203 = vmatpush.msra.mxu0 %v120
    %3204 = vmatpush.msra.mxu0 %v116
    %3205 = vmatpush.msra.mxu0 %v112
    %3206 = vmatpush.msra.mxu0 %v108
    %3207 = vmatpush.msra.mxu0 %v104
    %3208 = vmatpush.msra.mxu0 %v100
    %3209 = vmatpush.msra.mxu0 %v96
    %3210 = vmatpush.msra.mxu0 %v92
    %3211 = vmatpush.msra.mxu0 %v88
    %3212 = vmatpush.msra.mxu0 %v84
    %3213 = vmatpush.msra.mxu0 %v80
    %3214 = vmatpush.msra.mxu0 %v76
    %3215 = vmatpush.msra.mxu0 %v72
    %3216 = vmatpush.msra.mxu0 %v68
    %3217 = vmatpush.msra.mxu0 %v64
    %3218 = vmatmul.f32.gmra.mxu0 %v3160
    %v3219 = vpop.f32.mrf.mxu0
    %v3220 = vadd.f32 0.0, %v3219
    %3221 = vdwg.mxu0
    %3222 = vmatpush.msra.mxu0 %v125
    %3223 = vmatpush.msra.mxu0 %v121
    %3224 = vmatpush.msra.mxu0 %v117
    %3225 = vmatpush.msra.mxu0 %v113
    %3226 = vmatpush.msra.mxu0 %v109
    %3227 = vmatpush.msra.mxu0 %v105
    %3228 = vmatpush.msra.mxu0 %v101
    %3229 = vmatpush.msra.mxu0 %v97
    %3230 = vmatpush.msra.mxu0 %v93
    %3231 = vmatpush.msra.mxu0 %v89
    %3232 = vmatpush.msra.mxu0 %v85
    %3233 = vmatpush.msra.mxu0 %v81
    %3234 = vmatpush.msra.mxu0 %v77
    %3235 = vmatpush.msra.mxu0 %v73
    %3236 = vmatpush.msra.mxu0 %v69
    %3237 = vmatpush.msra.mxu0 %v65
    %3238 = vmatmul.f32.gmra.mxu0 %v3160
    %v3239 = vpop.f32.mrf.mxu0
    %v3240 = vadd.f32 0.0, %v3239
    %3241 = vdwg.mxu0
    %v3246 = vrot.slane %v3180, 1
    %v3247 = vrot.slane %v3200, 1
    %v3248 = vrot.slane %v3220, 1
    %v3249 = vrot.slane %v3240, 1
    %v3250 = vrot.slane %v3180, 2
    %v3251 = vrot.slane %v3200, 2
    %v3252 = vrot.slane %v3220, 2
    %v3253 = vrot.slane %v3240, 2
    %v3254 = vrot.slane %v3180, 3
    %v3255 = vrot.slane %v3200, 3
    %v3256 = vrot.slane %v3220, 3
    %v3257 = vrot.slane %v3240, 3
    %v3258 = vrot.slane %v3180, 4
    %v3259 = vrot.slane %v3200, 4
    %v3260 = vrot.slane %v3220, 4
    %v3261 = vrot.slane %v3240, 4
    %v3278 = vadd.f32 %v237, %v3246
    %v3279 = vadd.f32 %v266, %v3247
    %v3280 = vadd.f32 %v295, %v3248
    %v3281 = vadd.f32 %v324, %v3249
    %v3282 = vadd.f32 %v240, %v3250
    %v3283 = vadd.f32 %v269, %v3251
    %v3284 = vadd.f32 %v298, %v3252
    %v3285 = vadd.f32 %v327, %v3253
    %v3286 = vadd.f32 %v243, %v3254
    %v3287 = vadd.f32 %v272, %v3255
    %v3288 = vadd.f32 %v301, %v3256
    %v3289 = vadd.f32 %v330, %v3257
    %v3290 = vadd.f32 %v246, %v3258
    %v3291 = vadd.f32 %v275, %v3259
    %v3292 = vadd.f32 %v304, %v3260
    %v3293 = vadd.f32 %v333, %v3261
    %v3294 = vxor.u32 %v3278, 2147483648
    %v3295 = vxor.u32 %v3279, 2147483648
    %v3296 = vxor.u32 %v3280, 2147483648
    %v3297 = vxor.u32 %v3282, 2147483648
    %v3298 = vxor.u32 %v3283, 2147483648
    %v3299 = vxor.u32 %v3284, 2147483648
    %v3300 = vxor.u32 %v3286, 2147483648
    %v3301 = vxor.u32 %v3287, 2147483648
    %v3302 = vxor.u32 %v3288, 2147483648
    %v3303 = vxor.u32 %v3290, 2147483648
    %v3304 = vxor.u32 %v3291, 2147483648
    %v3305 = vxor.u32 %v3292, 2147483648
    %v3306 = vmul.f32 %v3294, 1.442695
    %v3307 = vpow.pop %v3306
    %v3308 = vmul.f32 %v3295, 1.442695
    %v3309 = vpow.pop %v3308
    %v3310 = vmul.f32 %v3296, 1.442695
    %v3311 = vpow.pop %v3310
    %v3312 = vmul.f32 %v3297, 1.442695
    %v3313 = vpow.pop %v3312
    %v3314 = vmul.f32 %v3298, 1.442695
    %v3315 = vpow.pop %v3314
    %v3316 = vmul.f32 %v3299, 1.442695
    %v3317 = vpow.pop %v3316
    %v3318 = vmul.f32 %v3300, 1.442695
    %v3319 = vpow.pop %v3318
    %v3320 = vmul.f32 %v3301, 1.442695
    %v3321 = vpow.pop %v3320
    %v3322 = vmul.f32 %v3302, 1.442695
    %v3323 = vpow.pop %v3322
    %v3324 = vmul.f32 %v3303, 1.442695
    %v3325 = vpow.pop %v3324
    %v3326 = vmul.f32 %v3304, 1.442695
    %v3327 = vpow.pop %v3326
    %v3328 = vmul.f32 %v3305, 1.442695
    %v3329 = vpow.pop %v3328
    %v3330 = vadd.f32 %v3307, 1.0
    %v3331 = vadd.f32 %v3309, 1.0
    %v3332 = vadd.f32 %v3311, 1.0
    %v3333 = vadd.f32 %v3313, 1.0
    %v3334 = vadd.f32 %v3315, 1.0
    %v3335 = vadd.f32 %v3317, 1.0
    %v3336 = vadd.f32 %v3319, 1.0
    %v3337 = vadd.f32 %v3321, 1.0
    %v3338 = vadd.f32 %v3323, 1.0
    %v3339 = vadd.f32 %v3325, 1.0
    %v3340 = vadd.f32 %v3327, 1.0
    %v3341 = vadd.f32 %v3329, 1.0
    %v3342 = vrcp.pop %v3330
    %v3343 = vmul.f32 %v3330, %v3342
    %v3344 = vsub.f32 1.0, %v3343
    %v3345 = vmul.f32 %v3342, %v3344
    %v3346 = vadd.f32 %v3342, %v3345
    %vm3347 = vweird.f32 %v3330
    %vm3348 = vweird.f32 %v3342
    %vm3349 = vmor %vm3347, %vm3348
    %v3350 = vsel %vm3349, %v3342, %v3346
    %v3351 = vand.u32 2147483647, %v3330
    %vm3352 = vcmp.eq.f32.partialorder %v3351, 8.507059e+37
    %v3353 = vand.u32 %v3330, 2147483648
    %v3354 = vor.u32 1.1754944e-38, %v3353
    %v3355 = vsel %vm3352, %v3354, %v3350
    %v3356 = vmul.f32 1.0, %v3355
    %v3357 = vrcp.pop %v3331
    %v3358 = vmul.f32 %v3331, %v3357
    %v3359 = vsub.f32 1.0, %v3358
    %v3360 = vmul.f32 %v3357, %v3359
    %v3361 = vadd.f32 %v3357, %v3360
    %vm3362 = vweird.f32 %v3331
    %vm3363 = vweird.f32 %v3357
    %vm3364 = vmor %vm3362, %vm3363
    %v3365 = vsel %vm3364, %v3357, %v3361
    %v3366 = vand.u32 2147483647, %v3331
    %vm3367 = vcmp.eq.f32.partialorder %v3366, 8.507059e+37
    %v3368 = vand.u32 %v3331, 2147483648
    %v3369 = vor.u32 1.1754944e-38, %v3368
    %v3370 = vsel %vm3367, %v3369, %v3365
    %v3371 = vmul.f32 1.0, %v3370
    %v3372 = vrcp.pop %v3332
    %v3373 = vmul.f32 %v3332, %v3372
    %v3374 = vsub.f32 1.0, %v3373
    %v3375 = vmul.f32 %v3372, %v3374
    %v3376 = vadd.f32 %v3372, %v3375
    %vm3377 = vweird.f32 %v3332
    %vm3378 = vweird.f32 %v3372
    %vm3379 = vmor %vm3377, %vm3378
    %v3380 = vsel %vm3379, %v3372, %v3376
    %v3381 = vand.u32 2147483647, %v3332
    %vm3382 = vcmp.eq.f32.partialorder %v3381, 8.507059e+37
    %v3383 = vand.u32 %v3332, 2147483648
    %v3384 = vor.u32 1.1754944e-38, %v3383
    %v3385 = vsel %vm3382, %v3384, %v3380
    %v3386 = vmul.f32 1.0, %v3385
    %v3387 = vrcp.pop %v3333
    %v3388 = vmul.f32 %v3333, %v3387
    %v3389 = vsub.f32 1.0, %v3388
    %v3390 = vmul.f32 %v3387, %v3389
    %v3391 = vadd.f32 %v3387, %v3390
    %vm3392 = vweird.f32 %v3333
    %vm3393 = vweird.f32 %v3387
    %vm3394 = vmor %vm3392, %vm3393
    %v3395 = vsel %vm3394, %v3387, %v3391
    %v3396 = vand.u32 2147483647, %v3333
    %vm3397 = vcmp.eq.f32.partialorder %v3396, 8.507059e+37
    %v3398 = vand.u32 %v3333, 2147483648
    %v3399 = vor.u32 1.1754944e-38, %v3398
    %v3400 = vsel %vm3397, %v3399, %v3395
    %v3401 = vmul.f32 1.0, %v3400
    %v3402 = vrcp.pop %v3334
    %v3403 = vmul.f32 %v3334, %v3402
    %v3404 = vsub.f32 1.0, %v3403
    %v3405 = vmul.f32 %v3402, %v3404
    %v3406 = vadd.f32 %v3402, %v3405
    %vm3407 = vweird.f32 %v3334
    %vm3408 = vweird.f32 %v3402
    %vm3409 = vmor %vm3407, %vm3408
    %v3410 = vsel %vm3409, %v3402, %v3406
    %v3411 = vand.u32 2147483647, %v3334
    %vm3412 = vcmp.eq.f32.partialorder %v3411, 8.507059e+37
    %v3413 = vand.u32 %v3334, 2147483648
    %v3414 = vor.u32 1.1754944e-38, %v3413
    %v3415 = vsel %vm3412, %v3414, %v3410
    %v3416 = vmul.f32 1.0, %v3415
    %v3417 = vrcp.pop %v3335
    %v3418 = vmul.f32 %v3335, %v3417
    %v3419 = vsub.f32 1.0, %v3418
    %v3420 = vmul.f32 %v3417, %v3419
    %v3421 = vadd.f32 %v3417, %v3420
    %vm3422 = vweird.f32 %v3335
    %vm3423 = vweird.f32 %v3417
    %vm3424 = vmor %vm3422, %vm3423
    %v3425 = vsel %vm3424, %v3417, %v3421
    %v3426 = vand.u32 2147483647, %v3335
    %vm3427 = vcmp.eq.f32.partialorder %v3426, 8.507059e+37
    %v3428 = vand.u32 %v3335, 2147483648
    %v3429 = vor.u32 1.1754944e-38, %v3428
    %v3430 = vsel %vm3427, %v3429, %v3425
    %v3431 = vmul.f32 1.0, %v3430
    %v3432 = vrcp.pop %v3336
    %v3433 = vmul.f32 %v3336, %v3432
    %v3434 = vsub.f32 1.0, %v3433
    %v3435 = vmul.f32 %v3432, %v3434
    %v3436 = vadd.f32 %v3432, %v3435
    %vm3437 = vweird.f32 %v3336
    %vm3438 = vweird.f32 %v3432
    %vm3439 = vmor %vm3437, %vm3438
    %v3440 = vsel %vm3439, %v3432, %v3436
    %v3441 = vand.u32 2147483647, %v3336
    %vm3442 = vcmp.eq.f32.partialorder %v3441, 8.507059e+37
    %v3443 = vand.u32 %v3336, 2147483648
    %v3444 = vor.u32 1.1754944e-38, %v3443
    %v3445 = vsel %vm3442, %v3444, %v3440
    %v3446 = vmul.f32 1.0, %v3445
    %v3447 = vrcp.pop %v3337
    %v3448 = vmul.f32 %v3337, %v3447
    %v3449 = vsub.f32 1.0, %v3448
    %v3450 = vmul.f32 %v3447, %v3449
    %v3451 = vadd.f32 %v3447, %v3450
    %vm3452 = vweird.f32 %v3337
    %vm3453 = vweird.f32 %v3447
    %vm3454 = vmor %vm3452, %vm3453
    %v3455 = vsel %vm3454, %v3447, %v3451
    %v3456 = vand.u32 2147483647, %v3337
    %vm3457 = vcmp.eq.f32.partialorder %v3456, 8.507059e+37
    %v3458 = vand.u32 %v3337, 2147483648
    %v3459 = vor.u32 1.1754944e-38, %v3458
    %v3460 = vsel %vm3457, %v3459, %v3455
    %v3461 = vmul.f32 1.0, %v3460
    %v3462 = vrcp.pop %v3338
    %v3463 = vmul.f32 %v3338, %v3462
    %v3464 = vsub.f32 1.0, %v3463
    %v3465 = vmul.f32 %v3462, %v3464
    %v3466 = vadd.f32 %v3462, %v3465
    %vm3467 = vweird.f32 %v3338
    %vm3468 = vweird.f32 %v3462
    %vm3469 = vmor %vm3467, %vm3468
    %v3470 = vsel %vm3469, %v3462, %v3466
    %v3471 = vand.u32 2147483647, %v3338
    %vm3472 = vcmp.eq.f32.partialorder %v3471, 8.507059e+37
    %v3473 = vand.u32 %v3338, 2147483648
    %v3474 = vor.u32 1.1754944e-38, %v3473
    %v3475 = vsel %vm3472, %v3474, %v3470
    %v3476 = vmul.f32 1.0, %v3475
    %v3477 = vrcp.pop %v3339
    %v3478 = vmul.f32 %v3339, %v3477
    %v3479 = vsub.f32 1.0, %v3478
    %v3480 = vmul.f32 %v3477, %v3479
    %v3481 = vadd.f32 %v3477, %v3480
    %vm3482 = vweird.f32 %v3339
    %vm3483 = vweird.f32 %v3477
    %vm3484 = vmor %vm3482, %vm3483
    %v3485 = vsel %vm3484, %v3477, %v3481
    %v3486 = vand.u32 2147483647, %v3339
    %vm3487 = vcmp.eq.f32.partialorder %v3486, 8.507059e+37
    %v3488 = vand.u32 %v3339, 2147483648
    %v3489 = vor.u32 1.1754944e-38, %v3488
    %v3490 = vsel %vm3487, %v3489, %v3485
    %v3491 = vmul.f32 1.0, %v3490
    %v3492 = vrcp.pop %v3340
    %v3493 = vmul.f32 %v3340, %v3492
    %v3494 = vsub.f32 1.0, %v3493
    %v3495 = vmul.f32 %v3492, %v3494
    %v3496 = vadd.f32 %v3492, %v3495
    %vm3497 = vweird.f32 %v3340
    %vm3498 = vweird.f32 %v3492
    %vm3499 = vmor %vm3497, %vm3498
    %v3500 = vsel %vm3499, %v3492, %v3496
    %v3501 = vand.u32 2147483647, %v3340
    %vm3502 = vcmp.eq.f32.partialorder %v3501, 8.507059e+37
    %v3503 = vand.u32 %v3340, 2147483648
    %v3504 = vor.u32 1.1754944e-38, %v3503
    %v3505 = vsel %vm3502, %v3504, %v3500
    %v3506 = vmul.f32 1.0, %v3505
    %v3507 = vrcp.pop %v3341
    %v3508 = vmul.f32 %v3341, %v3507
    %v3509 = vsub.f32 1.0, %v3508
    %v3510 = vmul.f32 %v3507, %v3509
    %v3511 = vadd.f32 %v3507, %v3510
    %vm3512 = vweird.f32 %v3341
    %vm3513 = vweird.f32 %v3507
    %vm3514 = vmor %vm3512, %vm3513
    %v3515 = vsel %vm3514, %v3507, %v3511
    %v3516 = vand.u32 2147483647, %v3341
    %vm3517 = vcmp.eq.f32.partialorder %v3516, 8.507059e+37
    %v3518 = vand.u32 %v3341, 2147483648
    %v3519 = vor.u32 1.1754944e-38, %v3518
    %v3520 = vsel %vm3517, %v3519, %v3515
    %v3521 = vmul.f32 1.0, %v3520
    %v3522 = vtanh.pop %v3281
    %v3523 = vtanh.pop %v3285
    %v3524 = vtanh.pop %v3289
    %v3525 = vtanh.pop %v3293
    %v3530 = vrot.slane %v3138, 7
    %v3531 = vrot.slane %v3139, 7
    %v3532 = vrot.slane %v3140, 7
    %v3533 = vrot.slane %v3141, 7
    %v3538 = vmul.f32 %v3371, %v3530
    %v3539 = vmul.f32 %v3416, %v3531
    %v3540 = vmul.f32 %v3461, %v3532
    %v3541 = vmul.f32 %v3506, %v3533
    %v3542 = vmul.f32 %v3356, %v3522
    %v3543 = vmul.f32 %v3401, %v3523
    %v3544 = vmul.f32 %v3446, %v3524
    %v3545 = vmul.f32 %v3491, %v3525
    %v3546 = vadd.f32 %v3538, %v3542
    %v3547 = vadd.f32 %v3539, %v3543
    %v3548 = vadd.f32 %v3540, %v3544
    %v3549 = vadd.f32 %v3541, %v3545
    %v3550 = vtanh.pop %v3546
    %v3551 = vtanh.pop %v3547
    %v3552 = vtanh.pop %v3548
    %v3553 = vtanh.pop %v3549
    %v3554 = vmul.f32 %v3386, %v3550
    %v3555 = vmul.f32 %v3431, %v3551
    %v3556 = vmul.f32 %v3476, %v3552
    %v3557 = vmul.f32 %v3521, %v3553
    %v3558 = vld [vmem:[#allocation7 + $0x3c0] sm:$0xff]
    %v3559 = vld [vmem:[#allocation7 + $0x3e0] sm:$0xff]
    %v3560 = vld [vmem:[#allocation7 + $0x400] sm:$0xff]
    %v3561 = vld [vmem:[#allocation7 + $0x420] sm:$0xff]
    %v3562 = vld [vmem:[#allocation7 + $0x440] sm:$0xff]
    %v3563 = vld [vmem:[#allocation7 + $0x460] sm:$0xff]
    %v3564 = vld [vmem:[#allocation7 + $0x480] sm:$0xff]
    %v3565 = vld [vmem:[#allocation7 + $0x4a0] sm:$0xff]
    %v3566 = vld [vmem:[#allocation7 + $0x4c0] sm:$0xff]
    %v3567 = vld [vmem:[#allocation7 + $0x4e0] sm:$0xff]
    %v3568 = vld [vmem:[#allocation7 + $0x500] sm:$0xff]
    %v3569 = vld [vmem:[#allocation7 + $0x520] sm:$0xff]
    %v3570 = vld [vmem:[#allocation7 + $0x540] sm:$0xff]
    %v3571 = vld [vmem:[#allocation7 + $0x560] sm:$0xff]
    %v3572 = vld [vmem:[#allocation7 + $0x580] sm:$0xff]
    %v3573 = vld [vmem:[#allocation7 + $0x5a0] sm:$0xff]
    %v3574 = vld [vmem:[#allocation7 + $0x5c0] ss:$0 sm:$0xff]
    %v3575 = vld [vmem:[#allocation7 + $0x5e0] sm:$0xff]
    %v3576 = vld [vmem:[#allocation7 + $0x600] sm:$0xff]
    %v3577 = vld [vmem:[#allocation7 + $0x620] sm:$0xff]
    %v3578 = vld [vmem:[#allocation7 + $0x640] sm:$0xff]
    %v3579 = vld [vmem:[#allocation7 + $0x660] ss:$0 sm:$0xff]
    %v3580 = vsub.f32 %v3554, %v3556
    %v3581 = vsub.f32 %v3555, %v3557
    %v3582 = vmul.f32 %v3580, %v3580
    %v3583 = vmul.f32 %v3581, %v3581
    %v3586 = vrot.slane %v3582, 7
    %v3587 = vrot.slane %v3583, 6
    %v3588 = vsel %vm720, %v3587, %v3586
    %3590 = vmatpush.msra.mxu0 %v3573
    %3591 = vmatpush.msra.mxu0 %v3572
    %3592 = vmatpush.msra.mxu0 %v3571
    %3593 = vmatpush.msra.mxu0 %v3570
    %3594 = vmatpush.msra.mxu0 %v3569
    %3595 = vmatpush.msra.mxu0 %v3568
    %3596 = vmatpush.msra.mxu0 %v3567
    %3597 = vmatpush.msra.mxu0 %v3566
    %3598 = vmatpush.msra.mxu0 %v3565
    %3599 = vmatpush.msra.mxu0 %v3564
    %3600 = vmatpush.msra.mxu0 %v3563
    %3601 = vmatpush.msra.mxu0 %v3562
    %3602 = vmatpush.msra.mxu0 %v3561
    %3603 = vmatpush.msra.mxu0 %v3560
    %3604 = vmatpush.msra.mxu0 %v3559
    %3605 = vmatpush.msra.mxu0 %v3558
    %3606 = vmatmul.f32.gmra.mxu0 %v3588
    %v3607 = vpop.f32.mrf.mxu0
    %v3608 = vadd.f32 %v3574, %v3607
    %3609 = vdwg.mxu0
    %vm3610 = vcmask 261120
    %v3612 = vsel %vm3610, %v3608, 0
    %3614 = vmatpush.msra.mxu0 0.0
    %3615 = vmatpush.msra.mxu0 0.0
    %3616 = vmatpush.msra.mxu0 0.0
    %3617 = vmatpush.msra.mxu0 0.0
    %3618 = vmatpush.msra.mxu0 0.0
    %3619 = vmatpush.msra.mxu0 0.0
    %3620 = vmatpush.msra.mxu0 0.0
    %3621 = vmatpush.msra.mxu0 0.0
    %3622 = vmatpush.msra.mxu0 0.0
    %3623 = vmatpush.msra.mxu0 0.0
    %3624 = vmatpush.msra.mxu0 0.0
    %3625 = vmatpush.msra.mxu0 0.0
    %3626 = vmatpush.msra.mxu0 %v3578
    %3627 = vmatpush.msra.mxu0 %v3577
    %3628 = vmatpush.msra.mxu0 %v3576
    %3629 = vmatpush.msra.mxu0 %v3575
    %3630 = vmatmul.f32.gmra.mxu0 %v3612
    %v3631 = vpop.f32.mrf.mxu0
    %v3632 = vadd.f32 %v3579, %v3631
    %3633 = vdwg.mxu0
    %vm3634 = vcmask 9216
    %3635 = vst.msk [vmem:[#allocation8] sm:$0x3] %vm3634, %v3632
    // Predicated region
    $region26: #{ree_forward.1} parent=1 // pred_check
      _
    $region27: #{ree_forward.1} parent=1 // pred_check_branch
      %3637 = sbr.rel (0) target = $region29
    $region28: #{ree_forward.1} parent=1 // pred_region
      %3639 = vsyncadd [#allocation4], 0
      %s3641 = sshll.u32 [#allocation8], 4
      %s3642 = int_to_ptr.vmem [resolvable:$true] %s3641
      %s3643 = sshll.u32 %s3, 4
      %s3644 = int_to_ptr.hbm [resolvable:$true] %s3643
      %3646 = dma.vmem_to_hbm [thread:$0]  %s3642, 32, %s3644, [#allocation4]
    $region29: #{ree_forward.1} parent=1 // pred_fallthru
      _
    // Predicated region
    $region30: #{ree_forward.1} parent=1 // pred_check
      _
    $region31: #{ree_forward.1} parent=1 // pred_check_branch
      %3648 = sbr.rel (0) target = $region33
    $region32: #{ree_forward.1} parent=1 // pred_region
      %3650 = dma.done [#allocation4], 32
    $region33: #{ree_forward.1} parent=1 // pred_fallthru
      _
    %3651 = vsyncpa [#allocation3], 1
    %3652 = vsyncpa [#allocation6], 1
    %3653 = vsyncpa [#allocation4], 1

</llo_original>
